<compile_context>
chip_gen: v7x
topology: tpu7x:2x2x1
jax: 0.10.0
libtpu: 0.0.40
codegen_flags: <defaults>
</compile_context>

<pallas_src>
import jax
import jax.numpy as jnp
from jax.experimental import pallas as pl
from jax.experimental.pallas import tpu as pltpu


# ----------------------------- scheduler setup ------------------------------
# Deterministic, in-script stand-in for DDPMScheduler.from_pretrained(...):
# standard DDPM linear beta schedule.
NUM_TRAIN_TIMESTEPS = 1000
BETA_START = 1.0e-4
BETA_END = 0.02

LANES = 128
SUBLANES = 8
TILE_B = SUBLANES * LANES  # 1024 timesteps handled per grid step


def make_alphas_cumprod(num_steps=NUM_TRAIN_TIMESTEPS,
                        beta_start=BETA_START, beta_end=BETA_END):
    betas = jnp.linspace(beta_start, beta_end, num_steps, dtype=jnp.float32)
    alphas = 1.0 - betas
    return jnp.cumprod(alphas).astype(jnp.float32)


def make_snr_table(alphas_cumprod):
    # Elementwise identical to (sqrt(ac)[t] / sqrt(1-ac)[t]) ** 2, precomputed
    # once so the per-call kernel is a pure gather.
    sqrt_ac = jnp.sqrt(alphas_cumprod)
    sqrt_1m = jnp.sqrt(1.0 - alphas_cumprod)
    return ((sqrt_ac / sqrt_1m) ** 2).astype(jnp.float32)


# ------------------------------- Pallas kernel ------------------------------
def _snr_gather_kernel(ts_ref, tbl_ref, out_ref):
    # ts_ref : (8, 128) int32   -- one tile of timesteps (lane-dense)
    # tbl_ref: (Tp, 1) float32  -- padded SNR table (resident across the grid)
    # out_ref: (8, 128) float32 -- SNR per timestep (lane-dense)
    tp = tbl_ref.shape[0]
    rows, lanes = ts_ref.shape

    # Hoisted once per grid step (reused by all 8 rows): table broadcast along
    # lanes and the table-index iota along sublanes.
    tbl_b = jnp.broadcast_to(tbl_ref[...], (tp, lanes))               # (Tp,128)
    t_ids = jax.lax.broadcasted_iota(jnp.int32, (tp, lanes), 0)       # (Tp,128)

    for r in range(rows):  # static unrolled loop over the 8 sublane rows
        ts_row = ts_ref[pl.ds(r, 1), :]                               # (1,128)
        # one-hot gather as a select + sublane reduction (VPU + XLU only)
        sel = jnp.where(t_ids == ts_row, tbl_b, 0.0)                  # (Tp,128)
        out_ref[pl.ds(r, 1), :] = jnp.sum(sel, axis=0, keepdims=True)


def compute_snr_pallas(timesteps, snr_table):
    """SNR for each timestep; matches BaseDiffusion.compute_snr semantics."""
    orig_shape = timesteps.shape
    B = int(timesteps.size)
    T = int(snr_table.shape[0])
    Tp = ((T + LANES - 1) // LANES) * LANES            # 1000 -> 1024
    Bp = ((B + TILE_B - 1) // TILE_B) * TILE_B         # pad to a whole tile
    R = Bp // LANES                                    # rows (multiple of 8)

    ts_flat = timesteps.reshape(-1).astype(jnp.int32)
    # Guard: PyTorch gather would raise on OOB indices; we clamp instead.
    ts_flat = jnp.clip(ts_flat, 0, T - 1)
    ts2 = jnp.pad(ts_flat, (0, Bp - B)).reshape(R, LANES)             # lane-dense

    tbl = jnp.pad(snr_table.astype(jnp.float32), (0, Tp - T)).reshape(Tp, 1)

    out = pl.pallas_call(
        _snr_gather_kernel,
        out_shape=jax.ShapeDtypeStruct((R, LANES), jnp.float32),
        grid=(R // SUBLANES,),
        in_specs=[
            pl.BlockSpec((SUBLANES, LANES), lambda i: (i, 0)),   # timesteps tile
            pl.BlockSpec((Tp, 1), lambda i: (0, 0)),             # resident table
        ],
        out_specs=pl.BlockSpec((SUBLANES, LANES), lambda i: (i, 0)),
        compiler_params=pltpu.CompilerParams(
            dimension_semantics=("parallel",)),                  # 2 TCs on v7x
    )(ts2, tbl)

    return out.reshape(-1)[:B].reshape(orig_shape)


# ------------------------------ module wrapper ------------------------------
class BaseDiffusionJAX:
    """JAX/Pallas analogue of BaseDiffusion (compute_snr only)."""

    def __init__(self, snr_gamma=None, uncondition=False):
        self.snr_gamma = snr_gamma
        self.uncondition = uncondition
        # Deterministic scheduler table (stand-in for DDPMScheduler pretrained).
        self.alphas_cumprod = make_alphas_cumprod()
        # SNR lookup table precomputed once (static w.r.t. the scheduler).
        self.snr_table = make_snr_table(self.alphas_cumprod)
        # TODO(synk): UNet2DConditionModel and forward()/inference()/encode_text()
        # are not defined in this module (they raise NotImplementedError) — not
        # translated; scheduler betas reconstructed in-script (no file access).

    def compute_snr(self, timesteps):
        return compute_snr_pallas(timesteps, self.snr_table)


# ---------------------------------- main ------------------------------------
if __name__ == "__main__":
    key = jax.random.PRNGKey(0)
    k1, k2 = jax.random.split(key)

    model = BaseDiffusionJAX(snr_gamma=5.0)
    ac = model.alphas_cumprod

    def snr_reference(ts):
        # Pure-JAX mirror of the PyTorch code path.
        alpha = jnp.sqrt(ac)[ts].astype(jnp.float32)
        sigma = jnp.sqrt(1.0 - ac)[ts].astype(jnp.float32)
        return (alpha / sigma) ** 2

    # Small case: batch of 8 training timesteps.
    timesteps = jax.random.randint(
        k1, (8,), minval=0, maxval=NUM_TRAIN_TIMESTEPS, dtype=jnp.int32)
    snr = jax.block_until_ready(model.compute_snr(timesteps))
    assert snr.shape == timesteps.shape and snr.dtype == jnp.float32
    assert jnp.allclose(snr, snr_reference(timesteps), rtol=1e-5, atol=1e-6)

    # Multi-tile 2D case: exercises the grid, padding and shape preservation.
    timesteps2 = jax.random.randint(
        k2, (2, 700), minval=0, maxval=NUM_TRAIN_TIMESTEPS, dtype=jnp.int32)
    snr2 = jax.block_until_ready(model.compute_snr(timesteps2))
    assert snr2.shape == timesteps2.shape and snr2.dtype == jnp.float32
    assert jnp.allclose(snr2, snr_reference(timesteps2), rtol=1e-5, atol=1e-6)

    print("KERNEL_OK")
</pallas_src>

<mosaic_0001>
module attributes {stable_mosaic.version = 11 : i64} {
  func.func @_snr_gather_kernel(%arg0: i32, %arg1: memref<8x128xi32, #tpu.memory_space<vmem>>, %arg2: memref<1024x1xf32, #tpu.memory_space<vmem>>, %arg3: memref<8x128xf32, #tpu.memory_space<vmem>>) attributes {dimension_semantics = [#tpu.dimension_semantics<parallel>], iteration_bounds = array<i64: 1>, scalar_prefetch = 0 : i64, scratch_operands = 0 : i64, tpu.core_type = #tpu.core_type<tc>, window_params = [{transform_indices = @transform_0, window_bounds = array<i64: 8, 128>}, {pipeline_mode = #tpu.pipeline_mode<synchronous>, transform_indices = @transform_1, window_bounds = array<i64: 1024, 1>}, {transform_indices = @transform_2, window_bounds = array<i64: 8, 128>}]} {
    %c0 = arith.constant 0 : index
    %c0_0 = arith.constant 0 : index
    %0 = vector.load %arg2[%c0, %c0_0] : memref<1024x1xf32, #tpu.memory_space<vmem>>, vector<1024x1xf32>
    %1 = vector.shape_cast %0 : vector<1024x1xf32> to vector<1024x1xf32>
    %2 = vector.broadcast %1 : vector<1024x1xf32> to vector<1024x128xf32>
    %3 = tpu.iota {dimensions = array<i32: 0>} : vector<1024x128xi32>
    %c0_1 = arith.constant 0 : index
    %c0_2 = arith.constant 0 : index
    %4 = vector.load %arg1[%c0_1, %c0_2] : memref<8x128xi32, #tpu.memory_space<vmem>>, vector<1x128xi32>
    %5 = vector.broadcast %4 : vector<1x128xi32> to vector<1024x128xi32>
    %6 = arith.cmpi eq, %3, %5 : vector<1024x128xi32>
    %cst = arith.constant 0.000000e+00 : f32
    %7 = vector.broadcast %cst : f32 to vector<1024x128xf32>
    %8 = arith.select %6, %2, %7 : vector<1024x128xi1>, vector<1024x128xf32>
    %cst_3 = arith.constant dense<0.000000e+00> : vector<128xf32>
    %9 = vector.multi_reduction <add>, %8, %cst_3 [0] : vector<1024x128xf32> to vector<128xf32>
    %10 = vector.shape_cast %9 : vector<128xf32> to vector<1x128xf32>
    %c0_4 = arith.constant 0 : index
    %c0_5 = arith.constant 0 : index
    %11 = vector.load %arg3[%c0_4, %c0_5] : memref<8x128xf32, #tpu.memory_space<vmem>>, vector<1x128xf32>
    tpu.vector_store %arg3[%c0_4, %c0_5], %10 {strides = array<i32>} : memref<8x128xf32, #tpu.memory_space<vmem>>, vector<1x128xf32>,
    %c1 = arith.constant 1 : index
    %c0_6 = arith.constant 0 : index
    %12 = vector.load %arg1[%c1, %c0_6] : memref<8x128xi32, #tpu.memory_space<vmem>>, vector<1x128xi32>
    %13 = vector.broadcast %12 : vector<1x128xi32> to vector<1024x128xi32>
    %14 = arith.cmpi eq, %3, %13 : vector<1024x128xi32>
    %cst_7 = arith.constant 0.000000e+00 : f32
    %15 = vector.broadcast %cst_7 : f32 to vector<1024x128xf32>
    %16 = arith.select %14, %2, %15 : vector<1024x128xi1>, vector<1024x128xf32>
    %cst_8 = arith.constant dense<0.000000e+00> : vector<128xf32>
    %17 = vector.multi_reduction <add>, %16, %cst_8 [0] : vector<1024x128xf32> to vector<128xf32>
    %18 = vector.shape_cast %17 : vector<128xf32> to vector<1x128xf32>
    %c1_9 = arith.constant 1 : index
    %c0_10 = arith.constant 0 : index
    %19 = vector.load %arg3[%c1_9, %c0_10] : memref<8x128xf32, #tpu.memory_space<vmem>>, vector<1x128xf32>
    tpu.vector_store %arg3[%c1_9, %c0_10], %18 {strides = array<i32>} : memref<8x128xf32, #tpu.memory_space<vmem>>, vector<1x128xf32>,
    %c2 = arith.constant 2 : index
    %c0_11 = arith.constant 0 : index
    %20 = vector.load %arg1[%c2, %c0_11] : memref<8x128xi32, #tpu.memory_space<vmem>>, vector<1x128xi32>
    %21 = vector.broadcast %20 : vector<1x128xi32> to vector<1024x128xi32>
    %22 = arith.cmpi eq, %3, %21 : vector<1024x128xi32>
    %cst_12 = arith.constant 0.000000e+00 : f32
    %23 = vector.broadcast %cst_12 : f32 to vector<1024x128xf32>
    %24 = arith.select %22, %2, %23 : vector<1024x128xi1>, vector<1024x128xf32>
    %cst_13 = arith.constant dense<0.000000e+00> : vector<128xf32>
    %25 = vector.multi_reduction <add>, %24, %cst_13 [0] : vector<1024x128xf32> to vector<128xf32>
    %26 = vector.shape_cast %25 : vector<128xf32> to vector<1x128xf32>
    %c2_14 = arith.constant 2 : index
    %c0_15 = arith.constant 0 : index
    %27 = vector.load %arg3[%c2_14, %c0_15] : memref<8x128xf32, #tpu.memory_space<vmem>>, vector<1x128xf32>
    tpu.vector_store %arg3[%c2_14, %c0_15], %26 {strides = array<i32>} : memref<8x128xf32, #tpu.memory_space<vmem>>, vector<1x128xf32>,
    %c3 = arith.constant 3 : index
    %c0_16 = arith.constant 0 : index
    %28 = vector.load %arg1[%c3, %c0_16] : memref<8x128xi32, #tpu.memory_space<vmem>>, vector<1x128xi32>
    %29 = vector.broadcast %28 : vector<1x128xi32> to vector<1024x128xi32>
    %30 = arith.cmpi eq, %3, %29 : vector<1024x128xi32>
    %cst_17 = arith.constant 0.000000e+00 : f32
    %31 = vector.broadcast %cst_17 : f32 to vector<1024x128xf32>
    %32 = arith.select %30, %2, %31 : vector<1024x128xi1>, vector<1024x128xf32>
    %cst_18 = arith.constant dense<0.000000e+00> : vector<128xf32>
    %33 = vector.multi_reduction <add>, %32, %cst_18 [0] : vector<1024x128xf32> to vector<128xf32>
    %34 = vector.shape_cast %33 : vector<128xf32> to vector<1x128xf32>
    %c3_19 = arith.constant 3 : index
    %c0_20 = arith.constant 0 : index
    %35 = vector.load %arg3[%c3_19, %c0_20] : memref<8x128xf32, #tpu.memory_space<vmem>>, vector<1x128xf32>
    tpu.vector_store %arg3[%c3_19, %c0_20], %34 {strides = array<i32>} : memref<8x128xf32, #tpu.memory_space<vmem>>, vector<1x128xf32>,
    %c4 = arith.constant 4 : index
    %c0_21 = arith.constant 0 : index
    %36 = vector.load %arg1[%c4, %c0_21] : memref<8x128xi32, #tpu.memory_space<vmem>>, vector<1x128xi32>
    %37 = vector.broadcast %36 : vector<1x128xi32> to vector<1024x128xi32>
    %38 = arith.cmpi eq, %3, %37 : vector<1024x128xi32>
    %cst_22 = arith.constant 0.000000e+00 : f32
    %39 = vector.broadcast %cst_22 : f32 to vector<1024x128xf32>
    %40 = arith.select %38, %2, %39 : vector<1024x128xi1>, vector<1024x128xf32>
    %cst_23 = arith.constant dense<0.000000e+00> : vector<128xf32>
    %41 = vector.multi_reduction <add>, %40, %cst_23 [0] : vector<1024x128xf32> to vector<128xf32>
    %42 = vector.shape_cast %41 : vector<128xf32> to vector<1x128xf32>
    %c4_24 = arith.constant 4 : index
    %c0_25 = arith.constant 0 : index
    %43 = vector.load %arg3[%c4_24, %c0_25] : memref<8x128xf32, #tpu.memory_space<vmem>>, vector<1x128xf32>
    tpu.vector_store %arg3[%c4_24, %c0_25], %42 {strides = array<i32>} : memref<8x128xf32, #tpu.memory_space<vmem>>, vector<1x128xf32>,
    %c5 = arith.constant 5 : index
    %c0_26 = arith.constant 0 : index
    %44 = vector.load %arg1[%c5, %c0_26] : memref<8x128xi32, #tpu.memory_space<vmem>>, vector<1x128xi32>
    %45 = vector.broadcast %44 : vector<1x128xi32> to vector<1024x128xi32>
    %46 = arith.cmpi eq, %3, %45 : vector<1024x128xi32>
    %cst_27 = arith.constant 0.000000e+00 : f32
    %47 = vector.broadcast %cst_27 : f32 to vector<1024x128xf32>
    %48 = arith.select %46, %2, %47 : vector<1024x128xi1>, vector<1024x128xf32>
    %cst_28 = arith.constant dense<0.000000e+00> : vector<128xf32>
    %49 = vector.multi_reduction <add>, %48, %cst_28 [0] : vector<1024x128xf32> to vector<128xf32>
    %50 = vector.shape_cast %49 : vector<128xf32> to vector<1x128xf32>
    %c5_29 = arith.constant 5 : index
    %c0_30 = arith.constant 0 : index
    %51 = vector.load %arg3[%c5_29, %c0_30] : memref<8x128xf32, #tpu.memory_space<vmem>>, vector<1x128xf32>
    tpu.vector_store %arg3[%c5_29, %c0_30], %50 {strides = array<i32>} : memref<8x128xf32, #tpu.memory_space<vmem>>, vector<1x128xf32>,
    %c6 = arith.constant 6 : index
    %c0_31 = arith.constant 0 : index
    %52 = vector.load %arg1[%c6, %c0_31] : memref<8x128xi32, #tpu.memory_space<vmem>>, vector<1x128xi32>
    %53 = vector.broadcast %52 : vector<1x128xi32> to vector<1024x128xi32>
    %54 = arith.cmpi eq, %3, %53 : vector<1024x128xi32>
    %cst_32 = arith.constant 0.000000e+00 : f32
    %55 = vector.broadcast %cst_32 : f32 to vector<1024x128xf32>
    %56 = arith.select %54, %2, %55 : vector<1024x128xi1>, vector<1024x128xf32>
    %cst_33 = arith.constant dense<0.000000e+00> : vector<128xf32>
    %57 = vector.multi_reduction <add>, %56, %cst_33 [0] : vector<1024x128xf32> to vector<128xf32>
    %58 = vector.shape_cast %57 : vector<128xf32> to vector<1x128xf32>
    %c6_34 = arith.constant 6 : index
    %c0_35 = arith.constant 0 : index
    %59 = vector.load %arg3[%c6_34, %c0_35] : memref<8x128xf32, #tpu.memory_space<vmem>>, vector<1x128xf32>
    tpu.vector_store %arg3[%c6_34, %c0_35], %58 {strides = array<i32>} : memref<8x128xf32, #tpu.memory_space<vmem>>, vector<1x128xf32>,
    %c7 = arith.constant 7 : index
    %c0_36 = arith.constant 0 : index
    %60 = vector.load %arg1[%c7, %c0_36] : memref<8x128xi32, #tpu.memory_space<vmem>>, vector<1x128xi32>
    %61 = vector.broadcast %60 : vector<1x128xi32> to vector<1024x128xi32>
    %62 = arith.cmpi eq, %3, %61 : vector<1024x128xi32>
    %cst_37 = arith.constant 0.000000e+00 : f32
    %63 = vector.broadcast %cst_37 : f32 to vector<1024x128xf32>
    %64 = arith.select %62, %2, %63 : vector<1024x128xi1>, vector<1024x128xf32>
    %cst_38 = arith.constant dense<0.000000e+00> : vector<128xf32>
    %65 = vector.multi_reduction <add>, %64, %cst_38 [0] : vector<1024x128xf32> to vector<128xf32>
    %66 = vector.shape_cast %65 : vector<128xf32> to vector<1x128xf32>
    %c7_39 = arith.constant 7 : index
    %c0_40 = arith.constant 0 : index
    %67 = vector.load %arg3[%c7_39, %c0_40] : memref<8x128xf32, #tpu.memory_space<vmem>>, vector<1x128xf32>
    tpu.vector_store %arg3[%c7_39, %c0_40], %66 {strides = array<i32>} : memref<8x128xf32, #tpu.memory_space<vmem>>, vector<1x128xf32>,
    return
  }
  func.func @transform_0(%arg0: i32) -> (i32, i32) {
    %c0_i32 = arith.constant 0 : i32
    %c0_i32_0 = arith.constant 0 : i32
    return %arg0, %c0_i32 : i32, i32
  }
  func.func @transform_1(%arg0: i32) -> (i32, i32) {
    %c0_i32 = arith.constant 0 : i32
    %c0_i32_0 = arith.constant 0 : i32
    %c0_i32_1 = arith.constant 0 : i32
    return %c0_i32, %c0_i32_0 : i32, i32
  }
  func.func @transform_2(%arg0: i32) -> (i32, i32) {
    %c0_i32 = arith.constant 0 : i32
    %c0_i32_0 = arith.constant 0 : i32
    return %arg0, %c0_i32 : i32, i32
  }
}

</mosaic_0001>

<llo_original>
// kernel: tpu_custom_call.1
$region0: #{tpu_custom_call.1}
  #allocation0 [shape = 'u32[]', space=smem, size = 0x4, offset = 0x4, fixed_abs, tag = 'smem constant byte address 0x4 - core index']
  #allocation1 [shape = 'u32[144,128]{1,0:T(1,128)}', space=vmem, size = 0x12000, scoped, tag = 'internal scratch']
  %s0 = inlined_call_operand.vmem [shape: s32[8,128], index: 0, kind: input, shape index: {}]
  %s1 = inlined_call_operand.vmem [shape: f32[1024,1], index: 1, kind: input, shape index: {}]
  %s2 = inlined_call_operand.hbm [shape: f32[8,128], index: 2, kind: output, shape index: {}]
  %s3 = sld [smem:[#allocation0]]
  $region18: #{tpu_custom_call.1} parent=0
    _
  %s5 = ssub.s32 1, %s3
  %s6 = scalar_select 0, %s5, %s3
  $region1: #{tpu_custom_call.1} parent=0
    #allocation2 [shape = 'u8[4096]{0}', space=vmem, size = 0x1000, scoped, tag = 'output window, operand 0, single buffered']
    #allocation3 [shape = 's32[1]{0}', space=sflag, size = 0x4, scoped, tag = 'scoped memory for tpu_custom_call.1']
    %7 = vsyncpa [#allocation3], 0
    // Predicated region
    $region2: #{tpu_custom_call.1} parent=1 // pred_check
      _
    $region3: #{tpu_custom_call.1} parent=1 // pred_check_branch
      %9 = sbr.rel (0) target = $region5
    $region4: #{tpu_custom_call.1} parent=1 // pred_region
      _
    $region5: #{tpu_custom_call.1} parent=1 // pred_fallthru
      _
    // Predicated region
    $region6: #{tpu_custom_call.1} parent=1 // pred_check
      _
    $region7: #{tpu_custom_call.1} parent=1 // pred_check_branch
      %11 = sbr.rel (0) target = $region9
    $region8: #{tpu_custom_call.1} parent=1 // pred_region
      _
    $region9: #{tpu_custom_call.1} parent=1 // pred_fallthru
      _
    %v12 = vld [vmem:[%s1] sm:$0xff]
    %v13 = vld [vmem:[%s1 + $0x8] sm:$0xff]
    %v14 = vld [vmem:[%s1 + $0x10] sm:$0xff]
    %v15 = vld [vmem:[%s1 + $0x18] sm:$0xff]
    %v16 = vld [vmem:[%s1 + $0x20] sm:$0xff]
    %v17 = vld [vmem:[%s1 + $0x28] sm:$0xff]
    %v18 = vld [vmem:[%s1 + $0x30] sm:$0xff]
    %v19 = vld [vmem:[%s1 + $0x38] sm:$0xff]
    %v20 = vld [vmem:[%s1 + $0x40] sm:$0xff]
    %v21 = vld [vmem:[%s1 + $0x48] sm:$0xff]
    %v22 = vld [vmem:[%s1 + $0x50] sm:$0xff]
    %v23 = vld [vmem:[%s1 + $0x58] sm:$0xff]
    %v24 = vld [vmem:[%s1 + $0x60] sm:$0xff]
    %v25 = vld [vmem:[%s1 + $0x68] sm:$0xff]
    %v26 = vld [vmem:[%s1 + $0x70] sm:$0xff]
    %v27 = vld [vmem:[%s1 + $0x78] sm:$0xff]
    %v28 = vld [vmem:[%s1 + $0x80] sm:$0xff]
    %v29 = vld [vmem:[%s1 + $0x88] sm:$0xff]
    %v30 = vld [vmem:[%s1 + $0x90] sm:$0xff]
    %v31 = vld [vmem:[%s1 + $0x98] sm:$0xff]
    %v32 = vld [vmem:[%s1 + $0xa0] sm:$0xff]
    %v33 = vld [vmem:[%s1 + $0xa8] sm:$0xff]
    %v34 = vld [vmem:[%s1 + $0xb0] sm:$0xff]
    %v35 = vld [vmem:[%s1 + $0xb8] sm:$0xff]
    %v36 = vld [vmem:[%s1 + $0xc0] sm:$0xff]
    %v37 = vld [vmem:[%s1 + $0xc8] sm:$0xff]
    %v38 = vld [vmem:[%s1 + $0xd0] sm:$0xff]
    %v39 = vld [vmem:[%s1 + $0xd8] sm:$0xff]
    %v40 = vld [vmem:[%s1 + $0xe0] sm:$0xff]
    %v41 = vld [vmem:[%s1 + $0xe8] sm:$0xff]
    %v42 = vld [vmem:[%s1 + $0xf0] sm:$0xff]
    %v43 = vld [vmem:[%s1 + $0xf8] sm:$0xff]
    %v44 = vld [vmem:[%s1 + $0x100] sm:$0xff]
    %v45 = vld [vmem:[%s1 + $0x108] sm:$0xff]
    %v46 = vld [vmem:[%s1 + $0x110] sm:$0xff]
    %v47 = vld [vmem:[%s1 + $0x118] sm:$0xff]
    %v48 = vld [vmem:[%s1 + $0x120] sm:$0xff]
    %v49 = vld [vmem:[%s1 + $0x128] sm:$0xff]
    %v50 = vld [vmem:[%s1 + $0x130] sm:$0xff]
    %v51 = vld [vmem:[%s1 + $0x138] sm:$0xff]
    %v52 = vld [vmem:[%s1 + $0x140] sm:$0xff]
    %v53 = vld [vmem:[%s1 + $0x148] sm:$0xff]
    %v54 = vld [vmem:[%s1 + $0x150] sm:$0xff]
    %v55 = vld [vmem:[%s1 + $0x158] sm:$0xff]
    %v56 = vld [vmem:[%s1 + $0x160] sm:$0xff]
    %v57 = vld [vmem:[%s1 + $0x168] sm:$0xff]
    %v58 = vld [vmem:[%s1 + $0x170] sm:$0xff]
    %v59 = vld [vmem:[%s1 + $0x178] sm:$0xff]
    %v60 = vld [vmem:[%s1 + $0x180] sm:$0xff]
    %v61 = vld [vmem:[%s1 + $0x188] sm:$0xff]
    %v62 = vld [vmem:[%s1 + $0x190] sm:$0xff]
    %v63 = vld [vmem:[%s1 + $0x198] sm:$0xff]
    %v64 = vld [vmem:[%s1 + $0x1a0] sm:$0xff]
    %v65 = vld [vmem:[%s1 + $0x1a8] sm:$0xff]
    %v66 = vld [vmem:[%s1 + $0x1b0] sm:$0xff]
    %v67 = vld [vmem:[%s1 + $0x1b8] sm:$0xff]
    %v68 = vld [vmem:[%s1 + $0x1c0] sm:$0xff]
    %v69 = vld [vmem:[%s1 + $0x1c8] sm:$0xff]
    %v70 = vld [vmem:[%s1 + $0x1d0] sm:$0xff]
    %v71 = vld [vmem:[%s1 + $0x1d8] sm:$0xff]
    %v72 = vld [vmem:[%s1 + $0x1e0] sm:$0xff]
    %v73 = vld [vmem:[%s1 + $0x1e8] sm:$0xff]
    %v74 = vld [vmem:[%s1 + $0x1f0] sm:$0xff]
    %v75 = vld [vmem:[%s1 + $0x1f8] sm:$0xff]
    %v76 = vld [vmem:[%s1 + $0x200] sm:$0xff]
    %v77 = vld [vmem:[%s1 + $0x208] sm:$0xff]
    %v78 = vld [vmem:[%s1 + $0x210] sm:$0xff]
    %v79 = vld [vmem:[%s1 + $0x218] sm:$0xff]
    %v80 = vld [vmem:[%s1 + $0x220] sm:$0xff]
    %v81 = vld [vmem:[%s1 + $0x228] sm:$0xff]
    %v82 = vld [vmem:[%s1 + $0x230] sm:$0xff]
    %v83 = vld [vmem:[%s1 + $0x238] sm:$0xff]
    %v84 = vld [vmem:[%s1 + $0x240] sm:$0xff]
    %v85 = vld [vmem:[%s1 + $0x248] sm:$0xff]
    %v86 = vld [vmem:[%s1 + $0x250] sm:$0xff]
    %v87 = vld [vmem:[%s1 + $0x258] sm:$0xff]
    %v88 = vld [vmem:[%s1 + $0x260] sm:$0xff]
    %v89 = vld [vmem:[%s1 + $0x268] sm:$0xff]
    %v90 = vld [vmem:[%s1 + $0x270] sm:$0xff]
    %v91 = vld [vmem:[%s1 + $0x278] sm:$0xff]
    %v92 = vld [vmem:[%s1 + $0x280] sm:$0xff]
    %v93 = vld [vmem:[%s1 + $0x288] sm:$0xff]
    %v94 = vld [vmem:[%s1 + $0x290] sm:$0xff]
    %v95 = vld [vmem:[%s1 + $0x298] sm:$0xff]
    %v96 = vld [vmem:[%s1 + $0x2a0] sm:$0xff]
    %v97 = vld [vmem:[%s1 + $0x2a8] sm:$0xff]
    %v98 = vld [vmem:[%s1 + $0x2b0] sm:$0xff]
    %v99 = vld [vmem:[%s1 + $0x2b8] sm:$0xff]
    %v100 = vld [vmem:[%s1 + $0x2c0] sm:$0xff]
    %v101 = vld [vmem:[%s1 + $0x2c8] sm:$0xff]
    %v102 = vld [vmem:[%s1 + $0x2d0] sm:$0xff]
    %v103 = vld [vmem:[%s1 + $0x2d8] sm:$0xff]
    %v104 = vld [vmem:[%s1 + $0x2e0] sm:$0xff]
    %v105 = vld [vmem:[%s1 + $0x2e8] sm:$0xff]
    %v106 = vld [vmem:[%s1 + $0x2f0] sm:$0xff]
    %v107 = vld [vmem:[%s1 + $0x2f8] sm:$0xff]
    %v108 = vld [vmem:[%s1 + $0x300] sm:$0xff]
    %v109 = vld [vmem:[%s1 + $0x308] sm:$0xff]
    %v110 = vld [vmem:[%s1 + $0x310] sm:$0xff]
    %v111 = vld [vmem:[%s1 + $0x318] sm:$0xff]
    %v112 = vld [vmem:[%s1 + $0x320] sm:$0xff]
    %v113 = vld [vmem:[%s1 + $0x328] sm:$0xff]
    %v114 = vld [vmem:[%s1 + $0x330] sm:$0xff]
    %v115 = vld [vmem:[%s1 + $0x338] sm:$0xff]
    %v116 = vld [vmem:[%s1 + $0x340] sm:$0xff]
    %v117 = vld [vmem:[%s1 + $0x348] sm:$0xff]
    %v118 = vld [vmem:[%s1 + $0x350] sm:$0xff]
    %v119 = vld [vmem:[%s1 + $0x358] sm:$0xff]
    %v120 = vld [vmem:[%s1 + $0x360] sm:$0xff]
    %v121 = vld [vmem:[%s1 + $0x368] sm:$0xff]
    %v122 = vld [vmem:[%s1 + $0x370] sm:$0xff]
    %v123 = vld [vmem:[%s1 + $0x378] sm:$0xff]
    %v124 = vld [vmem:[%s1 + $0x380] sm:$0xff]
    %v125 = vld [vmem:[%s1 + $0x388] sm:$0xff]
    %v126 = vld [vmem:[%s1 + $0x390] sm:$0xff]
    %v127 = vld [vmem:[%s1 + $0x398] sm:$0xff]
    %v128 = vld [vmem:[%s1 + $0x3a0] sm:$0xff]
    %v129 = vld [vmem:[%s1 + $0x3a8] sm:$0xff]
    %v130 = vld [vmem:[%s1 + $0x3b0] sm:$0xff]
    %v131 = vld [vmem:[%s1 + $0x3b8] sm:$0xff]
    %v132 = vld [vmem:[%s1 + $0x3c0] sm:$0xff]
    %v133 = vld [vmem:[%s1 + $0x3c8] sm:$0xff]
    %v134 = vld [vmem:[%s1 + $0x3d0] sm:$0xff]
    %v135 = vld [vmem:[%s1 + $0x3d8] sm:$0xff]
    %v136 = vld [vmem:[%s1 + $0x3e0] sm:$0xff]
    %v137 = vld [vmem:[%s1 + $0x3e8] sm:$0xff]
    %v138 = vld [vmem:[%s1 + $0x3f0] sm:$0xff]
    %v139 = vld [vmem:[%s1 + $0x3f8] sm:$0xff]
    %141 = vset.pattern.permute.xlu0 0
    %142 = vperm.xlu0 %141, %v12
    %v143 = vpop.permute.xlu0 %142
    %146 = vset.pattern.permute.xlu0 0
    %147 = vperm.xlu0 %146, %v13
    %v148 = vpop.permute.xlu0 %147
    %151 = vset.pattern.permute.xlu0 0
    %152 = vperm.xlu0 %151, %v14
    %v153 = vpop.permute.xlu0 %152
    %156 = vset.pattern.permute.xlu0 0
    %157 = vperm.xlu0 %156, %v15
    %v158 = vpop.permute.xlu0 %157
    %161 = vset.pattern.permute.xlu0 0
    %162 = vperm.xlu0 %161, %v16
    %v163 = vpop.permute.xlu0 %162
    %166 = vset.pattern.permute.xlu0 0
    %167 = vperm.xlu0 %166, %v17
    %v168 = vpop.permute.xlu0 %167
    %171 = vset.pattern.permute.xlu0 0
    %172 = vperm.xlu0 %171, %v18
    %v173 = vpop.permute.xlu0 %172
    %176 = vset.pattern.permute.xlu0 0
    %177 = vperm.xlu0 %176, %v19
    %v178 = vpop.permute.xlu0 %177
    %181 = vset.pattern.permute.xlu0 0
    %182 = vperm.xlu0 %181, %v20
    %v183 = vpop.permute.xlu0 %182
    %186 = vset.pattern.permute.xlu0 0
    %187 = vperm.xlu0 %186, %v21
    %v188 = vpop.permute.xlu0 %187
    %191 = vset.pattern.permute.xlu0 0
    %192 = vperm.xlu0 %191, %v22
    %v193 = vpop.permute.xlu0 %192
    %196 = vset.pattern.permute.xlu0 0
    %197 = vperm.xlu0 %196, %v23
    %v198 = vpop.permute.xlu0 %197
    %201 = vset.pattern.permute.xlu0 0
    %202 = vperm.xlu0 %201, %v24
    %v203 = vpop.permute.xlu0 %202
    %206 = vset.pattern.permute.xlu0 0
    %207 = vperm.xlu0 %206, %v25
    %v208 = vpop.permute.xlu0 %207
    %211 = vset.pattern.permute.xlu0 0
    %212 = vperm.xlu0 %211, %v26
    %v213 = vpop.permute.xlu0 %212
    %216 = vset.pattern.permute.xlu0 0
    %217 = vperm.xlu0 %216, %v27
    %v218 = vpop.permute.xlu0 %217
    %221 = vset.pattern.permute.xlu0 0
    %222 = vperm.xlu0 %221, %v28
    %v223 = vpop.permute.xlu0 %222
    %226 = vset.pattern.permute.xlu0 0
    %227 = vperm.xlu0 %226, %v29
    %v228 = vpop.permute.xlu0 %227
    %231 = vset.pattern.permute.xlu0 0
    %232 = vperm.xlu0 %231, %v30
    %v233 = vpop.permute.xlu0 %232
    %236 = vset.pattern.permute.xlu0 0
    %237 = vperm.xlu0 %236, %v31
    %v238 = vpop.permute.xlu0 %237
    %241 = vset.pattern.permute.xlu0 0
    %242 = vperm.xlu0 %241, %v32
    %v243 = vpop.permute.xlu0 %242
    %246 = vset.pattern.permute.xlu0 0
    %247 = vperm.xlu0 %246, %v33
    %v248 = vpop.permute.xlu0 %247
    %251 = vset.pattern.permute.xlu0 0
    %252 = vperm.xlu0 %251, %v34
    %v253 = vpop.permute.xlu0 %252
    %256 = vset.pattern.permute.xlu0 0
    %257 = vperm.xlu0 %256, %v35
    %v258 = vpop.permute.xlu0 %257
    %261 = vset.pattern.permute.xlu0 0
    %262 = vperm.xlu0 %261, %v36
    %v263 = vpop.permute.xlu0 %262
    %266 = vset.pattern.permute.xlu0 0
    %267 = vperm.xlu0 %266, %v37
    %v268 = vpop.permute.xlu0 %267
    %271 = vset.pattern.permute.xlu0 0
    %272 = vperm.xlu0 %271, %v38
    %v273 = vpop.permute.xlu0 %272
    %276 = vset.pattern.permute.xlu0 0
    %277 = vperm.xlu0 %276, %v39
    %v278 = vpop.permute.xlu0 %277
    %281 = vset.pattern.permute.xlu0 0
    %282 = vperm.xlu0 %281, %v40
    %v283 = vpop.permute.xlu0 %282
    %286 = vset.pattern.permute.xlu0 0
    %287 = vperm.xlu0 %286, %v41
    %v288 = vpop.permute.xlu0 %287
    %291 = vset.pattern.permute.xlu0 0
    %292 = vperm.xlu0 %291, %v42
    %v293 = vpop.permute.xlu0 %292
    %296 = vset.pattern.permute.xlu0 0
    %297 = vperm.xlu0 %296, %v43
    %v298 = vpop.permute.xlu0 %297
    %301 = vset.pattern.permute.xlu0 0
    %302 = vperm.xlu0 %301, %v44
    %v303 = vpop.permute.xlu0 %302
    %306 = vset.pattern.permute.xlu0 0
    %307 = vperm.xlu0 %306, %v45
    %v308 = vpop.permute.xlu0 %307
    %311 = vset.pattern.permute.xlu0 0
    %312 = vperm.xlu0 %311, %v46
    %v313 = vpop.permute.xlu0 %312
    %316 = vset.pattern.permute.xlu0 0
    %317 = vperm.xlu0 %316, %v47
    %v318 = vpop.permute.xlu0 %317
    %321 = vset.pattern.permute.xlu0 0
    %322 = vperm.xlu0 %321, %v48
    %v323 = vpop.permute.xlu0 %322
    %326 = vset.pattern.permute.xlu0 0
    %327 = vperm.xlu0 %326, %v49
    %v328 = vpop.permute.xlu0 %327
    %331 = vset.pattern.permute.xlu0 0
    %332 = vperm.xlu0 %331, %v50
    %v333 = vpop.permute.xlu0 %332
    %336 = vset.pattern.permute.xlu0 0
    %337 = vperm.xlu0 %336, %v51
    %v338 = vpop.permute.xlu0 %337
    %341 = vset.pattern.permute.xlu0 0
    %342 = vperm.xlu0 %341, %v52
    %v343 = vpop.permute.xlu0 %342
    %346 = vset.pattern.permute.xlu0 0
    %347 = vperm.xlu0 %346, %v53
    %v348 = vpop.permute.xlu0 %347
    %351 = vset.pattern.permute.xlu0 0
    %352 = vperm.xlu0 %351, %v54
    %v353 = vpop.permute.xlu0 %352
    %356 = vset.pattern.permute.xlu0 0
    %357 = vperm.xlu0 %356, %v55
    %v358 = vpop.permute.xlu0 %357
    %361 = vset.pattern.permute.xlu0 0
    %362 = vperm.xlu0 %361, %v56
    %v363 = vpop.permute.xlu0 %362
    %366 = vset.pattern.permute.xlu0 0
    %367 = vperm.xlu0 %366, %v57
    %v368 = vpop.permute.xlu0 %367
    %371 = vset.pattern.permute.xlu0 0
    %372 = vperm.xlu0 %371, %v58
    %v373 = vpop.permute.xlu0 %372
    %376 = vset.pattern.permute.xlu0 0
    %377 = vperm.xlu0 %376, %v59
    %v378 = vpop.permute.xlu0 %377
    %381 = vset.pattern.permute.xlu0 0
    %382 = vperm.xlu0 %381, %v60
    %v383 = vpop.permute.xlu0 %382
    %386 = vset.pattern.permute.xlu0 0
    %387 = vperm.xlu0 %386, %v61
    %v388 = vpop.permute.xlu0 %387
    %391 = vset.pattern.permute.xlu0 0
    %392 = vperm.xlu0 %391, %v62
    %v393 = vpop.permute.xlu0 %392
    %396 = vset.pattern.permute.xlu0 0
    %397 = vperm.xlu0 %396, %v63
    %v398 = vpop.permute.xlu0 %397
    %401 = vset.pattern.permute.xlu0 0
    %402 = vperm.xlu0 %401, %v64
    %v403 = vpop.permute.xlu0 %402
    %406 = vset.pattern.permute.xlu0 0
    %407 = vperm.xlu0 %406, %v65
    %v408 = vpop.permute.xlu0 %407
    %411 = vset.pattern.permute.xlu0 0
    %412 = vperm.xlu0 %411, %v66
    %v413 = vpop.permute.xlu0 %412
    %416 = vset.pattern.permute.xlu0 0
    %417 = vperm.xlu0 %416, %v67
    %v418 = vpop.permute.xlu0 %417
    %421 = vset.pattern.permute.xlu0 0
    %422 = vperm.xlu0 %421, %v68
    %v423 = vpop.permute.xlu0 %422
    %426 = vset.pattern.permute.xlu0 0
    %427 = vperm.xlu0 %426, %v69
    %v428 = vpop.permute.xlu0 %427
    %431 = vset.pattern.permute.xlu0 0
    %432 = vperm.xlu0 %431, %v70
    %v433 = vpop.permute.xlu0 %432
    %436 = vset.pattern.permute.xlu0 0
    %437 = vperm.xlu0 %436, %v71
    %v438 = vpop.permute.xlu0 %437
    %441 = vset.pattern.permute.xlu0 0
    %442 = vperm.xlu0 %441, %v72
    %v443 = vpop.permute.xlu0 %442
    %446 = vset.pattern.permute.xlu0 0
    %447 = vperm.xlu0 %446, %v73
    %v448 = vpop.permute.xlu0 %447
    %451 = vset.pattern.permute.xlu0 0
    %452 = vperm.xlu0 %451, %v74
    %v453 = vpop.permute.xlu0 %452
    %456 = vset.pattern.permute.xlu0 0
    %457 = vperm.xlu0 %456, %v75
    %v458 = vpop.permute.xlu0 %457
    %461 = vset.pattern.permute.xlu0 0
    %462 = vperm.xlu0 %461, %v76
    %v463 = vpop.permute.xlu0 %462
    %466 = vset.pattern.permute.xlu0 0
    %467 = vperm.xlu0 %466, %v77
    %v468 = vpop.permute.xlu0 %467
    %471 = vset.pattern.permute.xlu0 0
    %472 = vperm.xlu0 %471, %v78
    %v473 = vpop.permute.xlu0 %472
    %476 = vset.pattern.permute.xlu0 0
    %477 = vperm.xlu0 %476, %v79
    %v478 = vpop.permute.xlu0 %477
    %481 = vset.pattern.permute.xlu0 0
    %482 = vperm.xlu0 %481, %v80
    %v483 = vpop.permute.xlu0 %482
    %486 = vset.pattern.permute.xlu0 0
    %487 = vperm.xlu0 %486, %v81
    %v488 = vpop.permute.xlu0 %487
    %491 = vset.pattern.permute.xlu0 0
    %492 = vperm.xlu0 %491, %v82
    %v493 = vpop.permute.xlu0 %492
    %496 = vset.pattern.permute.xlu0 0
    %497 = vperm.xlu0 %496, %v83
    %v498 = vpop.permute.xlu0 %497
    %501 = vset.pattern.permute.xlu0 0
    %502 = vperm.xlu0 %501, %v84
    %v503 = vpop.permute.xlu0 %502
    %506 = vset.pattern.permute.xlu0 0
    %507 = vperm.xlu0 %506, %v85
    %v508 = vpop.permute.xlu0 %507
    %511 = vset.pattern.permute.xlu0 0
    %512 = vperm.xlu0 %511, %v86
    %v513 = vpop.permute.xlu0 %512
    %516 = vset.pattern.permute.xlu0 0
    %517 = vperm.xlu0 %516, %v87
    %v518 = vpop.permute.xlu0 %517
    %521 = vset.pattern.permute.xlu0 0
    %522 = vperm.xlu0 %521, %v88
    %v523 = vpop.permute.xlu0 %522
    %526 = vset.pattern.permute.xlu0 0
    %527 = vperm.xlu0 %526, %v89
    %v528 = vpop.permute.xlu0 %527
    %531 = vset.pattern.permute.xlu0 0
    %532 = vperm.xlu0 %531, %v90
    %v533 = vpop.permute.xlu0 %532
    %536 = vset.pattern.permute.xlu0 0
    %537 = vperm.xlu0 %536, %v91
    %v538 = vpop.permute.xlu0 %537
    %541 = vset.pattern.permute.xlu0 0
    %542 = vperm.xlu0 %541, %v92
    %v543 = vpop.permute.xlu0 %542
    %546 = vset.pattern.permute.xlu0 0
    %547 = vperm.xlu0 %546, %v93
    %v548 = vpop.permute.xlu0 %547
    %551 = vset.pattern.permute.xlu0 0
    %552 = vperm.xlu0 %551, %v94
    %v553 = vpop.permute.xlu0 %552
    %556 = vset.pattern.permute.xlu0 0
    %557 = vperm.xlu0 %556, %v95
    %v558 = vpop.permute.xlu0 %557
    %561 = vset.pattern.permute.xlu0 0
    %562 = vperm.xlu0 %561, %v96
    %v563 = vpop.permute.xlu0 %562
    %566 = vset.pattern.permute.xlu0 0
    %567 = vperm.xlu0 %566, %v97
    %v568 = vpop.permute.xlu0 %567
    %571 = vset.pattern.permute.xlu0 0
    %572 = vperm.xlu0 %571, %v98
    %v573 = vpop.permute.xlu0 %572
    %576 = vset.pattern.permute.xlu0 0
    %577 = vperm.xlu0 %576, %v99
    %v578 = vpop.permute.xlu0 %577
    %581 = vset.pattern.permute.xlu0 0
    %582 = vperm.xlu0 %581, %v100
    %v583 = vpop.permute.xlu0 %582
    %586 = vset.pattern.permute.xlu0 0
    %587 = vperm.xlu0 %586, %v101
    %v588 = vpop.permute.xlu0 %587
    %591 = vset.pattern.permute.xlu0 0
    %592 = vperm.xlu0 %591, %v102
    %v593 = vpop.permute.xlu0 %592
    %596 = vset.pattern.permute.xlu0 0
    %597 = vperm.xlu0 %596, %v103
    %v598 = vpop.permute.xlu0 %597
    %601 = vset.pattern.permute.xlu0 0
    %602 = vperm.xlu0 %601, %v104
    %v603 = vpop.permute.xlu0 %602
    %606 = vset.pattern.permute.xlu0 0
    %607 = vperm.xlu0 %606, %v105
    %v608 = vpop.permute.xlu0 %607
    %611 = vset.pattern.permute.xlu0 0
    %612 = vperm.xlu0 %611, %v106
    %v613 = vpop.permute.xlu0 %612
    %616 = vset.pattern.permute.xlu0 0
    %617 = vperm.xlu0 %616, %v107
    %v618 = vpop.permute.xlu0 %617
    %621 = vset.pattern.permute.xlu0 0
    %622 = vperm.xlu0 %621, %v108
    %v623 = vpop.permute.xlu0 %622
    %626 = vset.pattern.permute.xlu0 0
    %627 = vperm.xlu0 %626, %v109
    %v628 = vpop.permute.xlu0 %627
    %631 = vset.pattern.permute.xlu0 0
    %632 = vperm.xlu0 %631, %v110
    %v633 = vpop.permute.xlu0 %632
    %636 = vset.pattern.permute.xlu0 0
    %637 = vperm.xlu0 %636, %v111
    %v638 = vpop.permute.xlu0 %637
    %641 = vset.pattern.permute.xlu0 0
    %642 = vperm.xlu0 %641, %v112
    %v643 = vpop.permute.xlu0 %642
    %646 = vset.pattern.permute.xlu0 0
    %647 = vperm.xlu0 %646, %v113
    %v648 = vpop.permute.xlu0 %647
    %651 = vset.pattern.permute.xlu0 0
    %652 = vperm.xlu0 %651, %v114
    %v653 = vpop.permute.xlu0 %652
    %656 = vset.pattern.permute.xlu0 0
    %657 = vperm.xlu0 %656, %v115
    %v658 = vpop.permute.xlu0 %657
    %661 = vset.pattern.permute.xlu0 0
    %662 = vperm.xlu0 %661, %v116
    %v663 = vpop.permute.xlu0 %662
    %666 = vset.pattern.permute.xlu0 0
    %667 = vperm.xlu0 %666, %v117
    %v668 = vpop.permute.xlu0 %667
    %671 = vset.pattern.permute.xlu0 0
    %672 = vperm.xlu0 %671, %v118
    %v673 = vpop.permute.xlu0 %672
    %676 = vset.pattern.permute.xlu0 0
    %677 = vperm.xlu0 %676, %v119
    %v678 = vpop.permute.xlu0 %677
    %681 = vset.pattern.permute.xlu0 0
    %682 = vperm.xlu0 %681, %v120
    %v683 = vpop.permute.xlu0 %682
    %686 = vset.pattern.permute.xlu0 0
    %687 = vperm.xlu0 %686, %v121
    %v688 = vpop.permute.xlu0 %687
    %691 = vset.pattern.permute.xlu0 0
    %692 = vperm.xlu0 %691, %v122
    %v693 = vpop.permute.xlu0 %692
    %696 = vset.pattern.permute.xlu0 0
    %697 = vperm.xlu0 %696, %v123
    %v698 = vpop.permute.xlu0 %697
    %701 = vset.pattern.permute.xlu0 0
    %702 = vperm.xlu0 %701, %v124
    %v703 = vpop.permute.xlu0 %702
    %706 = vset.pattern.permute.xlu0 0
    %707 = vperm.xlu0 %706, %v125
    %v708 = vpop.permute.xlu0 %707
    %711 = vset.pattern.permute.xlu0 0
    %712 = vperm.xlu0 %711, %v126
    %v713 = vpop.permute.xlu0 %712
    %716 = vset.pattern.permute.xlu0 0
    %717 = vperm.xlu0 %716, %v127
    %v718 = vpop.permute.xlu0 %717
    %721 = vset.pattern.permute.xlu0 0
    %722 = vperm.xlu0 %721, %v128
    %v723 = vpop.permute.xlu0 %722
    %726 = vset.pattern.permute.xlu0 0
    %727 = vperm.xlu0 %726, %v129
    %v728 = vpop.permute.xlu0 %727
    %731 = vset.pattern.permute.xlu0 0
    %732 = vperm.xlu0 %731, %v130
    %v733 = vpop.permute.xlu0 %732
    %736 = vset.pattern.permute.xlu0 0
    %737 = vperm.xlu0 %736, %v131
    %v738 = vpop.permute.xlu0 %737
    %741 = vset.pattern.permute.xlu0 0
    %742 = vperm.xlu0 %741, %v132
    %v743 = vpop.permute.xlu0 %742
    %746 = vset.pattern.permute.xlu0 0
    %747 = vperm.xlu0 %746, %v133
    %v748 = vpop.permute.xlu0 %747
    %751 = vset.pattern.permute.xlu0 0
    %752 = vperm.xlu0 %751, %v134
    %v753 = vpop.permute.xlu0 %752
    %756 = vset.pattern.permute.xlu0 0
    %757 = vperm.xlu0 %756, %v135
    %v758 = vpop.permute.xlu0 %757
    %761 = vset.pattern.permute.xlu0 0
    %762 = vperm.xlu0 %761, %v136
    %v763 = vpop.permute.xlu0 %762
    %766 = vset.pattern.permute.xlu0 0
    %767 = vperm.xlu0 %766, %v137
    %v768 = vpop.permute.xlu0 %767
    %771 = vset.pattern.permute.xlu0 0
    %772 = vperm.xlu0 %771, %v138
    %v773 = vpop.permute.xlu0 %772
    %776 = vset.pattern.permute.xlu0 0
    %777 = vperm.xlu0 %776, %v139
    %v778 = vpop.permute.xlu0 %777
    %v780 = vlaneseq
    %v781 = vshrl.u32 %v780, 7
    %v782 = vadd.s32 %v781, 8
    %v783 = vadd.s32 %v781, 16
    %v784 = vadd.s32 %v781, 24
    %v785 = vadd.s32 %v781, 32
    %v786 = vadd.s32 %v781, 40
    %v787 = vadd.s32 %v781, 48
    %v788 = vadd.s32 %v781, 56
    %v789 = vadd.s32 %v781, 64
    %v790 = vadd.s32 %v781, 72
    %v791 = vadd.s32 %v781, 80
    %v792 = vadd.s32 %v781, 88
    %v793 = vadd.s32 %v781, 96
    %v794 = vadd.s32 %v781, 104
    %v795 = vadd.s32 %v781, 112
    %v796 = vadd.s32 %v781, 120
    %v797 = vadd.s32 %v781, 128
    %v798 = vadd.s32 %v781, 136
    %v799 = vadd.s32 %v781, 144
    %v800 = vadd.s32 %v781, 152
    %v801 = vadd.s32 %v781, 160
    %v802 = vadd.s32 %v781, 168
    %v803 = vadd.s32 %v781, 176
    %v804 = vadd.s32 %v781, 184
    %v805 = vadd.s32 %v781, 192
    %v806 = vadd.s32 %v781, 200
    %v807 = vadd.s32 %v781, 208
    %v808 = vadd.s32 %v781, 216
    %v809 = vadd.s32 %v781, 224
    %v810 = vadd.s32 %v781, 232
    %v811 = vadd.s32 %v781, 240
    %v812 = vadd.s32 %v781, 248
    %v813 = vadd.s32 %v781, 256
    %v814 = vadd.s32 %v781, 264
    %v815 = vadd.s32 %v781, 272
    %v816 = vadd.s32 %v781, 280
    %v817 = vadd.s32 %v781, 288
    %v818 = vadd.s32 %v781, 296
    %v819 = vadd.s32 %v781, 304
    %v820 = vadd.s32 %v781, 312
    %v821 = vadd.s32 %v781, 320
    %v822 = vadd.s32 %v781, 328
    %v823 = vadd.s32 %v781, 336
    %v824 = vadd.s32 %v781, 344
    %v825 = vadd.s32 %v781, 352
    %v826 = vadd.s32 %v781, 360
    %v827 = vadd.s32 %v781, 368
    %v828 = vadd.s32 %v781, 376
    %v829 = vadd.s32 %v781, 384
    %v830 = vadd.s32 %v781, 392
    %v831 = vadd.s32 %v781, 400
    %v832 = vadd.s32 %v781, 408
    %v833 = vadd.s32 %v781, 416
    %v834 = vadd.s32 %v781, 424
    %v835 = vadd.s32 %v781, 432
    %v836 = vadd.s32 %v781, 440
    %v837 = vadd.s32 %v781, 448
    %v838 = vadd.s32 %v781, 456
    %v839 = vadd.s32 %v781, 464
    %v840 = vadd.s32 %v781, 472
    %v841 = vadd.s32 %v781, 480
    %v842 = vadd.s32 %v781, 488
    %v843 = vadd.s32 %v781, 496
    %v844 = vadd.s32 %v781, 504
    %v845 = vadd.s32 %v781, 512
    %v846 = vadd.s32 %v781, 520
    %v847 = vadd.s32 %v781, 528
    %v848 = vadd.s32 %v781, 536
    %v849 = vadd.s32 %v781, 544
    %v850 = vadd.s32 %v781, 552
    %v851 = vadd.s32 %v781, 560
    %v852 = vadd.s32 %v781, 568
    %v853 = vadd.s32 %v781, 576
    %v854 = vadd.s32 %v781, 584
    %v855 = vadd.s32 %v781, 592
    %v856 = vadd.s32 %v781, 600
    %v857 = vadd.s32 %v781, 608
    %v858 = vadd.s32 %v781, 616
    %v859 = vadd.s32 %v781, 624
    %v860 = vadd.s32 %v781, 632
    %v861 = vadd.s32 %v781, 640
    %v862 = vadd.s32 %v781, 648
    %v863 = vadd.s32 %v781, 656
    %v864 = vadd.s32 %v781, 664
    %v865 = vadd.s32 %v781, 672
    %v866 = vadd.s32 %v781, 680
    %v867 = vadd.s32 %v781, 688
    %v868 = vadd.s32 %v781, 696
    %v869 = vadd.s32 %v781, 704
    %v870 = vadd.s32 %v781, 712
    %v871 = vadd.s32 %v781, 720
    %v872 = vadd.s32 %v781, 728
    %v873 = vadd.s32 %v781, 736
    %v874 = vadd.s32 %v781, 744
    %v875 = vadd.s32 %v781, 752
    %v876 = vadd.s32 %v781, 760
    %v877 = vadd.s32 %v781, 768
    %v878 = vadd.s32 %v781, 776
    %v879 = vadd.s32 %v781, 784
    %v880 = vadd.s32 %v781, 792
    %v881 = vadd.s32 %v781, 800
    %v882 = vadd.s32 %v781, 808
    %v883 = vadd.s32 %v781, 816
    %v884 = vadd.s32 %v781, 824
    %v885 = vadd.s32 %v781, 832
    %v886 = vadd.s32 %v781, 840
    %v887 = vadd.s32 %v781, 848
    %v888 = vadd.s32 %v781, 856
    %v889 = vadd.s32 %v781, 864
    %v890 = vadd.s32 %v781, 872
    %v891 = vadd.s32 %v781, 880
    %v892 = vadd.s32 %v781, 888
    %v893 = vadd.s32 %v781, 896
    %v894 = vadd.s32 %v781, 904
    %v895 = vadd.s32 %v781, 912
    %v896 = vadd.s32 %v781, 920
    %v897 = vadd.s32 %v781, 928
    %v898 = vadd.s32 %v781, 936
    %v899 = vadd.s32 %v781, 944
    %v900 = vadd.s32 %v781, 952
    %v901 = vadd.s32 %v781, 960
    %v902 = vadd.s32 %v781, 968
    %v903 = vadd.s32 %v781, 976
    %v904 = vadd.s32 %v781, 984
    %v905 = vadd.s32 %v781, 992
    %v906 = vadd.s32 %v781, 1000
    %v907 = vadd.s32 %v781, 1008
    %v908 = vadd.s32 %v781, 1016
    %v909 = vld [vmem:[%s0] sm:$0x1]
    %v910 = vlaneseq
    %v911 = vshrl.u32 %v910, 7
    %v912 = vsub.s32 0, %v911
    %v913 = vrot.slane %v909, %v912
    %vm914 = vcmp.eq.s32.totalorder %v781, %v913
    %vm915 = vcmp.eq.s32.totalorder %v782, %v913
    %vm916 = vcmp.eq.s32.totalorder %v783, %v913
    %vm917 = vcmp.eq.s32.totalorder %v784, %v913
    %vm918 = vcmp.eq.s32.totalorder %v785, %v913
    %vm919 = vcmp.eq.s32.totalorder %v786, %v913
    %vm920 = vcmp.eq.s32.totalorder %v787, %v913
    %vm921 = vcmp.eq.s32.totalorder %v788, %v913
    %vm922 = vcmp.eq.s32.totalorder %v789, %v913
    %vm923 = vcmp.eq.s32.totalorder %v790, %v913
    %vm924 = vcmp.eq.s32.totalorder %v791, %v913
    %vm925 = vcmp.eq.s32.totalorder %v792, %v913
    %vm926 = vcmp.eq.s32.totalorder %v793, %v913
    %vm927 = vcmp.eq.s32.totalorder %v794, %v913
    %vm928 = vcmp.eq.s32.totalorder %v795, %v913
    %vm929 = vcmp.eq.s32.totalorder %v796, %v913
    %vm930 = vcmp.eq.s32.totalorder %v797, %v913
    %vm931 = vcmp.eq.s32.totalorder %v798, %v913
    %vm932 = vcmp.eq.s32.totalorder %v799, %v913
    %vm933 = vcmp.eq.s32.totalorder %v800, %v913
    %vm934 = vcmp.eq.s32.totalorder %v801, %v913
    %vm935 = vcmp.eq.s32.totalorder %v802, %v913
    %vm936 = vcmp.eq.s32.totalorder %v803, %v913
    %vm937 = vcmp.eq.s32.totalorder %v804, %v913
    %vm938 = vcmp.eq.s32.totalorder %v805, %v913
    %vm939 = vcmp.eq.s32.totalorder %v806, %v913
    %vm940 = vcmp.eq.s32.totalorder %v807, %v913
    %vm941 = vcmp.eq.s32.totalorder %v808, %v913
    %vm942 = vcmp.eq.s32.totalorder %v809, %v913
    %vm943 = vcmp.eq.s32.totalorder %v810, %v913
    %vm944 = vcmp.eq.s32.totalorder %v811, %v913
    %vm945 = vcmp.eq.s32.totalorder %v812, %v913
    %vm946 = vcmp.eq.s32.totalorder %v813, %v913
    %vm947 = vcmp.eq.s32.totalorder %v814, %v913
    %vm948 = vcmp.eq.s32.totalorder %v815, %v913
    %vm949 = vcmp.eq.s32.totalorder %v816, %v913
    %vm950 = vcmp.eq.s32.totalorder %v817, %v913
    %vm951 = vcmp.eq.s32.totalorder %v818, %v913
    %vm952 = vcmp.eq.s32.totalorder %v819, %v913
    %vm953 = vcmp.eq.s32.totalorder %v820, %v913
    %vm954 = vcmp.eq.s32.totalorder %v821, %v913
    %vm955 = vcmp.eq.s32.totalorder %v822, %v913
    %vm956 = vcmp.eq.s32.totalorder %v823, %v913
    %vm957 = vcmp.eq.s32.totalorder %v824, %v913
    %vm958 = vcmp.eq.s32.totalorder %v825, %v913
    %vm959 = vcmp.eq.s32.totalorder %v826, %v913
    %vm960 = vcmp.eq.s32.totalorder %v827, %v913
    %vm961 = vcmp.eq.s32.totalorder %v828, %v913
    %vm962 = vcmp.eq.s32.totalorder %v829, %v913
    %vm963 = vcmp.eq.s32.totalorder %v830, %v913
    %vm964 = vcmp.eq.s32.totalorder %v831, %v913
    %vm965 = vcmp.eq.s32.totalorder %v832, %v913
    %vm966 = vcmp.eq.s32.totalorder %v833, %v913
    %vm967 = vcmp.eq.s32.totalorder %v834, %v913
    %vm968 = vcmp.eq.s32.totalorder %v835, %v913
    %vm969 = vcmp.eq.s32.totalorder %v836, %v913
    %vm970 = vcmp.eq.s32.totalorder %v837, %v913
    %vm971 = vcmp.eq.s32.totalorder %v838, %v913
    %vm972 = vcmp.eq.s32.totalorder %v839, %v913
    %vm973 = vcmp.eq.s32.totalorder %v840, %v913
    %vm974 = vcmp.eq.s32.totalorder %v841, %v913
    %vm975 = vcmp.eq.s32.totalorder %v842, %v913
    %vm976 = vcmp.eq.s32.totalorder %v843, %v913
    %vm977 = vcmp.eq.s32.totalorder %v844, %v913
    %vm978 = vcmp.eq.s32.totalorder %v845, %v913
    %vm979 = vcmp.eq.s32.totalorder %v846, %v913
    %vm980 = vcmp.eq.s32.totalorder %v847, %v913
    %vm981 = vcmp.eq.s32.totalorder %v848, %v913
    %vm982 = vcmp.eq.s32.totalorder %v849, %v913
    %vm983 = vcmp.eq.s32.totalorder %v850, %v913
    %vm984 = vcmp.eq.s32.totalorder %v851, %v913
    %vm985 = vcmp.eq.s32.totalorder %v852, %v913
    %vm986 = vcmp.eq.s32.totalorder %v853, %v913
    %vm987 = vcmp.eq.s32.totalorder %v854, %v913
    %vm988 = vcmp.eq.s32.totalorder %v855, %v913
    %vm989 = vcmp.eq.s32.totalorder %v856, %v913
    %vm990 = vcmp.eq.s32.totalorder %v857, %v913
    %vm991 = vcmp.eq.s32.totalorder %v858, %v913
    %vm992 = vcmp.eq.s32.totalorder %v859, %v913
    %vm993 = vcmp.eq.s32.totalorder %v860, %v913
    %vm994 = vcmp.eq.s32.totalorder %v861, %v913
    %vm995 = vcmp.eq.s32.totalorder %v862, %v913
    %vm996 = vcmp.eq.s32.totalorder %v863, %v913
    %vm997 = vcmp.eq.s32.totalorder %v864, %v913
    %vm998 = vcmp.eq.s32.totalorder %v865, %v913
    %vm999 = vcmp.eq.s32.totalorder %v866, %v913
    %vm1000 = vcmp.eq.s32.totalorder %v867, %v913
    %vm1001 = vcmp.eq.s32.totalorder %v868, %v913
    %vm1002 = vcmp.eq.s32.totalorder %v869, %v913
    %vm1003 = vcmp.eq.s32.totalorder %v870, %v913
    %vm1004 = vcmp.eq.s32.totalorder %v871, %v913
    %vm1005 = vcmp.eq.s32.totalorder %v872, %v913
    %vm1006 = vcmp.eq.s32.totalorder %v873, %v913
    %vm1007 = vcmp.eq.s32.totalorder %v874, %v913
    %vm1008 = vcmp.eq.s32.totalorder %v875, %v913
    %vm1009 = vcmp.eq.s32.totalorder %v876, %v913
    %vm1010 = vcmp.eq.s32.totalorder %v877, %v913
    %vm1011 = vcmp.eq.s32.totalorder %v878, %v913
    %vm1012 = vcmp.eq.s32.totalorder %v879, %v913
    %vm1013 = vcmp.eq.s32.totalorder %v880, %v913
    %vm1014 = vcmp.eq.s32.totalorder %v881, %v913
    %vm1015 = vcmp.eq.s32.totalorder %v882, %v913
    %vm1016 = vcmp.eq.s32.totalorder %v883, %v913
    %vm1017 = vcmp.eq.s32.totalorder %v884, %v913
    %vm1018 = vcmp.eq.s32.totalorder %v885, %v913
    %vm1019 = vcmp.eq.s32.totalorder %v886, %v913
    %vm1020 = vcmp.eq.s32.totalorder %v887, %v913
    %vm1021 = vcmp.eq.s32.totalorder %v888, %v913
    %vm1022 = vcmp.eq.s32.totalorder %v889, %v913
    %vm1023 = vcmp.eq.s32.totalorder %v890, %v913
    %vm1024 = vcmp.eq.s32.totalorder %v891, %v913
    %vm1025 = vcmp.eq.s32.totalorder %v892, %v913
    %vm1026 = vcmp.eq.s32.totalorder %v893, %v913
    %vm1027 = vcmp.eq.s32.totalorder %v894, %v913
    %vm1028 = vcmp.eq.s32.totalorder %v895, %v913
    %vm1029 = vcmp.eq.s32.totalorder %v896, %v913
    %vm1030 = vcmp.eq.s32.totalorder %v897, %v913
    %vm1031 = vcmp.eq.s32.totalorder %v898, %v913
    %vm1032 = vcmp.eq.s32.totalorder %v899, %v913
    %vm1033 = vcmp.eq.s32.totalorder %v900, %v913
    %vm1034 = vcmp.eq.s32.totalorder %v901, %v913
    %vm1035 = vcmp.eq.s32.totalorder %v902, %v913
    %vm1036 = vcmp.eq.s32.totalorder %v903, %v913
    %vm1037 = vcmp.eq.s32.totalorder %v904, %v913
    %vm1038 = vcmp.eq.s32.totalorder %v905, %v913
    %vm1039 = vcmp.eq.s32.totalorder %v906, %v913
    %vm1040 = vcmp.eq.s32.totalorder %v907, %v913
    %vm1041 = vcmp.eq.s32.totalorder %v908, %v913
    %v1042 = vsel %vm914, %v143, 0.0
    %v1043 = vsel %vm915, %v148, 0.0
    %v1044 = vsel %vm916, %v153, 0.0
    %v1045 = vsel %vm917, %v158, 0.0
    %v1046 = vsel %vm918, %v163, 0.0
    %v1047 = vsel %vm919, %v168, 0.0
    %v1048 = vsel %vm920, %v173, 0.0
    %v1049 = vsel %vm921, %v178, 0.0
    %v1050 = vsel %vm922, %v183, 0.0
    %v1051 = vsel %vm923, %v188, 0.0
    %v1052 = vsel %vm924, %v193, 0.0
    %v1053 = vsel %vm925, %v198, 0.0
    %v1054 = vsel %vm926, %v203, 0.0
    %v1055 = vsel %vm927, %v208, 0.0
    %v1056 = vsel %vm928, %v213, 0.0
    %v1057 = vsel %vm929, %v218, 0.0
    %v1058 = vsel %vm930, %v223, 0.0
    %v1059 = vsel %vm931, %v228, 0.0
    %v1060 = vsel %vm932, %v233, 0.0
    %v1061 = vsel %vm933, %v238, 0.0
    %v1062 = vsel %vm934, %v243, 0.0
    %v1063 = vsel %vm935, %v248, 0.0
    %v1064 = vsel %vm936, %v253, 0.0
    %v1065 = vsel %vm937, %v258, 0.0
    %v1066 = vsel %vm938, %v263, 0.0
    %v1067 = vsel %vm939, %v268, 0.0
    %v1068 = vsel %vm940, %v273, 0.0
    %v1069 = vsel %vm941, %v278, 0.0
    %v1070 = vsel %vm942, %v283, 0.0
    %v1071 = vsel %vm943, %v288, 0.0
    %v1072 = vsel %vm944, %v293, 0.0
    %v1073 = vsel %vm945, %v298, 0.0
    %v1074 = vsel %vm946, %v303, 0.0
    %v1075 = vsel %vm947, %v308, 0.0
    %v1076 = vsel %vm948, %v313, 0.0
    %v1077 = vsel %vm949, %v318, 0.0
    %v1078 = vsel %vm950, %v323, 0.0
    %v1079 = vsel %vm951, %v328, 0.0
    %v1080 = vsel %vm952, %v333, 0.0
    %v1081 = vsel %vm953, %v338, 0.0
    %v1082 = vsel %vm954, %v343, 0.0
    %v1083 = vsel %vm955, %v348, 0.0
    %v1084 = vsel %vm956, %v353, 0.0
    %v1085 = vsel %vm957, %v358, 0.0
    %v1086 = vsel %vm958, %v363, 0.0
    %v1087 = vsel %vm959, %v368, 0.0
    %v1088 = vsel %vm960, %v373, 0.0
    %v1089 = vsel %vm961, %v378, 0.0
    %v1090 = vsel %vm962, %v383, 0.0
    %v1091 = vsel %vm963, %v388, 0.0
    %v1092 = vsel %vm964, %v393, 0.0
    %v1093 = vsel %vm965, %v398, 0.0
    %v1094 = vsel %vm966, %v403, 0.0
    %v1095 = vsel %vm967, %v408, 0.0
    %v1096 = vsel %vm968, %v413, 0.0
    %v1097 = vsel %vm969, %v418, 0.0
    %v1098 = vsel %vm970, %v423, 0.0
    %v1099 = vsel %vm971, %v428, 0.0
    %v1100 = vsel %vm972, %v433, 0.0
    %v1101 = vsel %vm973, %v438, 0.0
    %v1102 = vsel %vm974, %v443, 0.0
    %v1103 = vsel %vm975, %v448, 0.0
    %v1104 = vsel %vm976, %v453, 0.0
    %v1105 = vsel %vm977, %v458, 0.0
    %v1106 = vsel %vm978, %v463, 0.0
    %v1107 = vsel %vm979, %v468, 0.0
    %v1108 = vsel %vm980, %v473, 0.0
    %v1109 = vsel %vm981, %v478, 0.0
    %v1110 = vsel %vm982, %v483, 0.0
    %v1111 = vsel %vm983, %v488, 0.0
    %v1112 = vsel %vm984, %v493, 0.0
    %v1113 = vsel %vm985, %v498, 0.0
    %v1114 = vsel %vm986, %v503, 0.0
    %v1115 = vsel %vm987, %v508, 0.0
    %v1116 = vsel %vm988, %v513, 0.0
    %v1117 = vsel %vm989, %v518, 0.0
    %v1118 = vsel %vm990, %v523, 0.0
    %v1119 = vsel %vm991, %v528, 0.0
    %v1120 = vsel %vm992, %v533, 0.0
    %v1121 = vsel %vm993, %v538, 0.0
    %v1122 = vsel %vm994, %v543, 0.0
    %v1123 = vsel %vm995, %v548, 0.0
    %v1124 = vsel %vm996, %v553, 0.0
    %v1125 = vsel %vm997, %v558, 0.0
    %v1126 = vsel %vm998, %v563, 0.0
    %v1127 = vsel %vm999, %v568, 0.0
    %v1128 = vsel %vm1000, %v573, 0.0
    %v1129 = vsel %vm1001, %v578, 0.0
    %v1130 = vsel %vm1002, %v583, 0.0
    %v1131 = vsel %vm1003, %v588, 0.0
    %v1132 = vsel %vm1004, %v593, 0.0
    %v1133 = vsel %vm1005, %v598, 0.0
    %v1134 = vsel %vm1006, %v603, 0.0
    %v1135 = vsel %vm1007, %v608, 0.0
    %v1136 = vsel %vm1008, %v613, 0.0
    %v1137 = vsel %vm1009, %v618, 0.0
    %v1138 = vsel %vm1010, %v623, 0.0
    %v1139 = vsel %vm1011, %v628, 0.0
    %v1140 = vsel %vm1012, %v633, 0.0
    %v1141 = vsel %vm1013, %v638, 0.0
    %v1142 = vsel %vm1014, %v643, 0.0
    %v1143 = vsel %vm1015, %v648, 0.0
    %v1144 = vsel %vm1016, %v653, 0.0
    %v1145 = vsel %vm1017, %v658, 0.0
    %v1146 = vsel %vm1018, %v663, 0.0
    %v1147 = vsel %vm1019, %v668, 0.0
    %v1148 = vsel %vm1020, %v673, 0.0
    %v1149 = vsel %vm1021, %v678, 0.0
    %v1150 = vsel %vm1022, %v683, 0.0
    %v1151 = vsel %vm1023, %v688, 0.0
    %v1152 = vsel %vm1024, %v693, 0.0
    %v1153 = vsel %vm1025, %v698, 0.0
    %v1154 = vsel %vm1026, %v703, 0.0
    %v1155 = vsel %vm1027, %v708, 0.0
    %v1156 = vsel %vm1028, %v713, 0.0
    %v1157 = vsel %vm1029, %v718, 0.0
    %v1158 = vsel %vm1030, %v723, 0.0
    %v1159 = vsel %vm1031, %v728, 0.0
    %v1160 = vsel %vm1032, %v733, 0.0
    %v1161 = vsel %vm1033, %v738, 0.0
    %v1162 = vsel %vm1034, %v743, 0.0
    %v1163 = vsel %vm1035, %v748, 0.0
    %v1164 = vsel %vm1036, %v753, 0.0
    %v1165 = vsel %vm1037, %v758, 0.0
    %v1166 = vsel %vm1038, %v763, 0.0
    %v1167 = vsel %vm1039, %v768, 0.0
    %v1168 = vsel %vm1040, %v773, 0.0
    %v1169 = vsel %vm1041, %v778, 0.0
    %v1170 = vadd.f32 %v1042, %v1043
    %v1171 = vadd.f32 %v1170, %v1044
    %v1172 = vadd.f32 %v1171, %v1045
    %v1173 = vadd.f32 %v1172, %v1046
    %v1174 = vadd.f32 %v1173, %v1047
    %v1175 = vadd.f32 %v1174, %v1048
    %v1176 = vadd.f32 %v1175, %v1049
    %v1177 = vadd.f32 %v1176, %v1050
    %v1178 = vadd.f32 %v1177, %v1051
    %v1179 = vadd.f32 %v1178, %v1052
    %v1180 = vadd.f32 %v1179, %v1053
    %v1181 = vadd.f32 %v1180, %v1054
    %v1182 = vadd.f32 %v1181, %v1055
    %v1183 = vadd.f32 %v1182, %v1056
    %v1184 = vadd.f32 %v1183, %v1057
    %v1185 = vadd.f32 %v1184, %v1058
    %v1186 = vadd.f32 %v1185, %v1059
    %v1187 = vadd.f32 %v1186, %v1060
    %v1188 = vadd.f32 %v1187, %v1061
    %v1189 = vadd.f32 %v1188, %v1062
    %v1190 = vadd.f32 %v1189, %v1063
    %v1191 = vadd.f32 %v1190, %v1064
    %v1192 = vadd.f32 %v1191, %v1065
    %v1193 = vadd.f32 %v1192, %v1066
    %v1194 = vadd.f32 %v1193, %v1067
    %v1195 = vadd.f32 %v1194, %v1068
    %v1196 = vadd.f32 %v1195, %v1069
    %v1197 = vadd.f32 %v1196, %v1070
    %v1198 = vadd.f32 %v1197, %v1071
    %v1199 = vadd.f32 %v1198, %v1072
    %v1200 = vadd.f32 %v1199, %v1073
    %v1201 = vadd.f32 %v1200, %v1074
    %v1202 = vadd.f32 %v1201, %v1075
    %v1203 = vadd.f32 %v1202, %v1076
    %v1204 = vadd.f32 %v1203, %v1077
    %v1205 = vadd.f32 %v1204, %v1078
    %v1206 = vadd.f32 %v1205, %v1079
    %v1207 = vadd.f32 %v1206, %v1080
    %v1208 = vadd.f32 %v1207, %v1081
    %v1209 = vadd.f32 %v1208, %v1082
    %v1210 = vadd.f32 %v1209, %v1083
    %v1211 = vadd.f32 %v1210, %v1084
    %v1212 = vadd.f32 %v1211, %v1085
    %v1213 = vadd.f32 %v1212, %v1086
    %v1214 = vadd.f32 %v1213, %v1087
    %v1215 = vadd.f32 %v1214, %v1088
    %v1216 = vadd.f32 %v1215, %v1089
    %v1217 = vadd.f32 %v1216, %v1090
    %v1218 = vadd.f32 %v1217, %v1091
    %v1219 = vadd.f32 %v1218, %v1092
    %v1220 = vadd.f32 %v1219, %v1093
    %v1221 = vadd.f32 %v1220, %v1094
    %v1222 = vadd.f32 %v1221, %v1095
    %v1223 = vadd.f32 %v1222, %v1096
    %v1224 = vadd.f32 %v1223, %v1097
    %v1225 = vadd.f32 %v1224, %v1098
    %v1226 = vadd.f32 %v1225, %v1099
    %v1227 = vadd.f32 %v1226, %v1100
    %v1228 = vadd.f32 %v1227, %v1101
    %v1229 = vadd.f32 %v1228, %v1102
    %v1230 = vadd.f32 %v1229, %v1103
    %v1231 = vadd.f32 %v1230, %v1104
    %v1232 = vadd.f32 %v1231, %v1105
    %v1233 = vadd.f32 %v1232, %v1106
    %v1234 = vadd.f32 %v1233, %v1107
    %v1235 = vadd.f32 %v1234, %v1108
    %v1236 = vadd.f32 %v1235, %v1109
    %v1237 = vadd.f32 %v1236, %v1110
    %v1238 = vadd.f32 %v1237, %v1111
    %v1239 = vadd.f32 %v1238, %v1112
    %v1240 = vadd.f32 %v1239, %v1113
    %v1241 = vadd.f32 %v1240, %v1114
    %v1242 = vadd.f32 %v1241, %v1115
    %v1243 = vadd.f32 %v1242, %v1116
    %v1244 = vadd.f32 %v1243, %v1117
    %v1245 = vadd.f32 %v1244, %v1118
    %v1246 = vadd.f32 %v1245, %v1119
    %v1247 = vadd.f32 %v1246, %v1120
    %v1248 = vadd.f32 %v1247, %v1121
    %v1249 = vadd.f32 %v1248, %v1122
    %v1250 = vadd.f32 %v1249, %v1123
    %v1251 = vadd.f32 %v1250, %v1124
    %v1252 = vadd.f32 %v1251, %v1125
    %v1253 = vadd.f32 %v1252, %v1126
    %v1254 = vadd.f32 %v1253, %v1127
    %v1255 = vadd.f32 %v1254, %v1128
    %v1256 = vadd.f32 %v1255, %v1129
    %v1257 = vadd.f32 %v1256, %v1130
    %v1258 = vadd.f32 %v1257, %v1131
    %v1259 = vadd.f32 %v1258, %v1132
    %v1260 = vadd.f32 %v1259, %v1133
    %v1261 = vadd.f32 %v1260, %v1134
    %v1262 = vadd.f32 %v1261, %v1135
    %v1263 = vadd.f32 %v1262, %v1136
    %v1264 = vadd.f32 %v1263, %v1137
    %v1265 = vadd.f32 %v1264, %v1138
    %v1266 = vadd.f32 %v1265, %v1139
    %v1267 = vadd.f32 %v1266, %v1140
    %v1268 = vadd.f32 %v1267, %v1141
    %v1269 = vadd.f32 %v1268, %v1142
    %v1270 = vadd.f32 %v1269, %v1143
    %v1271 = vadd.f32 %v1270, %v1144
    %v1272 = vadd.f32 %v1271, %v1145
    %v1273 = vadd.f32 %v1272, %v1146
    %v1274 = vadd.f32 %v1273, %v1147
    %v1275 = vadd.f32 %v1274, %v1148
    %v1276 = vadd.f32 %v1275, %v1149
    %v1277 = vadd.f32 %v1276, %v1150
    %v1278 = vadd.f32 %v1277, %v1151
    %v1279 = vadd.f32 %v1278, %v1152
    %v1280 = vadd.f32 %v1279, %v1153
    %v1281 = vadd.f32 %v1280, %v1154
    %v1282 = vadd.f32 %v1281, %v1155
    %v1283 = vadd.f32 %v1282, %v1156
    %v1284 = vadd.f32 %v1283, %v1157
    %v1285 = vadd.f32 %v1284, %v1158
    %v1286 = vadd.f32 %v1285, %v1159
    %v1287 = vadd.f32 %v1286, %v1160
    %v1288 = vadd.f32 %v1287, %v1161
    %v1289 = vadd.f32 %v1288, %v1162
    %v1290 = vadd.f32 %v1289, %v1163
    %v1291 = vadd.f32 %v1290, %v1164
    %v1292 = vadd.f32 %v1291, %v1165
    %v1293 = vadd.f32 %v1292, %v1166
    %v1294 = vadd.f32 %v1293, %v1167
    %v1295 = vadd.f32 %v1294, %v1168
    %v1296 = vadd.f32 %v1295, %v1169
    %v1297 = vrot.slane %v1296, 4
    %v1298 = vadd.f32 %v1296, %v1297
    %v1299 = vrot.slane %v1298, 2
    %v1300 = vadd.f32 %v1298, %v1299
    %v1301 = vrot.slane %v1300, 1
    %v1302 = vadd.f32 %v1300, %v1301
    %1303 = vst [vmem:[#allocation2] sm:$0x1] %v1302
    %v1304 = vld [vmem:[%s0 + $0x1] sm:$0x1]
    %v1305 = vlaneseq
    %v1306 = vshrl.u32 %v1305, 7
    %v1307 = vsub.s32 0, %v1306
    %v1308 = vrot.slane %v1304, %v1307
    %vm1309 = vcmp.eq.s32.totalorder %v781, %v1308
    %vm1310 = vcmp.eq.s32.totalorder %v782, %v1308
    %vm1311 = vcmp.eq.s32.totalorder %v783, %v1308
    %vm1312 = vcmp.eq.s32.totalorder %v784, %v1308
    %vm1313 = vcmp.eq.s32.totalorder %v785, %v1308
    %vm1314 = vcmp.eq.s32.totalorder %v786, %v1308
    %vm1315 = vcmp.eq.s32.totalorder %v787, %v1308
    %vm1316 = vcmp.eq.s32.totalorder %v788, %v1308
    %vm1317 = vcmp.eq.s32.totalorder %v789, %v1308
    %vm1318 = vcmp.eq.s32.totalorder %v790, %v1308
    %vm1319 = vcmp.eq.s32.totalorder %v791, %v1308
    %vm1320 = vcmp.eq.s32.totalorder %v792, %v1308
    %vm1321 = vcmp.eq.s32.totalorder %v793, %v1308
    %vm1322 = vcmp.eq.s32.totalorder %v794, %v1308
    %vm1323 = vcmp.eq.s32.totalorder %v795, %v1308
    %vm1324 = vcmp.eq.s32.totalorder %v796, %v1308
    %vm1325 = vcmp.eq.s32.totalorder %v797, %v1308
    %vm1326 = vcmp.eq.s32.totalorder %v798, %v1308
    %vm1327 = vcmp.eq.s32.totalorder %v799, %v1308
    %vm1328 = vcmp.eq.s32.totalorder %v800, %v1308
    %vm1329 = vcmp.eq.s32.totalorder %v801, %v1308
    %vm1330 = vcmp.eq.s32.totalorder %v802, %v1308
    %vm1331 = vcmp.eq.s32.totalorder %v803, %v1308
    %vm1332 = vcmp.eq.s32.totalorder %v804, %v1308
    %vm1333 = vcmp.eq.s32.totalorder %v805, %v1308
    %vm1334 = vcmp.eq.s32.totalorder %v806, %v1308
    %vm1335 = vcmp.eq.s32.totalorder %v807, %v1308
    %vm1336 = vcmp.eq.s32.totalorder %v808, %v1308
    %vm1337 = vcmp.eq.s32.totalorder %v809, %v1308
    %vm1338 = vcmp.eq.s32.totalorder %v810, %v1308
    %vm1339 = vcmp.eq.s32.totalorder %v811, %v1308
    %vm1340 = vcmp.eq.s32.totalorder %v812, %v1308
    %vm1341 = vcmp.eq.s32.totalorder %v813, %v1308
    %vm1342 = vcmp.eq.s32.totalorder %v814, %v1308
    %vm1343 = vcmp.eq.s32.totalorder %v815, %v1308
    %vm1344 = vcmp.eq.s32.totalorder %v816, %v1308
    %vm1345 = vcmp.eq.s32.totalorder %v817, %v1308
    %vm1346 = vcmp.eq.s32.totalorder %v818, %v1308
    %vm1347 = vcmp.eq.s32.totalorder %v819, %v1308
    %vm1348 = vcmp.eq.s32.totalorder %v820, %v1308
    %vm1349 = vcmp.eq.s32.totalorder %v821, %v1308
    %vm1350 = vcmp.eq.s32.totalorder %v822, %v1308
    %vm1351 = vcmp.eq.s32.totalorder %v823, %v1308
    %vm1352 = vcmp.eq.s32.totalorder %v824, %v1308
    %vm1353 = vcmp.eq.s32.totalorder %v825, %v1308
    %vm1354 = vcmp.eq.s32.totalorder %v826, %v1308
    %vm1355 = vcmp.eq.s32.totalorder %v827, %v1308
    %vm1356 = vcmp.eq.s32.totalorder %v828, %v1308
    %vm1357 = vcmp.eq.s32.totalorder %v829, %v1308
    %vm1358 = vcmp.eq.s32.totalorder %v830, %v1308
    %vm1359 = vcmp.eq.s32.totalorder %v831, %v1308
    %vm1360 = vcmp.eq.s32.totalorder %v832, %v1308
    %vm1361 = vcmp.eq.s32.totalorder %v833, %v1308
    %vm1362 = vcmp.eq.s32.totalorder %v834, %v1308
    %vm1363 = vcmp.eq.s32.totalorder %v835, %v1308
    %vm1364 = vcmp.eq.s32.totalorder %v836, %v1308
    %vm1365 = vcmp.eq.s32.totalorder %v837, %v1308
    %vm1366 = vcmp.eq.s32.totalorder %v838, %v1308
    %vm1367 = vcmp.eq.s32.totalorder %v839, %v1308
    %vm1368 = vcmp.eq.s32.totalorder %v840, %v1308
    %vm1369 = vcmp.eq.s32.totalorder %v841, %v1308
    %vm1370 = vcmp.eq.s32.totalorder %v842, %v1308
    %vm1371 = vcmp.eq.s32.totalorder %v843, %v1308
    %vm1372 = vcmp.eq.s32.totalorder %v844, %v1308
    %vm1373 = vcmp.eq.s32.totalorder %v845, %v1308
    %vm1374 = vcmp.eq.s32.totalorder %v846, %v1308
    %vm1375 = vcmp.eq.s32.totalorder %v847, %v1308
    %vm1376 = vcmp.eq.s32.totalorder %v848, %v1308
    %vm1377 = vcmp.eq.s32.totalorder %v849, %v1308
    %vm1378 = vcmp.eq.s32.totalorder %v850, %v1308
    %vm1379 = vcmp.eq.s32.totalorder %v851, %v1308
    %vm1380 = vcmp.eq.s32.totalorder %v852, %v1308
    %vm1381 = vcmp.eq.s32.totalorder %v853, %v1308
    %vm1382 = vcmp.eq.s32.totalorder %v854, %v1308
    %vm1383 = vcmp.eq.s32.totalorder %v855, %v1308
    %vm1384 = vcmp.eq.s32.totalorder %v856, %v1308
    %vm1385 = vcmp.eq.s32.totalorder %v857, %v1308
    %vm1386 = vcmp.eq.s32.totalorder %v858, %v1308
    %vm1387 = vcmp.eq.s32.totalorder %v859, %v1308
    %vm1388 = vcmp.eq.s32.totalorder %v860, %v1308
    %vm1389 = vcmp.eq.s32.totalorder %v861, %v1308
    %vm1390 = vcmp.eq.s32.totalorder %v862, %v1308
    %vm1391 = vcmp.eq.s32.totalorder %v863, %v1308
    %vm1392 = vcmp.eq.s32.totalorder %v864, %v1308
    %vm1393 = vcmp.eq.s32.totalorder %v865, %v1308
    %vm1394 = vcmp.eq.s32.totalorder %v866, %v1308
    %vm1395 = vcmp.eq.s32.totalorder %v867, %v1308
    %vm1396 = vcmp.eq.s32.totalorder %v868, %v1308
    %vm1397 = vcmp.eq.s32.totalorder %v869, %v1308
    %vm1398 = vcmp.eq.s32.totalorder %v870, %v1308
    %vm1399 = vcmp.eq.s32.totalorder %v871, %v1308
    %vm1400 = vcmp.eq.s32.totalorder %v872, %v1308
    %vm1401 = vcmp.eq.s32.totalorder %v873, %v1308
    %vm1402 = vcmp.eq.s32.totalorder %v874, %v1308
    %vm1403 = vcmp.eq.s32.totalorder %v875, %v1308
    %vm1404 = vcmp.eq.s32.totalorder %v876, %v1308
    %vm1405 = vcmp.eq.s32.totalorder %v877, %v1308
    %vm1406 = vcmp.eq.s32.totalorder %v878, %v1308
    %vm1407 = vcmp.eq.s32.totalorder %v879, %v1308
    %vm1408 = vcmp.eq.s32.totalorder %v880, %v1308
    %vm1409 = vcmp.eq.s32.totalorder %v881, %v1308
    %vm1410 = vcmp.eq.s32.totalorder %v882, %v1308
    %vm1411 = vcmp.eq.s32.totalorder %v883, %v1308
    %vm1412 = vcmp.eq.s32.totalorder %v884, %v1308
    %vm1413 = vcmp.eq.s32.totalorder %v885, %v1308
    %vm1414 = vcmp.eq.s32.totalorder %v886, %v1308
    %vm1415 = vcmp.eq.s32.totalorder %v887, %v1308
    %vm1416 = vcmp.eq.s32.totalorder %v888, %v1308
    %vm1417 = vcmp.eq.s32.totalorder %v889, %v1308
    %vm1418 = vcmp.eq.s32.totalorder %v890, %v1308
    %vm1419 = vcmp.eq.s32.totalorder %v891, %v1308
    %vm1420 = vcmp.eq.s32.totalorder %v892, %v1308
    %vm1421 = vcmp.eq.s32.totalorder %v893, %v1308
    %vm1422 = vcmp.eq.s32.totalorder %v894, %v1308
    %vm1423 = vcmp.eq.s32.totalorder %v895, %v1308
    %vm1424 = vcmp.eq.s32.totalorder %v896, %v1308
    %vm1425 = vcmp.eq.s32.totalorder %v897, %v1308
    %vm1426 = vcmp.eq.s32.totalorder %v898, %v1308
    %vm1427 = vcmp.eq.s32.totalorder %v899, %v1308
    %vm1428 = vcmp.eq.s32.totalorder %v900, %v1308
    %vm1429 = vcmp.eq.s32.totalorder %v901, %v1308
    %vm1430 = vcmp.eq.s32.totalorder %v902, %v1308
    %vm1431 = vcmp.eq.s32.totalorder %v903, %v1308
    %vm1432 = vcmp.eq.s32.totalorder %v904, %v1308
    %vm1433 = vcmp.eq.s32.totalorder %v905, %v1308
    %vm1434 = vcmp.eq.s32.totalorder %v906, %v1308
    %vm1435 = vcmp.eq.s32.totalorder %v907, %v1308
    %vm1436 = vcmp.eq.s32.totalorder %v908, %v1308
    %v1437 = vsel %vm1309, %v143, 0.0
    %v1438 = vsel %vm1310, %v148, 0.0
    %v1439 = vsel %vm1311, %v153, 0.0
    %v1440 = vsel %vm1312, %v158, 0.0
    %v1441 = vsel %vm1313, %v163, 0.0
    %v1442 = vsel %vm1314, %v168, 0.0
    %v1443 = vsel %vm1315, %v173, 0.0
    %v1444 = vsel %vm1316, %v178, 0.0
    %v1445 = vsel %vm1317, %v183, 0.0
    %v1446 = vsel %vm1318, %v188, 0.0
    %v1447 = vsel %vm1319, %v193, 0.0
    %v1448 = vsel %vm1320, %v198, 0.0
    %v1449 = vsel %vm1321, %v203, 0.0
    %v1450 = vsel %vm1322, %v208, 0.0
    %v1451 = vsel %vm1323, %v213, 0.0
    %v1452 = vsel %vm1324, %v218, 0.0
    %v1453 = vsel %vm1325, %v223, 0.0
    %v1454 = vsel %vm1326, %v228, 0.0
    %v1455 = vsel %vm1327, %v233, 0.0
    %v1456 = vsel %vm1328, %v238, 0.0
    %v1457 = vsel %vm1329, %v243, 0.0
    %v1458 = vsel %vm1330, %v248, 0.0
    %v1459 = vsel %vm1331, %v253, 0.0
    %v1460 = vsel %vm1332, %v258, 0.0
    %v1461 = vsel %vm1333, %v263, 0.0
    %v1462 = vsel %vm1334, %v268, 0.0
    %v1463 = vsel %vm1335, %v273, 0.0
    %v1464 = vsel %vm1336, %v278, 0.0
    %v1465 = vsel %vm1337, %v283, 0.0
    %v1466 = vsel %vm1338, %v288, 0.0
    %v1467 = vsel %vm1339, %v293, 0.0
    %v1468 = vsel %vm1340, %v298, 0.0
    %v1469 = vsel %vm1341, %v303, 0.0
    %v1470 = vsel %vm1342, %v308, 0.0
    %v1471 = vsel %vm1343, %v313, 0.0
    %v1472 = vsel %vm1344, %v318, 0.0
    %v1473 = vsel %vm1345, %v323, 0.0
    %v1474 = vsel %vm1346, %v328, 0.0
    %v1475 = vsel %vm1347, %v333, 0.0
    %v1476 = vsel %vm1348, %v338, 0.0
    %v1477 = vsel %vm1349, %v343, 0.0
    %v1478 = vsel %vm1350, %v348, 0.0
    %v1479 = vsel %vm1351, %v353, 0.0
    %v1480 = vsel %vm1352, %v358, 0.0
    %v1481 = vsel %vm1353, %v363, 0.0
    %v1482 = vsel %vm1354, %v368, 0.0
    %v1483 = vsel %vm1355, %v373, 0.0
    %v1484 = vsel %vm1356, %v378, 0.0
    %v1485 = vsel %vm1357, %v383, 0.0
    %v1486 = vsel %vm1358, %v388, 0.0
    %v1487 = vsel %vm1359, %v393, 0.0
    %v1488 = vsel %vm1360, %v398, 0.0
    %v1489 = vsel %vm1361, %v403, 0.0
    %v1490 = vsel %vm1362, %v408, 0.0
    %v1491 = vsel %vm1363, %v413, 0.0
    %v1492 = vsel %vm1364, %v418, 0.0
    %v1493 = vsel %vm1365, %v423, 0.0
    %v1494 = vsel %vm1366, %v428, 0.0
    %v1495 = vsel %vm1367, %v433, 0.0
    %v1496 = vsel %vm1368, %v438, 0.0
    %v1497 = vsel %vm1369, %v443, 0.0
    %v1498 = vsel %vm1370, %v448, 0.0
    %v1499 = vsel %vm1371, %v453, 0.0
    %v1500 = vsel %vm1372, %v458, 0.0
    %v1501 = vsel %vm1373, %v463, 0.0
    %v1502 = vsel %vm1374, %v468, 0.0
    %v1503 = vsel %vm1375, %v473, 0.0
    %v1504 = vsel %vm1376, %v478, 0.0
    %v1505 = vsel %vm1377, %v483, 0.0
    %v1506 = vsel %vm1378, %v488, 0.0
    %v1507 = vsel %vm1379, %v493, 0.0
    %v1508 = vsel %vm1380, %v498, 0.0
    %v1509 = vsel %vm1381, %v503, 0.0
    %v1510 = vsel %vm1382, %v508, 0.0
    %v1511 = vsel %vm1383, %v513, 0.0
    %v1512 = vsel %vm1384, %v518, 0.0
    %v1513 = vsel %vm1385, %v523, 0.0
    %v1514 = vsel %vm1386, %v528, 0.0
    %v1515 = vsel %vm1387, %v533, 0.0
    %v1516 = vsel %vm1388, %v538, 0.0
    %v1517 = vsel %vm1389, %v543, 0.0
    %v1518 = vsel %vm1390, %v548, 0.0
    %v1519 = vsel %vm1391, %v553, 0.0
    %v1520 = vsel %vm1392, %v558, 0.0
    %v1521 = vsel %vm1393, %v563, 0.0
    %v1522 = vsel %vm1394, %v568, 0.0
    %v1523 = vsel %vm1395, %v573, 0.0
    %v1524 = vsel %vm1396, %v578, 0.0
    %v1525 = vsel %vm1397, %v583, 0.0
    %v1526 = vsel %vm1398, %v588, 0.0
    %v1527 = vsel %vm1399, %v593, 0.0
    %v1528 = vsel %vm1400, %v598, 0.0
    %v1529 = vsel %vm1401, %v603, 0.0
    %v1530 = vsel %vm1402, %v608, 0.0
    %v1531 = vsel %vm1403, %v613, 0.0
    %v1532 = vsel %vm1404, %v618, 0.0
    %v1533 = vsel %vm1405, %v623, 0.0
    %v1534 = vsel %vm1406, %v628, 0.0
    %v1535 = vsel %vm1407, %v633, 0.0
    %v1536 = vsel %vm1408, %v638, 0.0
    %v1537 = vsel %vm1409, %v643, 0.0
    %v1538 = vsel %vm1410, %v648, 0.0
    %v1539 = vsel %vm1411, %v653, 0.0
    %v1540 = vsel %vm1412, %v658, 0.0
    %v1541 = vsel %vm1413, %v663, 0.0
    %v1542 = vsel %vm1414, %v668, 0.0
    %v1543 = vsel %vm1415, %v673, 0.0
    %v1544 = vsel %vm1416, %v678, 0.0
    %v1545 = vsel %vm1417, %v683, 0.0
    %v1546 = vsel %vm1418, %v688, 0.0
    %v1547 = vsel %vm1419, %v693, 0.0
    %v1548 = vsel %vm1420, %v698, 0.0
    %v1549 = vsel %vm1421, %v703, 0.0
    %v1550 = vsel %vm1422, %v708, 0.0
    %v1551 = vsel %vm1423, %v713, 0.0
    %v1552 = vsel %vm1424, %v718, 0.0
    %v1553 = vsel %vm1425, %v723, 0.0
    %v1554 = vsel %vm1426, %v728, 0.0
    %v1555 = vsel %vm1427, %v733, 0.0
    %v1556 = vsel %vm1428, %v738, 0.0
    %v1557 = vsel %vm1429, %v743, 0.0
    %v1558 = vsel %vm1430, %v748, 0.0
    %v1559 = vsel %vm1431, %v753, 0.0
    %v1560 = vsel %vm1432, %v758, 0.0
    %v1561 = vsel %vm1433, %v763, 0.0
    %v1562 = vsel %vm1434, %v768, 0.0
    %v1563 = vsel %vm1435, %v773, 0.0
    %v1564 = vsel %vm1436, %v778, 0.0
    %v1565 = vadd.f32 %v1437, %v1438
    %v1566 = vadd.f32 %v1565, %v1439
    %v1567 = vadd.f32 %v1566, %v1440
    %v1568 = vadd.f32 %v1567, %v1441
    %v1569 = vadd.f32 %v1568, %v1442
    %v1570 = vadd.f32 %v1569, %v1443
    %v1571 = vadd.f32 %v1570, %v1444
    %v1572 = vadd.f32 %v1571, %v1445
    %v1573 = vadd.f32 %v1572, %v1446
    %v1574 = vadd.f32 %v1573, %v1447
    %v1575 = vadd.f32 %v1574, %v1448
    %v1576 = vadd.f32 %v1575, %v1449
    %v1577 = vadd.f32 %v1576, %v1450
    %v1578 = vadd.f32 %v1577, %v1451
    %v1579 = vadd.f32 %v1578, %v1452
    %v1580 = vadd.f32 %v1579, %v1453
    %v1581 = vadd.f32 %v1580, %v1454
    %v1582 = vadd.f32 %v1581, %v1455
    %v1583 = vadd.f32 %v1582, %v1456
    %v1584 = vadd.f32 %v1583, %v1457
    %v1585 = vadd.f32 %v1584, %v1458
    %v1586 = vadd.f32 %v1585, %v1459
    %v1587 = vadd.f32 %v1586, %v1460
    %v1588 = vadd.f32 %v1587, %v1461
    %v1589 = vadd.f32 %v1588, %v1462
    %v1590 = vadd.f32 %v1589, %v1463
    %v1591 = vadd.f32 %v1590, %v1464
    %v1592 = vadd.f32 %v1591, %v1465
    %v1593 = vadd.f32 %v1592, %v1466
    %v1594 = vadd.f32 %v1593, %v1467
    %v1595 = vadd.f32 %v1594, %v1468
    %v1596 = vadd.f32 %v1595, %v1469
    %v1597 = vadd.f32 %v1596, %v1470
    %v1598 = vadd.f32 %v1597, %v1471
    %v1599 = vadd.f32 %v1598, %v1472
    %v1600 = vadd.f32 %v1599, %v1473
    %v1601 = vadd.f32 %v1600, %v1474
    %v1602 = vadd.f32 %v1601, %v1475
    %v1603 = vadd.f32 %v1602, %v1476
    %v1604 = vadd.f32 %v1603, %v1477
    %v1605 = vadd.f32 %v1604, %v1478
    %v1606 = vadd.f32 %v1605, %v1479
    %v1607 = vadd.f32 %v1606, %v1480
    %v1608 = vadd.f32 %v1607, %v1481
    %v1609 = vadd.f32 %v1608, %v1482
    %v1610 = vadd.f32 %v1609, %v1483
    %v1611 = vadd.f32 %v1610, %v1484
    %v1612 = vadd.f32 %v1611, %v1485
    %v1613 = vadd.f32 %v1612, %v1486
    %v1614 = vadd.f32 %v1613, %v1487
    %v1615 = vadd.f32 %v1614, %v1488
    %v1616 = vadd.f32 %v1615, %v1489
    %v1617 = vadd.f32 %v1616, %v1490
    %v1618 = vadd.f32 %v1617, %v1491
    %v1619 = vadd.f32 %v1618, %v1492
    %v1620 = vadd.f32 %v1619, %v1493
    %v1621 = vadd.f32 %v1620, %v1494
    %v1622 = vadd.f32 %v1621, %v1495
    %v1623 = vadd.f32 %v1622, %v1496
    %v1624 = vadd.f32 %v1623, %v1497
    %v1625 = vadd.f32 %v1624, %v1498
    %v1626 = vadd.f32 %v1625, %v1499
    %v1627 = vadd.f32 %v1626, %v1500
    %v1628 = vadd.f32 %v1627, %v1501
    %v1629 = vadd.f32 %v1628, %v1502
    %v1630 = vadd.f32 %v1629, %v1503
    %v1631 = vadd.f32 %v1630, %v1504
    %v1632 = vadd.f32 %v1631, %v1505
    %v1633 = vadd.f32 %v1632, %v1506
    %v1634 = vadd.f32 %v1633, %v1507
    %v1635 = vadd.f32 %v1634, %v1508
    %v1636 = vadd.f32 %v1635, %v1509
    %v1637 = vadd.f32 %v1636, %v1510
    %v1638 = vadd.f32 %v1637, %v1511
    %v1639 = vadd.f32 %v1638, %v1512
    %v1640 = vadd.f32 %v1639, %v1513
    %v1641 = vadd.f32 %v1640, %v1514
    %v1642 = vadd.f32 %v1641, %v1515
    %v1643 = vadd.f32 %v1642, %v1516
    %v1644 = vadd.f32 %v1643, %v1517
    %v1645 = vadd.f32 %v1644, %v1518
    %v1646 = vadd.f32 %v1645, %v1519
    %v1647 = vadd.f32 %v1646, %v1520
    %v1648 = vadd.f32 %v1647, %v1521
    %v1649 = vadd.f32 %v1648, %v1522
    %v1650 = vadd.f32 %v1649, %v1523
    %v1651 = vadd.f32 %v1650, %v1524
    %v1652 = vadd.f32 %v1651, %v1525
    %v1653 = vadd.f32 %v1652, %v1526
    %v1654 = vadd.f32 %v1653, %v1527
    %v1655 = vadd.f32 %v1654, %v1528
    %v1656 = vadd.f32 %v1655, %v1529
    %v1657 = vadd.f32 %v1656, %v1530
    %v1658 = vadd.f32 %v1657, %v1531
    %v1659 = vadd.f32 %v1658, %v1532
    %v1660 = vadd.f32 %v1659, %v1533
    %v1661 = vadd.f32 %v1660, %v1534
    %v1662 = vadd.f32 %v1661, %v1535
    %v1663 = vadd.f32 %v1662, %v1536
    %v1664 = vadd.f32 %v1663, %v1537
    %v1665 = vadd.f32 %v1664, %v1538
    %v1666 = vadd.f32 %v1665, %v1539
    %v1667 = vadd.f32 %v1666, %v1540
    %v1668 = vadd.f32 %v1667, %v1541
    %v1669 = vadd.f32 %v1668, %v1542
    %v1670 = vadd.f32 %v1669, %v1543
    %v1671 = vadd.f32 %v1670, %v1544
    %v1672 = vadd.f32 %v1671, %v1545
    %v1673 = vadd.f32 %v1672, %v1546
    %v1674 = vadd.f32 %v1673, %v1547
    %v1675 = vadd.f32 %v1674, %v1548
    %v1676 = vadd.f32 %v1675, %v1549
    %v1677 = vadd.f32 %v1676, %v1550
    %v1678 = vadd.f32 %v1677, %v1551
    %v1679 = vadd.f32 %v1678, %v1552
    %v1680 = vadd.f32 %v1679, %v1553
    %v1681 = vadd.f32 %v1680, %v1554
    %v1682 = vadd.f32 %v1681, %v1555
    %v1683 = vadd.f32 %v1682, %v1556
    %v1684 = vadd.f32 %v1683, %v1557
    %v1685 = vadd.f32 %v1684, %v1558
    %v1686 = vadd.f32 %v1685, %v1559
    %v1687 = vadd.f32 %v1686, %v1560
    %v1688 = vadd.f32 %v1687, %v1561
    %v1689 = vadd.f32 %v1688, %v1562
    %v1690 = vadd.f32 %v1689, %v1563
    %v1691 = vadd.f32 %v1690, %v1564
    %v1692 = vrot.slane %v1691, 4
    %v1693 = vadd.f32 %v1691, %v1692
    %v1694 = vrot.slane %v1693, 2
    %v1695 = vadd.f32 %v1693, %v1694
    %v1696 = vrot.slane %v1695, 1
    %v1697 = vadd.f32 %v1695, %v1696
    %1698 = vst [vmem:[#allocation2 + $0x1] sm:$0x1] %v1697
    %v1699 = vld [vmem:[%s0 + $0x2] sm:$0x1]
    %v1700 = vlaneseq
    %v1701 = vshrl.u32 %v1700, 7
    %v1702 = vsub.s32 0, %v1701
    %v1703 = vrot.slane %v1699, %v1702
    %vm1704 = vcmp.eq.s32.totalorder %v781, %v1703
    %vm1705 = vcmp.eq.s32.totalorder %v782, %v1703
    %vm1706 = vcmp.eq.s32.totalorder %v783, %v1703
    %vm1707 = vcmp.eq.s32.totalorder %v784, %v1703
    %vm1708 = vcmp.eq.s32.totalorder %v785, %v1703
    %vm1709 = vcmp.eq.s32.totalorder %v786, %v1703
    %vm1710 = vcmp.eq.s32.totalorder %v787, %v1703
    %vm1711 = vcmp.eq.s32.totalorder %v788, %v1703
    %vm1712 = vcmp.eq.s32.totalorder %v789, %v1703
    %vm1713 = vcmp.eq.s32.totalorder %v790, %v1703
    %vm1714 = vcmp.eq.s32.totalorder %v791, %v1703
    %vm1715 = vcmp.eq.s32.totalorder %v792, %v1703
    %vm1716 = vcmp.eq.s32.totalorder %v793, %v1703
    %vm1717 = vcmp.eq.s32.totalorder %v794, %v1703
    %vm1718 = vcmp.eq.s32.totalorder %v795, %v1703
    %vm1719 = vcmp.eq.s32.totalorder %v796, %v1703
    %vm1720 = vcmp.eq.s32.totalorder %v797, %v1703
    %vm1721 = vcmp.eq.s32.totalorder %v798, %v1703
    %vm1722 = vcmp.eq.s32.totalorder %v799, %v1703
    %vm1723 = vcmp.eq.s32.totalorder %v800, %v1703
    %vm1724 = vcmp.eq.s32.totalorder %v801, %v1703
    %vm1725 = vcmp.eq.s32.totalorder %v802, %v1703
    %vm1726 = vcmp.eq.s32.totalorder %v803, %v1703
    %vm1727 = vcmp.eq.s32.totalorder %v804, %v1703
    %vm1728 = vcmp.eq.s32.totalorder %v805, %v1703
    %vm1729 = vcmp.eq.s32.totalorder %v806, %v1703
    %vm1730 = vcmp.eq.s32.totalorder %v807, %v1703
    %vm1731 = vcmp.eq.s32.totalorder %v808, %v1703
    %vm1732 = vcmp.eq.s32.totalorder %v809, %v1703
    %vm1733 = vcmp.eq.s32.totalorder %v810, %v1703
    %vm1734 = vcmp.eq.s32.totalorder %v811, %v1703
    %vm1735 = vcmp.eq.s32.totalorder %v812, %v1703
    %vm1736 = vcmp.eq.s32.totalorder %v813, %v1703
    %vm1737 = vcmp.eq.s32.totalorder %v814, %v1703
    %vm1738 = vcmp.eq.s32.totalorder %v815, %v1703
    %vm1739 = vcmp.eq.s32.totalorder %v816, %v1703
    %vm1740 = vcmp.eq.s32.totalorder %v817, %v1703
    %vm1741 = vcmp.eq.s32.totalorder %v818, %v1703
    %vm1742 = vcmp.eq.s32.totalorder %v819, %v1703
    %vm1743 = vcmp.eq.s32.totalorder %v820, %v1703
    %vm1744 = vcmp.eq.s32.totalorder %v821, %v1703
    %vm1745 = vcmp.eq.s32.totalorder %v822, %v1703
    %vm1746 = vcmp.eq.s32.totalorder %v823, %v1703
    %vm1747 = vcmp.eq.s32.totalorder %v824, %v1703
    %vm1748 = vcmp.eq.s32.totalorder %v825, %v1703
    %vm1749 = vcmp.eq.s32.totalorder %v826, %v1703
    %vm1750 = vcmp.eq.s32.totalorder %v827, %v1703
    %vm1751 = vcmp.eq.s32.totalorder %v828, %v1703
    %vm1752 = vcmp.eq.s32.totalorder %v829, %v1703
    %vm1753 = vcmp.eq.s32.totalorder %v830, %v1703
    %vm1754 = vcmp.eq.s32.totalorder %v831, %v1703
    %vm1755 = vcmp.eq.s32.totalorder %v832, %v1703
    %vm1756 = vcmp.eq.s32.totalorder %v833, %v1703
    %vm1757 = vcmp.eq.s32.totalorder %v834, %v1703
    %vm1758 = vcmp.eq.s32.totalorder %v835, %v1703
    %vm1759 = vcmp.eq.s32.totalorder %v836, %v1703
    %vm1760 = vcmp.eq.s32.totalorder %v837, %v1703
    %vm1761 = vcmp.eq.s32.totalorder %v838, %v1703
    %vm1762 = vcmp.eq.s32.totalorder %v839, %v1703
    %vm1763 = vcmp.eq.s32.totalorder %v840, %v1703
    %vm1764 = vcmp.eq.s32.totalorder %v841, %v1703
    %vm1765 = vcmp.eq.s32.totalorder %v842, %v1703
    %vm1766 = vcmp.eq.s32.totalorder %v843, %v1703
    %vm1767 = vcmp.eq.s32.totalorder %v844, %v1703
    %vm1768 = vcmp.eq.s32.totalorder %v845, %v1703
    %vm1769 = vcmp.eq.s32.totalorder %v846, %v1703
    %vm1770 = vcmp.eq.s32.totalorder %v847, %v1703
    %vm1771 = vcmp.eq.s32.totalorder %v848, %v1703
    %vm1772 = vcmp.eq.s32.totalorder %v849, %v1703
    %vm1773 = vcmp.eq.s32.totalorder %v850, %v1703
    %vm1774 = vcmp.eq.s32.totalorder %v851, %v1703
    %vm1775 = vcmp.eq.s32.totalorder %v852, %v1703
    %vm1776 = vcmp.eq.s32.totalorder %v853, %v1703
    %vm1777 = vcmp.eq.s32.totalorder %v854, %v1703
    %vm1778 = vcmp.eq.s32.totalorder %v855, %v1703
    %vm1779 = vcmp.eq.s32.totalorder %v856, %v1703
    %vm1780 = vcmp.eq.s32.totalorder %v857, %v1703
    %vm1781 = vcmp.eq.s32.totalorder %v858, %v1703
    %vm1782 = vcmp.eq.s32.totalorder %v859, %v1703
    %vm1783 = vcmp.eq.s32.totalorder %v860, %v1703
    %vm1784 = vcmp.eq.s32.totalorder %v861, %v1703
    %vm1785 = vcmp.eq.s32.totalorder %v862, %v1703
    %vm1786 = vcmp.eq.s32.totalorder %v863, %v1703
    %vm1787 = vcmp.eq.s32.totalorder %v864, %v1703
    %vm1788 = vcmp.eq.s32.totalorder %v865, %v1703
    %vm1789 = vcmp.eq.s32.totalorder %v866, %v1703
    %vm1790 = vcmp.eq.s32.totalorder %v867, %v1703
    %vm1791 = vcmp.eq.s32.totalorder %v868, %v1703
    %vm1792 = vcmp.eq.s32.totalorder %v869, %v1703
    %vm1793 = vcmp.eq.s32.totalorder %v870, %v1703
    %vm1794 = vcmp.eq.s32.totalorder %v871, %v1703
    %vm1795 = vcmp.eq.s32.totalorder %v872, %v1703
    %vm1796 = vcmp.eq.s32.totalorder %v873, %v1703
    %vm1797 = vcmp.eq.s32.totalorder %v874, %v1703
    %vm1798 = vcmp.eq.s32.totalorder %v875, %v1703
    %vm1799 = vcmp.eq.s32.totalorder %v876, %v1703
    %vm1800 = vcmp.eq.s32.totalorder %v877, %v1703
    %vm1801 = vcmp.eq.s32.totalorder %v878, %v1703
    %vm1802 = vcmp.eq.s32.totalorder %v879, %v1703
    %vm1803 = vcmp.eq.s32.totalorder %v880, %v1703
    %vm1804 = vcmp.eq.s32.totalorder %v881, %v1703
    %vm1805 = vcmp.eq.s32.totalorder %v882, %v1703
    %vm1806 = vcmp.eq.s32.totalorder %v883, %v1703
    %vm1807 = vcmp.eq.s32.totalorder %v884, %v1703
    %vm1808 = vcmp.eq.s32.totalorder %v885, %v1703
    %vm1809 = vcmp.eq.s32.totalorder %v886, %v1703
    %vm1810 = vcmp.eq.s32.totalorder %v887, %v1703
    %vm1811 = vcmp.eq.s32.totalorder %v888, %v1703
    %vm1812 = vcmp.eq.s32.totalorder %v889, %v1703
    %vm1813 = vcmp.eq.s32.totalorder %v890, %v1703
    %vm1814 = vcmp.eq.s32.totalorder %v891, %v1703
    %vm1815 = vcmp.eq.s32.totalorder %v892, %v1703
    %vm1816 = vcmp.eq.s32.totalorder %v893, %v1703
    %vm1817 = vcmp.eq.s32.totalorder %v894, %v1703
    %vm1818 = vcmp.eq.s32.totalorder %v895, %v1703
    %vm1819 = vcmp.eq.s32.totalorder %v896, %v1703
    %vm1820 = vcmp.eq.s32.totalorder %v897, %v1703
    %vm1821 = vcmp.eq.s32.totalorder %v898, %v1703
    %vm1822 = vcmp.eq.s32.totalorder %v899, %v1703
    %vm1823 = vcmp.eq.s32.totalorder %v900, %v1703
    %vm1824 = vcmp.eq.s32.totalorder %v901, %v1703
    %vm1825 = vcmp.eq.s32.totalorder %v902, %v1703
    %vm1826 = vcmp.eq.s32.totalorder %v903, %v1703
    %vm1827 = vcmp.eq.s32.totalorder %v904, %v1703
    %vm1828 = vcmp.eq.s32.totalorder %v905, %v1703
    %vm1829 = vcmp.eq.s32.totalorder %v906, %v1703
    %vm1830 = vcmp.eq.s32.totalorder %v907, %v1703
    %vm1831 = vcmp.eq.s32.totalorder %v908, %v1703
    %v1832 = vsel %vm1704, %v143, 0.0
    %v1833 = vsel %vm1705, %v148, 0.0
    %v1834 = vsel %vm1706, %v153, 0.0
    %v1835 = vsel %vm1707, %v158, 0.0
    %v1836 = vsel %vm1708, %v163, 0.0
    %v1837 = vsel %vm1709, %v168, 0.0
    %v1838 = vsel %vm1710, %v173, 0.0
    %v1839 = vsel %vm1711, %v178, 0.0
    %v1840 = vsel %vm1712, %v183, 0.0
    %v1841 = vsel %vm1713, %v188, 0.0
    %v1842 = vsel %vm1714, %v193, 0.0
    %v1843 = vsel %vm1715, %v198, 0.0
    %v1844 = vsel %vm1716, %v203, 0.0
    %v1845 = vsel %vm1717, %v208, 0.0
    %v1846 = vsel %vm1718, %v213, 0.0
    %v1847 = vsel %vm1719, %v218, 0.0
    %v1848 = vsel %vm1720, %v223, 0.0
    %v1849 = vsel %vm1721, %v228, 0.0
    %v1850 = vsel %vm1722, %v233, 0.0
    %v1851 = vsel %vm1723, %v238, 0.0
    %v1852 = vsel %vm1724, %v243, 0.0
    %v1853 = vsel %vm1725, %v248, 0.0
    %v1854 = vsel %vm1726, %v253, 0.0
    %v1855 = vsel %vm1727, %v258, 0.0
    %v1856 = vsel %vm1728, %v263, 0.0
    %v1857 = vsel %vm1729, %v268, 0.0
    %v1858 = vsel %vm1730, %v273, 0.0
    %v1859 = vsel %vm1731, %v278, 0.0
    %v1860 = vsel %vm1732, %v283, 0.0
    %v1861 = vsel %vm1733, %v288, 0.0
    %v1862 = vsel %vm1734, %v293, 0.0
    %v1863 = vsel %vm1735, %v298, 0.0
    %v1864 = vsel %vm1736, %v303, 0.0
    %v1865 = vsel %vm1737, %v308, 0.0
    %v1866 = vsel %vm1738, %v313, 0.0
    %v1867 = vsel %vm1739, %v318, 0.0
    %v1868 = vsel %vm1740, %v323, 0.0
    %v1869 = vsel %vm1741, %v328, 0.0
    %v1870 = vsel %vm1742, %v333, 0.0
    %v1871 = vsel %vm1743, %v338, 0.0
    %v1872 = vsel %vm1744, %v343, 0.0
    %v1873 = vsel %vm1745, %v348, 0.0
    %v1874 = vsel %vm1746, %v353, 0.0
    %v1875 = vsel %vm1747, %v358, 0.0
    %v1876 = vsel %vm1748, %v363, 0.0
    %v1877 = vsel %vm1749, %v368, 0.0
    %v1878 = vsel %vm1750, %v373, 0.0
    %v1879 = vsel %vm1751, %v378, 0.0
    %v1880 = vsel %vm1752, %v383, 0.0
    %v1881 = vsel %vm1753, %v388, 0.0
    %v1882 = vsel %vm1754, %v393, 0.0
    %v1883 = vsel %vm1755, %v398, 0.0
    %v1884 = vsel %vm1756, %v403, 0.0
    %v1885 = vsel %vm1757, %v408, 0.0
    %v1886 = vsel %vm1758, %v413, 0.0
    %v1887 = vsel %vm1759, %v418, 0.0
    %v1888 = vsel %vm1760, %v423, 0.0
    %v1889 = vsel %vm1761, %v428, 0.0
    %v1890 = vsel %vm1762, %v433, 0.0
    %v1891 = vsel %vm1763, %v438, 0.0
    %v1892 = vsel %vm1764, %v443, 0.0
    %v1893 = vsel %vm1765, %v448, 0.0
    %v1894 = vsel %vm1766, %v453, 0.0
    %v1895 = vsel %vm1767, %v458, 0.0
    %v1896 = vsel %vm1768, %v463, 0.0
    %v1897 = vsel %vm1769, %v468, 0.0
    %v1898 = vsel %vm1770, %v473, 0.0
    %v1899 = vsel %vm1771, %v478, 0.0
    %v1900 = vsel %vm1772, %v483, 0.0
    %v1901 = vsel %vm1773, %v488, 0.0
    %v1902 = vsel %vm1774, %v493, 0.0
    %v1903 = vsel %vm1775, %v498, 0.0
    %v1904 = vsel %vm1776, %v503, 0.0
    %v1905 = vsel %vm1777, %v508, 0.0
    %v1906 = vsel %vm1778, %v513, 0.0
    %v1907 = vsel %vm1779, %v518, 0.0
    %v1908 = vsel %vm1780, %v523, 0.0
    %v1909 = vsel %vm1781, %v528, 0.0
    %v1910 = vsel %vm1782, %v533, 0.0
    %v1911 = vsel %vm1783, %v538, 0.0
    %v1912 = vsel %vm1784, %v543, 0.0
    %v1913 = vsel %vm1785, %v548, 0.0
    %v1914 = vsel %vm1786, %v553, 0.0
    %v1915 = vsel %vm1787, %v558, 0.0
    %v1916 = vsel %vm1788, %v563, 0.0
    %v1917 = vsel %vm1789, %v568, 0.0
    %v1918 = vsel %vm1790, %v573, 0.0
    %v1919 = vsel %vm1791, %v578, 0.0
    %v1920 = vsel %vm1792, %v583, 0.0
    %v1921 = vsel %vm1793, %v588, 0.0
    %v1922 = vsel %vm1794, %v593, 0.0
    %v1923 = vsel %vm1795, %v598, 0.0
    %v1924 = vsel %vm1796, %v603, 0.0
    %v1925 = vsel %vm1797, %v608, 0.0
    %v1926 = vsel %vm1798, %v613, 0.0
    %v1927 = vsel %vm1799, %v618, 0.0
    %v1928 = vsel %vm1800, %v623, 0.0
    %v1929 = vsel %vm1801, %v628, 0.0
    %v1930 = vsel %vm1802, %v633, 0.0
    %v1931 = vsel %vm1803, %v638, 0.0
    %v1932 = vsel %vm1804, %v643, 0.0
    %v1933 = vsel %vm1805, %v648, 0.0
    %v1934 = vsel %vm1806, %v653, 0.0
    %v1935 = vsel %vm1807, %v658, 0.0
    %v1936 = vsel %vm1808, %v663, 0.0
    %v1937 = vsel %vm1809, %v668, 0.0
    %v1938 = vsel %vm1810, %v673, 0.0
    %v1939 = vsel %vm1811, %v678, 0.0
    %v1940 = vsel %vm1812, %v683, 0.0
    %v1941 = vsel %vm1813, %v688, 0.0
    %v1942 = vsel %vm1814, %v693, 0.0
    %v1943 = vsel %vm1815, %v698, 0.0
    %v1944 = vsel %vm1816, %v703, 0.0
    %v1945 = vsel %vm1817, %v708, 0.0
    %v1946 = vsel %vm1818, %v713, 0.0
    %v1947 = vsel %vm1819, %v718, 0.0
    %v1948 = vsel %vm1820, %v723, 0.0
    %v1949 = vsel %vm1821, %v728, 0.0
    %v1950 = vsel %vm1822, %v733, 0.0
    %v1951 = vsel %vm1823, %v738, 0.0
    %v1952 = vsel %vm1824, %v743, 0.0
    %v1953 = vsel %vm1825, %v748, 0.0
    %v1954 = vsel %vm1826, %v753, 0.0
    %v1955 = vsel %vm1827, %v758, 0.0
    %v1956 = vsel %vm1828, %v763, 0.0
    %v1957 = vsel %vm1829, %v768, 0.0
    %v1958 = vsel %vm1830, %v773, 0.0
    %v1959 = vsel %vm1831, %v778, 0.0
    %v1960 = vadd.f32 %v1832, %v1833
    %v1961 = vadd.f32 %v1960, %v1834
    %v1962 = vadd.f32 %v1961, %v1835
    %v1963 = vadd.f32 %v1962, %v1836
    %v1964 = vadd.f32 %v1963, %v1837
    %v1965 = vadd.f32 %v1964, %v1838
    %v1966 = vadd.f32 %v1965, %v1839
    %v1967 = vadd.f32 %v1966, %v1840
    %v1968 = vadd.f32 %v1967, %v1841
    %v1969 = vadd.f32 %v1968, %v1842
    %v1970 = vadd.f32 %v1969, %v1843
    %v1971 = vadd.f32 %v1970, %v1844
    %v1972 = vadd.f32 %v1971, %v1845
    %v1973 = vadd.f32 %v1972, %v1846
    %v1974 = vadd.f32 %v1973, %v1847
    %v1975 = vadd.f32 %v1974, %v1848
    %v1976 = vadd.f32 %v1975, %v1849
    %v1977 = vadd.f32 %v1976, %v1850
    %v1978 = vadd.f32 %v1977, %v1851
    %v1979 = vadd.f32 %v1978, %v1852
    %v1980 = vadd.f32 %v1979, %v1853
    %v1981 = vadd.f32 %v1980, %v1854
    %v1982 = vadd.f32 %v1981, %v1855
    %v1983 = vadd.f32 %v1982, %v1856
    %v1984 = vadd.f32 %v1983, %v1857
    %v1985 = vadd.f32 %v1984, %v1858
    %v1986 = vadd.f32 %v1985, %v1859
    %v1987 = vadd.f32 %v1986, %v1860
    %v1988 = vadd.f32 %v1987, %v1861
    %v1989 = vadd.f32 %v1988, %v1862
    %v1990 = vadd.f32 %v1989, %v1863
    %v1991 = vadd.f32 %v1990, %v1864
    %v1992 = vadd.f32 %v1991, %v1865
    %v1993 = vadd.f32 %v1992, %v1866
    %v1994 = vadd.f32 %v1993, %v1867
    %v1995 = vadd.f32 %v1994, %v1868
    %v1996 = vadd.f32 %v1995, %v1869
    %v1997 = vadd.f32 %v1996, %v1870
    %v1998 = vadd.f32 %v1997, %v1871
    %v1999 = vadd.f32 %v1998, %v1872
    %v2000 = vadd.f32 %v1999, %v1873
    %v2001 = vadd.f32 %v2000, %v1874
    %v2002 = vadd.f32 %v2001, %v1875
    %v2003 = vadd.f32 %v2002, %v1876
    %v2004 = vadd.f32 %v2003, %v1877
    %v2005 = vadd.f32 %v2004, %v1878
    %v2006 = vadd.f32 %v2005, %v1879
    %v2007 = vadd.f32 %v2006, %v1880
    %v2008 = vadd.f32 %v2007, %v1881
    %v2009 = vadd.f32 %v2008, %v1882
    %v2010 = vadd.f32 %v2009, %v1883
    %v2011 = vadd.f32 %v2010, %v1884
    %v2012 = vadd.f32 %v2011, %v1885
    %v2013 = vadd.f32 %v2012, %v1886
    %v2014 = vadd.f32 %v2013, %v1887
    %v2015 = vadd.f32 %v2014, %v1888
    %v2016 = vadd.f32 %v2015, %v1889
    %v2017 = vadd.f32 %v2016, %v1890
    %v2018 = vadd.f32 %v2017, %v1891
    %v2019 = vadd.f32 %v2018, %v1892
    %v2020 = vadd.f32 %v2019, %v1893
    %v2021 = vadd.f32 %v2020, %v1894
    %v2022 = vadd.f32 %v2021, %v1895
    %v2023 = vadd.f32 %v2022, %v1896
    %v2024 = vadd.f32 %v2023, %v1897
    %v2025 = vadd.f32 %v2024, %v1898
    %v2026 = vadd.f32 %v2025, %v1899
    %v2027 = vadd.f32 %v2026, %v1900
    %v2028 = vadd.f32 %v2027, %v1901
    %v2029 = vadd.f32 %v2028, %v1902
    %v2030 = vadd.f32 %v2029, %v1903
    %v2031 = vadd.f32 %v2030, %v1904
    %v2032 = vadd.f32 %v2031, %v1905
    %v2033 = vadd.f32 %v2032, %v1906
    %v2034 = vadd.f32 %v2033, %v1907
    %v2035 = vadd.f32 %v2034, %v1908
    %v2036 = vadd.f32 %v2035, %v1909
    %v2037 = vadd.f32 %v2036, %v1910
    %v2038 = vadd.f32 %v2037, %v1911
    %v2039 = vadd.f32 %v2038, %v1912
    %v2040 = vadd.f32 %v2039, %v1913
    %v2041 = vadd.f32 %v2040, %v1914
    %v2042 = vadd.f32 %v2041, %v1915
    %v2043 = vadd.f32 %v2042, %v1916
    %v2044 = vadd.f32 %v2043, %v1917
    %v2045 = vadd.f32 %v2044, %v1918
    %v2046 = vadd.f32 %v2045, %v1919
    %v2047 = vadd.f32 %v2046, %v1920
    %v2048 = vadd.f32 %v2047, %v1921
    %v2049 = vadd.f32 %v2048, %v1922
    %v2050 = vadd.f32 %v2049, %v1923
    %v2051 = vadd.f32 %v2050, %v1924
    %v2052 = vadd.f32 %v2051, %v1925
    %v2053 = vadd.f32 %v2052, %v1926
    %v2054 = vadd.f32 %v2053, %v1927
    %v2055 = vadd.f32 %v2054, %v1928
    %v2056 = vadd.f32 %v2055, %v1929
    %v2057 = vadd.f32 %v2056, %v1930
    %v2058 = vadd.f32 %v2057, %v1931
    %v2059 = vadd.f32 %v2058, %v1932
    %v2060 = vadd.f32 %v2059, %v1933
    %v2061 = vadd.f32 %v2060, %v1934
    %v2062 = vadd.f32 %v2061, %v1935
    %v2063 = vadd.f32 %v2062, %v1936
    %v2064 = vadd.f32 %v2063, %v1937
    %v2065 = vadd.f32 %v2064, %v1938
    %v2066 = vadd.f32 %v2065, %v1939
    %v2067 = vadd.f32 %v2066, %v1940
    %v2068 = vadd.f32 %v2067, %v1941
    %v2069 = vadd.f32 %v2068, %v1942
    %v2070 = vadd.f32 %v2069, %v1943
    %v2071 = vadd.f32 %v2070, %v1944
    %v2072 = vadd.f32 %v2071, %v1945
    %v2073 = vadd.f32 %v2072, %v1946
    %v2074 = vadd.f32 %v2073, %v1947
    %v2075 = vadd.f32 %v2074, %v1948
    %v2076 = vadd.f32 %v2075, %v1949
    %v2077 = vadd.f32 %v2076, %v1950
    %v2078 = vadd.f32 %v2077, %v1951
    %v2079 = vadd.f32 %v2078, %v1952
    %v2080 = vadd.f32 %v2079, %v1953
    %v2081 = vadd.f32 %v2080, %v1954
    %v2082 = vadd.f32 %v2081, %v1955
    %v2083 = vadd.f32 %v2082, %v1956
    %v2084 = vadd.f32 %v2083, %v1957
    %v2085 = vadd.f32 %v2084, %v1958
    %v2086 = vadd.f32 %v2085, %v1959
    %v2087 = vrot.slane %v2086, 4
    %v2088 = vadd.f32 %v2086, %v2087
    %v2089 = vrot.slane %v2088, 2
    %v2090 = vadd.f32 %v2088, %v2089
    %v2091 = vrot.slane %v2090, 1
    %v2092 = vadd.f32 %v2090, %v2091
    %2093 = vst [vmem:[#allocation2 + $0x2] sm:$0x1] %v2092
    %v2094 = vld [vmem:[%s0 + $0x3] sm:$0x1]
    %v2095 = vlaneseq
    %v2096 = vshrl.u32 %v2095, 7
    %v2097 = vsub.s32 0, %v2096
    %v2098 = vrot.slane %v2094, %v2097
    %vm2099 = vcmp.eq.s32.totalorder %v781, %v2098
    %vm2100 = vcmp.eq.s32.totalorder %v782, %v2098
    %vm2101 = vcmp.eq.s32.totalorder %v783, %v2098
    %vm2102 = vcmp.eq.s32.totalorder %v784, %v2098
    %vm2103 = vcmp.eq.s32.totalorder %v785, %v2098
    %vm2104 = vcmp.eq.s32.totalorder %v786, %v2098
    %vm2105 = vcmp.eq.s32.totalorder %v787, %v2098
    %vm2106 = vcmp.eq.s32.totalorder %v788, %v2098
    %vm2107 = vcmp.eq.s32.totalorder %v789, %v2098
    %vm2108 = vcmp.eq.s32.totalorder %v790, %v2098
    %vm2109 = vcmp.eq.s32.totalorder %v791, %v2098
    %vm2110 = vcmp.eq.s32.totalorder %v792, %v2098
    %vm2111 = vcmp.eq.s32.totalorder %v793, %v2098
    %vm2112 = vcmp.eq.s32.totalorder %v794, %v2098
    %vm2113 = vcmp.eq.s32.totalorder %v795, %v2098
    %vm2114 = vcmp.eq.s32.totalorder %v796, %v2098
    %vm2115 = vcmp.eq.s32.totalorder %v797, %v2098
    %vm2116 = vcmp.eq.s32.totalorder %v798, %v2098
    %vm2117 = vcmp.eq.s32.totalorder %v799, %v2098
    %vm2118 = vcmp.eq.s32.totalorder %v800, %v2098
    %vm2119 = vcmp.eq.s32.totalorder %v801, %v2098
    %vm2120 = vcmp.eq.s32.totalorder %v802, %v2098
    %vm2121 = vcmp.eq.s32.totalorder %v803, %v2098
    %vm2122 = vcmp.eq.s32.totalorder %v804, %v2098
    %vm2123 = vcmp.eq.s32.totalorder %v805, %v2098
    %vm2124 = vcmp.eq.s32.totalorder %v806, %v2098
    %vm2125 = vcmp.eq.s32.totalorder %v807, %v2098
    %vm2126 = vcmp.eq.s32.totalorder %v808, %v2098
    %vm2127 = vcmp.eq.s32.totalorder %v809, %v2098
    %vm2128 = vcmp.eq.s32.totalorder %v810, %v2098
    %vm2129 = vcmp.eq.s32.totalorder %v811, %v2098
    %vm2130 = vcmp.eq.s32.totalorder %v812, %v2098
    %vm2131 = vcmp.eq.s32.totalorder %v813, %v2098
    %vm2132 = vcmp.eq.s32.totalorder %v814, %v2098
    %vm2133 = vcmp.eq.s32.totalorder %v815, %v2098
    %vm2134 = vcmp.eq.s32.totalorder %v816, %v2098
    %vm2135 = vcmp.eq.s32.totalorder %v817, %v2098
    %vm2136 = vcmp.eq.s32.totalorder %v818, %v2098
    %vm2137 = vcmp.eq.s32.totalorder %v819, %v2098
    %vm2138 = vcmp.eq.s32.totalorder %v820, %v2098
    %vm2139 = vcmp.eq.s32.totalorder %v821, %v2098
    %vm2140 = vcmp.eq.s32.totalorder %v822, %v2098
    %vm2141 = vcmp.eq.s32.totalorder %v823, %v2098
    %vm2142 = vcmp.eq.s32.totalorder %v824, %v2098
    %vm2143 = vcmp.eq.s32.totalorder %v825, %v2098
    %vm2144 = vcmp.eq.s32.totalorder %v826, %v2098
    %vm2145 = vcmp.eq.s32.totalorder %v827, %v2098
    %vm2146 = vcmp.eq.s32.totalorder %v828, %v2098
    %vm2147 = vcmp.eq.s32.totalorder %v829, %v2098
    %vm2148 = vcmp.eq.s32.totalorder %v830, %v2098
    %vm2149 = vcmp.eq.s32.totalorder %v831, %v2098
    %vm2150 = vcmp.eq.s32.totalorder %v832, %v2098
    %vm2151 = vcmp.eq.s32.totalorder %v833, %v2098
    %vm2152 = vcmp.eq.s32.totalorder %v834, %v2098
    %vm2153 = vcmp.eq.s32.totalorder %v835, %v2098
    %vm2154 = vcmp.eq.s32.totalorder %v836, %v2098
    %vm2155 = vcmp.eq.s32.totalorder %v837, %v2098
    %vm2156 = vcmp.eq.s32.totalorder %v838, %v2098
    %vm2157 = vcmp.eq.s32.totalorder %v839, %v2098
    %vm2158 = vcmp.eq.s32.totalorder %v840, %v2098
    %vm2159 = vcmp.eq.s32.totalorder %v841, %v2098
    %vm2160 = vcmp.eq.s32.totalorder %v842, %v2098
    %vm2161 = vcmp.eq.s32.totalorder %v843, %v2098
    %vm2162 = vcmp.eq.s32.totalorder %v844, %v2098
    %vm2163 = vcmp.eq.s32.totalorder %v845, %v2098
    %vm2164 = vcmp.eq.s32.totalorder %v846, %v2098
    %vm2165 = vcmp.eq.s32.totalorder %v847, %v2098
    %vm2166 = vcmp.eq.s32.totalorder %v848, %v2098
    %vm2167 = vcmp.eq.s32.totalorder %v849, %v2098
    %vm2168 = vcmp.eq.s32.totalorder %v850, %v2098
    %vm2169 = vcmp.eq.s32.totalorder %v851, %v2098
    %vm2170 = vcmp.eq.s32.totalorder %v852, %v2098
    %vm2171 = vcmp.eq.s32.totalorder %v853, %v2098
    %vm2172 = vcmp.eq.s32.totalorder %v854, %v2098
    %vm2173 = vcmp.eq.s32.totalorder %v855, %v2098
    %vm2174 = vcmp.eq.s32.totalorder %v856, %v2098
    %vm2175 = vcmp.eq.s32.totalorder %v857, %v2098
    %vm2176 = vcmp.eq.s32.totalorder %v858, %v2098
    %vm2177 = vcmp.eq.s32.totalorder %v859, %v2098
    %vm2178 = vcmp.eq.s32.totalorder %v860, %v2098
    %vm2179 = vcmp.eq.s32.totalorder %v861, %v2098
    %vm2180 = vcmp.eq.s32.totalorder %v862, %v2098
    %vm2181 = vcmp.eq.s32.totalorder %v863, %v2098
    %vm2182 = vcmp.eq.s32.totalorder %v864, %v2098
    %vm2183 = vcmp.eq.s32.totalorder %v865, %v2098
    %vm2184 = vcmp.eq.s32.totalorder %v866, %v2098
    %vm2185 = vcmp.eq.s32.totalorder %v867, %v2098
    %vm2186 = vcmp.eq.s32.totalorder %v868, %v2098
    %vm2187 = vcmp.eq.s32.totalorder %v869, %v2098
    %vm2188 = vcmp.eq.s32.totalorder %v870, %v2098
    %vm2189 = vcmp.eq.s32.totalorder %v871, %v2098
    %vm2190 = vcmp.eq.s32.totalorder %v872, %v2098
    %vm2191 = vcmp.eq.s32.totalorder %v873, %v2098
    %vm2192 = vcmp.eq.s32.totalorder %v874, %v2098
    %vm2193 = vcmp.eq.s32.totalorder %v875, %v2098
    %vm2194 = vcmp.eq.s32.totalorder %v876, %v2098
    %vm2195 = vcmp.eq.s32.totalorder %v877, %v2098
    %vm2196 = vcmp.eq.s32.totalorder %v878, %v2098
    %vm2197 = vcmp.eq.s32.totalorder %v879, %v2098
    %vm2198 = vcmp.eq.s32.totalorder %v880, %v2098
    %vm2199 = vcmp.eq.s32.totalorder %v881, %v2098
    %vm2200 = vcmp.eq.s32.totalorder %v882, %v2098
    %vm2201 = vcmp.eq.s32.totalorder %v883, %v2098
    %vm2202 = vcmp.eq.s32.totalorder %v884, %v2098
    %vm2203 = vcmp.eq.s32.totalorder %v885, %v2098
    %vm2204 = vcmp.eq.s32.totalorder %v886, %v2098
    %vm2205 = vcmp.eq.s32.totalorder %v887, %v2098
    %vm2206 = vcmp.eq.s32.totalorder %v888, %v2098
    %vm2207 = vcmp.eq.s32.totalorder %v889, %v2098
    %vm2208 = vcmp.eq.s32.totalorder %v890, %v2098
    %vm2209 = vcmp.eq.s32.totalorder %v891, %v2098
    %vm2210 = vcmp.eq.s32.totalorder %v892, %v2098
    %vm2211 = vcmp.eq.s32.totalorder %v893, %v2098
    %vm2212 = vcmp.eq.s32.totalorder %v894, %v2098
    %vm2213 = vcmp.eq.s32.totalorder %v895, %v2098
    %vm2214 = vcmp.eq.s32.totalorder %v896, %v2098
    %vm2215 = vcmp.eq.s32.totalorder %v897, %v2098
    %vm2216 = vcmp.eq.s32.totalorder %v898, %v2098
    %vm2217 = vcmp.eq.s32.totalorder %v899, %v2098
    %vm2218 = vcmp.eq.s32.totalorder %v900, %v2098
    %vm2219 = vcmp.eq.s32.totalorder %v901, %v2098
    %vm2220 = vcmp.eq.s32.totalorder %v902, %v2098
    %vm2221 = vcmp.eq.s32.totalorder %v903, %v2098
    %vm2222 = vcmp.eq.s32.totalorder %v904, %v2098
    %vm2223 = vcmp.eq.s32.totalorder %v905, %v2098
    %vm2224 = vcmp.eq.s32.totalorder %v906, %v2098
    %vm2225 = vcmp.eq.s32.totalorder %v907, %v2098
    %vm2226 = vcmp.eq.s32.totalorder %v908, %v2098
    %v2227 = vsel %vm2099, %v143, 0.0
    %v2228 = vsel %vm2100, %v148, 0.0
    %v2229 = vsel %vm2101, %v153, 0.0
    %v2230 = vsel %vm2102, %v158, 0.0
    %v2231 = vsel %vm2103, %v163, 0.0
    %v2232 = vsel %vm2104, %v168, 0.0
    %v2233 = vsel %vm2105, %v173, 0.0
    %v2234 = vsel %vm2106, %v178, 0.0
    %v2235 = vsel %vm2107, %v183, 0.0
    %v2236 = vsel %vm2108, %v188, 0.0
    %v2237 = vsel %vm2109, %v193, 0.0
    %v2238 = vsel %vm2110, %v198, 0.0
    %v2239 = vsel %vm2111, %v203, 0.0
    %v2240 = vsel %vm2112, %v208, 0.0
    %v2241 = vsel %vm2113, %v213, 0.0
    %v2242 = vsel %vm2114, %v218, 0.0
    %v2243 = vsel %vm2115, %v223, 0.0
    %v2244 = vsel %vm2116, %v228, 0.0
    %v2245 = vsel %vm2117, %v233, 0.0
    %v2246 = vsel %vm2118, %v238, 0.0
    %v2247 = vsel %vm2119, %v243, 0.0
    %v2248 = vsel %vm2120, %v248, 0.0
    %v2249 = vsel %vm2121, %v253, 0.0
    %v2250 = vsel %vm2122, %v258, 0.0
    %v2251 = vsel %vm2123, %v263, 0.0
    %v2252 = vsel %vm2124, %v268, 0.0
    %v2253 = vsel %vm2125, %v273, 0.0
    %v2254 = vsel %vm2126, %v278, 0.0
    %v2255 = vsel %vm2127, %v283, 0.0
    %v2256 = vsel %vm2128, %v288, 0.0
    %v2257 = vsel %vm2129, %v293, 0.0
    %v2258 = vsel %vm2130, %v298, 0.0
    %v2259 = vsel %vm2131, %v303, 0.0
    %v2260 = vsel %vm2132, %v308, 0.0
    %v2261 = vsel %vm2133, %v313, 0.0
    %v2262 = vsel %vm2134, %v318, 0.0
    %v2263 = vsel %vm2135, %v323, 0.0
    %v2264 = vsel %vm2136, %v328, 0.0
    %v2265 = vsel %vm2137, %v333, 0.0
    %v2266 = vsel %vm2138, %v338, 0.0
    %v2267 = vsel %vm2139, %v343, 0.0
    %v2268 = vsel %vm2140, %v348, 0.0
    %v2269 = vsel %vm2141, %v353, 0.0
    %v2270 = vsel %vm2142, %v358, 0.0
    %v2271 = vsel %vm2143, %v363, 0.0
    %v2272 = vsel %vm2144, %v368, 0.0
    %v2273 = vsel %vm2145, %v373, 0.0
    %v2274 = vsel %vm2146, %v378, 0.0
    %v2275 = vsel %vm2147, %v383, 0.0
    %v2276 = vsel %vm2148, %v388, 0.0
    %v2277 = vsel %vm2149, %v393, 0.0
    %v2278 = vsel %vm2150, %v398, 0.0
    %v2279 = vsel %vm2151, %v403, 0.0
    %v2280 = vsel %vm2152, %v408, 0.0
    %v2281 = vsel %vm2153, %v413, 0.0
    %v2282 = vsel %vm2154, %v418, 0.0
    %v2283 = vsel %vm2155, %v423, 0.0
    %v2284 = vsel %vm2156, %v428, 0.0
    %v2285 = vsel %vm2157, %v433, 0.0
    %v2286 = vsel %vm2158, %v438, 0.0
    %v2287 = vsel %vm2159, %v443, 0.0
    %v2288 = vsel %vm2160, %v448, 0.0
    %v2289 = vsel %vm2161, %v453, 0.0
    %v2290 = vsel %vm2162, %v458, 0.0
    %v2291 = vsel %vm2163, %v463, 0.0
    %v2292 = vsel %vm2164, %v468, 0.0
    %v2293 = vsel %vm2165, %v473, 0.0
    %v2294 = vsel %vm2166, %v478, 0.0
    %v2295 = vsel %vm2167, %v483, 0.0
    %v2296 = vsel %vm2168, %v488, 0.0
    %v2297 = vsel %vm2169, %v493, 0.0
    %v2298 = vsel %vm2170, %v498, 0.0
    %v2299 = vsel %vm2171, %v503, 0.0
    %v2300 = vsel %vm2172, %v508, 0.0
    %v2301 = vsel %vm2173, %v513, 0.0
    %v2302 = vsel %vm2174, %v518, 0.0
    %v2303 = vsel %vm2175, %v523, 0.0
    %v2304 = vsel %vm2176, %v528, 0.0
    %v2305 = vsel %vm2177, %v533, 0.0
    %v2306 = vsel %vm2178, %v538, 0.0
    %v2307 = vsel %vm2179, %v543, 0.0
    %v2308 = vsel %vm2180, %v548, 0.0
    %v2309 = vsel %vm2181, %v553, 0.0
    %v2310 = vsel %vm2182, %v558, 0.0
    %v2311 = vsel %vm2183, %v563, 0.0
    %v2312 = vsel %vm2184, %v568, 0.0
    %v2313 = vsel %vm2185, %v573, 0.0
    %v2314 = vsel %vm2186, %v578, 0.0
    %v2315 = vsel %vm2187, %v583, 0.0
    %v2316 = vsel %vm2188, %v588, 0.0
    %v2317 = vsel %vm2189, %v593, 0.0
    %v2318 = vsel %vm2190, %v598, 0.0
    %v2319 = vsel %vm2191, %v603, 0.0
    %v2320 = vsel %vm2192, %v608, 0.0
    %v2321 = vsel %vm2193, %v613, 0.0
    %v2322 = vsel %vm2194, %v618, 0.0
    %v2323 = vsel %vm2195, %v623, 0.0
    %v2324 = vsel %vm2196, %v628, 0.0
    %v2325 = vsel %vm2197, %v633, 0.0
    %v2326 = vsel %vm2198, %v638, 0.0
    %v2327 = vsel %vm2199, %v643, 0.0
    %v2328 = vsel %vm2200, %v648, 0.0
    %v2329 = vsel %vm2201, %v653, 0.0
    %v2330 = vsel %vm2202, %v658, 0.0
    %v2331 = vsel %vm2203, %v663, 0.0
    %v2332 = vsel %vm2204, %v668, 0.0
    %v2333 = vsel %vm2205, %v673, 0.0
    %v2334 = vsel %vm2206, %v678, 0.0
    %v2335 = vsel %vm2207, %v683, 0.0
    %v2336 = vsel %vm2208, %v688, 0.0
    %v2337 = vsel %vm2209, %v693, 0.0
    %v2338 = vsel %vm2210, %v698, 0.0
    %v2339 = vsel %vm2211, %v703, 0.0
    %v2340 = vsel %vm2212, %v708, 0.0
    %v2341 = vsel %vm2213, %v713, 0.0
    %v2342 = vsel %vm2214, %v718, 0.0
    %v2343 = vsel %vm2215, %v723, 0.0
    %v2344 = vsel %vm2216, %v728, 0.0
    %v2345 = vsel %vm2217, %v733, 0.0
    %v2346 = vsel %vm2218, %v738, 0.0
    %v2347 = vsel %vm2219, %v743, 0.0
    %v2348 = vsel %vm2220, %v748, 0.0
    %v2349 = vsel %vm2221, %v753, 0.0
    %v2350 = vsel %vm2222, %v758, 0.0
    %v2351 = vsel %vm2223, %v763, 0.0
    %v2352 = vsel %vm2224, %v768, 0.0
    %v2353 = vsel %vm2225, %v773, 0.0
    %v2354 = vsel %vm2226, %v778, 0.0
    %v2355 = vadd.f32 %v2227, %v2228
    %v2356 = vadd.f32 %v2355, %v2229
    %v2357 = vadd.f32 %v2356, %v2230
    %v2358 = vadd.f32 %v2357, %v2231
    %v2359 = vadd.f32 %v2358, %v2232
    %v2360 = vadd.f32 %v2359, %v2233
    %v2361 = vadd.f32 %v2360, %v2234
    %v2362 = vadd.f32 %v2361, %v2235
    %v2363 = vadd.f32 %v2362, %v2236
    %v2364 = vadd.f32 %v2363, %v2237
    %v2365 = vadd.f32 %v2364, %v2238
    %v2366 = vadd.f32 %v2365, %v2239
    %v2367 = vadd.f32 %v2366, %v2240
    %v2368 = vadd.f32 %v2367, %v2241
    %v2369 = vadd.f32 %v2368, %v2242
    %v2370 = vadd.f32 %v2369, %v2243
    %v2371 = vadd.f32 %v2370, %v2244
    %v2372 = vadd.f32 %v2371, %v2245
    %v2373 = vadd.f32 %v2372, %v2246
    %v2374 = vadd.f32 %v2373, %v2247
    %v2375 = vadd.f32 %v2374, %v2248
    %v2376 = vadd.f32 %v2375, %v2249
    %v2377 = vadd.f32 %v2376, %v2250
    %v2378 = vadd.f32 %v2377, %v2251
    %v2379 = vadd.f32 %v2378, %v2252
    %v2380 = vadd.f32 %v2379, %v2253
    %v2381 = vadd.f32 %v2380, %v2254
    %v2382 = vadd.f32 %v2381, %v2255
    %v2383 = vadd.f32 %v2382, %v2256
    %v2384 = vadd.f32 %v2383, %v2257
    %v2385 = vadd.f32 %v2384, %v2258
    %v2386 = vadd.f32 %v2385, %v2259
    %v2387 = vadd.f32 %v2386, %v2260
    %v2388 = vadd.f32 %v2387, %v2261
    %v2389 = vadd.f32 %v2388, %v2262
    %v2390 = vadd.f32 %v2389, %v2263
    %v2391 = vadd.f32 %v2390, %v2264
    %v2392 = vadd.f32 %v2391, %v2265
    %v2393 = vadd.f32 %v2392, %v2266
    %v2394 = vadd.f32 %v2393, %v2267
    %v2395 = vadd.f32 %v2394, %v2268
    %v2396 = vadd.f32 %v2395, %v2269
    %v2397 = vadd.f32 %v2396, %v2270
    %v2398 = vadd.f32 %v2397, %v2271
    %v2399 = vadd.f32 %v2398, %v2272
    %v2400 = vadd.f32 %v2399, %v2273
    %v2401 = vadd.f32 %v2400, %v2274
    %v2402 = vadd.f32 %v2401, %v2275
    %v2403 = vadd.f32 %v2402, %v2276
    %v2404 = vadd.f32 %v2403, %v2277
    %v2405 = vadd.f32 %v2404, %v2278
    %v2406 = vadd.f32 %v2405, %v2279
    %v2407 = vadd.f32 %v2406, %v2280
    %v2408 = vadd.f32 %v2407, %v2281
    %v2409 = vadd.f32 %v2408, %v2282
    %v2410 = vadd.f32 %v2409, %v2283
    %v2411 = vadd.f32 %v2410, %v2284
    %v2412 = vadd.f32 %v2411, %v2285
    %v2413 = vadd.f32 %v2412, %v2286
    %v2414 = vadd.f32 %v2413, %v2287
    %v2415 = vadd.f32 %v2414, %v2288
    %v2416 = vadd.f32 %v2415, %v2289
    %v2417 = vadd.f32 %v2416, %v2290
    %v2418 = vadd.f32 %v2417, %v2291
    %v2419 = vadd.f32 %v2418, %v2292
    %v2420 = vadd.f32 %v2419, %v2293
    %v2421 = vadd.f32 %v2420, %v2294
    %v2422 = vadd.f32 %v2421, %v2295
    %v2423 = vadd.f32 %v2422, %v2296
    %v2424 = vadd.f32 %v2423, %v2297
    %v2425 = vadd.f32 %v2424, %v2298
    %v2426 = vadd.f32 %v2425, %v2299
    %v2427 = vadd.f32 %v2426, %v2300
    %v2428 = vadd.f32 %v2427, %v2301
    %v2429 = vadd.f32 %v2428, %v2302
    %v2430 = vadd.f32 %v2429, %v2303
    %v2431 = vadd.f32 %v2430, %v2304
    %v2432 = vadd.f32 %v2431, %v2305
    %v2433 = vadd.f32 %v2432, %v2306
    %v2434 = vadd.f32 %v2433, %v2307
    %v2435 = vadd.f32 %v2434, %v2308
    %v2436 = vadd.f32 %v2435, %v2309
    %v2437 = vadd.f32 %v2436, %v2310
    %v2438 = vadd.f32 %v2437, %v2311
    %v2439 = vadd.f32 %v2438, %v2312
    %v2440 = vadd.f32 %v2439, %v2313
    %v2441 = vadd.f32 %v2440, %v2314
    %v2442 = vadd.f32 %v2441, %v2315
    %v2443 = vadd.f32 %v2442, %v2316
    %v2444 = vadd.f32 %v2443, %v2317
    %v2445 = vadd.f32 %v2444, %v2318
    %v2446 = vadd.f32 %v2445, %v2319
    %v2447 = vadd.f32 %v2446, %v2320
    %v2448 = vadd.f32 %v2447, %v2321
    %v2449 = vadd.f32 %v2448, %v2322
    %v2450 = vadd.f32 %v2449, %v2323
    %v2451 = vadd.f32 %v2450, %v2324
    %v2452 = vadd.f32 %v2451, %v2325
    %v2453 = vadd.f32 %v2452, %v2326
    %v2454 = vadd.f32 %v2453, %v2327
    %v2455 = vadd.f32 %v2454, %v2328
    %v2456 = vadd.f32 %v2455, %v2329
    %v2457 = vadd.f32 %v2456, %v2330
    %v2458 = vadd.f32 %v2457, %v2331
    %v2459 = vadd.f32 %v2458, %v2332
    %v2460 = vadd.f32 %v2459, %v2333
    %v2461 = vadd.f32 %v2460, %v2334
    %v2462 = vadd.f32 %v2461, %v2335
    %v2463 = vadd.f32 %v2462, %v2336
    %v2464 = vadd.f32 %v2463, %v2337
    %v2465 = vadd.f32 %v2464, %v2338
    %v2466 = vadd.f32 %v2465, %v2339
    %v2467 = vadd.f32 %v2466, %v2340
    %v2468 = vadd.f32 %v2467, %v2341
    %v2469 = vadd.f32 %v2468, %v2342
    %v2470 = vadd.f32 %v2469, %v2343
    %v2471 = vadd.f32 %v2470, %v2344
    %v2472 = vadd.f32 %v2471, %v2345
    %v2473 = vadd.f32 %v2472, %v2346
    %v2474 = vadd.f32 %v2473, %v2347
    %v2475 = vadd.f32 %v2474, %v2348
    %v2476 = vadd.f32 %v2475, %v2349
    %v2477 = vadd.f32 %v2476, %v2350
    %v2478 = vadd.f32 %v2477, %v2351
    %v2479 = vadd.f32 %v2478, %v2352
    %v2480 = vadd.f32 %v2479, %v2353
    %v2481 = vadd.f32 %v2480, %v2354
    %v2482 = vrot.slane %v2481, 4
    %v2483 = vadd.f32 %v2481, %v2482
    %v2484 = vrot.slane %v2483, 2
    %v2485 = vadd.f32 %v2483, %v2484
    %v2486 = vrot.slane %v2485, 1
    %v2487 = vadd.f32 %v2485, %v2486
    %2488 = vst [vmem:[#allocation2 + $0x3] sm:$0x1] %v2487
    %v2489 = vld [vmem:[%s0 + $0x4] sm:$0x1]
    %v2490 = vlaneseq
    %v2491 = vshrl.u32 %v2490, 7
    %v2492 = vsub.s32 0, %v2491
    %v2493 = vrot.slane %v2489, %v2492
    %vm2494 = vcmp.eq.s32.totalorder %v781, %v2493
    %vm2495 = vcmp.eq.s32.totalorder %v782, %v2493
    %vm2496 = vcmp.eq.s32.totalorder %v783, %v2493
    %vm2497 = vcmp.eq.s32.totalorder %v784, %v2493
    %vm2498 = vcmp.eq.s32.totalorder %v785, %v2493
    %vm2499 = vcmp.eq.s32.totalorder %v786, %v2493
    %vm2500 = vcmp.eq.s32.totalorder %v787, %v2493
    %vm2501 = vcmp.eq.s32.totalorder %v788, %v2493
    %vm2502 = vcmp.eq.s32.totalorder %v789, %v2493
    %vm2503 = vcmp.eq.s32.totalorder %v790, %v2493
    %vm2504 = vcmp.eq.s32.totalorder %v791, %v2493
    %vm2505 = vcmp.eq.s32.totalorder %v792, %v2493
    %vm2506 = vcmp.eq.s32.totalorder %v793, %v2493
    %vm2507 = vcmp.eq.s32.totalorder %v794, %v2493
    %vm2508 = vcmp.eq.s32.totalorder %v795, %v2493
    %vm2509 = vcmp.eq.s32.totalorder %v796, %v2493
    %vm2510 = vcmp.eq.s32.totalorder %v797, %v2493
    %vm2511 = vcmp.eq.s32.totalorder %v798, %v2493
    %vm2512 = vcmp.eq.s32.totalorder %v799, %v2493
    %vm2513 = vcmp.eq.s32.totalorder %v800, %v2493
    %vm2514 = vcmp.eq.s32.totalorder %v801, %v2493
    %vm2515 = vcmp.eq.s32.totalorder %v802, %v2493
    %vm2516 = vcmp.eq.s32.totalorder %v803, %v2493
    %vm2517 = vcmp.eq.s32.totalorder %v804, %v2493
    %vm2518 = vcmp.eq.s32.totalorder %v805, %v2493
    %vm2519 = vcmp.eq.s32.totalorder %v806, %v2493
    %vm2520 = vcmp.eq.s32.totalorder %v807, %v2493
    %vm2521 = vcmp.eq.s32.totalorder %v808, %v2493
    %vm2522 = vcmp.eq.s32.totalorder %v809, %v2493
    %vm2523 = vcmp.eq.s32.totalorder %v810, %v2493
    %vm2524 = vcmp.eq.s32.totalorder %v811, %v2493
    %vm2525 = vcmp.eq.s32.totalorder %v812, %v2493
    %vm2526 = vcmp.eq.s32.totalorder %v813, %v2493
    %vm2527 = vcmp.eq.s32.totalorder %v814, %v2493
    %vm2528 = vcmp.eq.s32.totalorder %v815, %v2493
    %vm2529 = vcmp.eq.s32.totalorder %v816, %v2493
    %vm2530 = vcmp.eq.s32.totalorder %v817, %v2493
    %vm2531 = vcmp.eq.s32.totalorder %v818, %v2493
    %vm2532 = vcmp.eq.s32.totalorder %v819, %v2493
    %vm2533 = vcmp.eq.s32.totalorder %v820, %v2493
    %vm2534 = vcmp.eq.s32.totalorder %v821, %v2493
    %vm2535 = vcmp.eq.s32.totalorder %v822, %v2493
    %vm2536 = vcmp.eq.s32.totalorder %v823, %v2493
    %vm2537 = vcmp.eq.s32.totalorder %v824, %v2493
    %vm2538 = vcmp.eq.s32.totalorder %v825, %v2493
    %vm2539 = vcmp.eq.s32.totalorder %v826, %v2493
    %vm2540 = vcmp.eq.s32.totalorder %v827, %v2493
    %vm2541 = vcmp.eq.s32.totalorder %v828, %v2493
    %vm2542 = vcmp.eq.s32.totalorder %v829, %v2493
    %vm2543 = vcmp.eq.s32.totalorder %v830, %v2493
    %vm2544 = vcmp.eq.s32.totalorder %v831, %v2493
    %vm2545 = vcmp.eq.s32.totalorder %v832, %v2493
    %vm2546 = vcmp.eq.s32.totalorder %v833, %v2493
    %vm2547 = vcmp.eq.s32.totalorder %v834, %v2493
    %vm2548 = vcmp.eq.s32.totalorder %v835, %v2493
    %vm2549 = vcmp.eq.s32.totalorder %v836, %v2493
    %vm2550 = vcmp.eq.s32.totalorder %v837, %v2493
    %vm2551 = vcmp.eq.s32.totalorder %v838, %v2493
    %vm2552 = vcmp.eq.s32.totalorder %v839, %v2493
    %vm2553 = vcmp.eq.s32.totalorder %v840, %v2493
    %vm2554 = vcmp.eq.s32.totalorder %v841, %v2493
    %vm2555 = vcmp.eq.s32.totalorder %v842, %v2493
    %vm2556 = vcmp.eq.s32.totalorder %v843, %v2493
    %vm2557 = vcmp.eq.s32.totalorder %v844, %v2493
    %vm2558 = vcmp.eq.s32.totalorder %v845, %v2493
    %vm2559 = vcmp.eq.s32.totalorder %v846, %v2493
    %vm2560 = vcmp.eq.s32.totalorder %v847, %v2493
    %vm2561 = vcmp.eq.s32.totalorder %v848, %v2493
    %vm2562 = vcmp.eq.s32.totalorder %v849, %v2493
    %vm2563 = vcmp.eq.s32.totalorder %v850, %v2493
    %vm2564 = vcmp.eq.s32.totalorder %v851, %v2493
    %vm2565 = vcmp.eq.s32.totalorder %v852, %v2493
    %vm2566 = vcmp.eq.s32.totalorder %v853, %v2493
    %vm2567 = vcmp.eq.s32.totalorder %v854, %v2493
    %vm2568 = vcmp.eq.s32.totalorder %v855, %v2493
    %vm2569 = vcmp.eq.s32.totalorder %v856, %v2493
    %vm2570 = vcmp.eq.s32.totalorder %v857, %v2493
    %vm2571 = vcmp.eq.s32.totalorder %v858, %v2493
    %vm2572 = vcmp.eq.s32.totalorder %v859, %v2493
    %vm2573 = vcmp.eq.s32.totalorder %v860, %v2493
    %vm2574 = vcmp.eq.s32.totalorder %v861, %v2493
    %vm2575 = vcmp.eq.s32.totalorder %v862, %v2493
    %vm2576 = vcmp.eq.s32.totalorder %v863, %v2493
    %vm2577 = vcmp.eq.s32.totalorder %v864, %v2493
    %vm2578 = vcmp.eq.s32.totalorder %v865, %v2493
    %vm2579 = vcmp.eq.s32.totalorder %v866, %v2493
    %vm2580 = vcmp.eq.s32.totalorder %v867, %v2493
    %vm2581 = vcmp.eq.s32.totalorder %v868, %v2493
    %vm2582 = vcmp.eq.s32.totalorder %v869, %v2493
    %vm2583 = vcmp.eq.s32.totalorder %v870, %v2493
    %vm2584 = vcmp.eq.s32.totalorder %v871, %v2493
    %vm2585 = vcmp.eq.s32.totalorder %v872, %v2493
    %vm2586 = vcmp.eq.s32.totalorder %v873, %v2493
    %vm2587 = vcmp.eq.s32.totalorder %v874, %v2493
    %vm2588 = vcmp.eq.s32.totalorder %v875, %v2493
    %vm2589 = vcmp.eq.s32.totalorder %v876, %v2493
    %vm2590 = vcmp.eq.s32.totalorder %v877, %v2493
    %vm2591 = vcmp.eq.s32.totalorder %v878, %v2493
    %vm2592 = vcmp.eq.s32.totalorder %v879, %v2493
    %vm2593 = vcmp.eq.s32.totalorder %v880, %v2493
    %vm2594 = vcmp.eq.s32.totalorder %v881, %v2493
    %vm2595 = vcmp.eq.s32.totalorder %v882, %v2493
    %vm2596 = vcmp.eq.s32.totalorder %v883, %v2493
    %vm2597 = vcmp.eq.s32.totalorder %v884, %v2493
    %vm2598 = vcmp.eq.s32.totalorder %v885, %v2493
    %vm2599 = vcmp.eq.s32.totalorder %v886, %v2493
    %vm2600 = vcmp.eq.s32.totalorder %v887, %v2493
    %vm2601 = vcmp.eq.s32.totalorder %v888, %v2493
    %vm2602 = vcmp.eq.s32.totalorder %v889, %v2493
    %vm2603 = vcmp.eq.s32.totalorder %v890, %v2493
    %vm2604 = vcmp.eq.s32.totalorder %v891, %v2493
    %vm2605 = vcmp.eq.s32.totalorder %v892, %v2493
    %vm2606 = vcmp.eq.s32.totalorder %v893, %v2493
    %vm2607 = vcmp.eq.s32.totalorder %v894, %v2493
    %vm2608 = vcmp.eq.s32.totalorder %v895, %v2493
    %vm2609 = vcmp.eq.s32.totalorder %v896, %v2493
    %vm2610 = vcmp.eq.s32.totalorder %v897, %v2493
    %vm2611 = vcmp.eq.s32.totalorder %v898, %v2493
    %vm2612 = vcmp.eq.s32.totalorder %v899, %v2493
    %vm2613 = vcmp.eq.s32.totalorder %v900, %v2493
    %vm2614 = vcmp.eq.s32.totalorder %v901, %v2493
    %vm2615 = vcmp.eq.s32.totalorder %v902, %v2493
    %vm2616 = vcmp.eq.s32.totalorder %v903, %v2493
    %vm2617 = vcmp.eq.s32.totalorder %v904, %v2493
    %vm2618 = vcmp.eq.s32.totalorder %v905, %v2493
    %vm2619 = vcmp.eq.s32.totalorder %v906, %v2493
    %vm2620 = vcmp.eq.s32.totalorder %v907, %v2493
    %vm2621 = vcmp.eq.s32.totalorder %v908, %v2493
    %v2622 = vsel %vm2494, %v143, 0.0
    %v2623 = vsel %vm2495, %v148, 0.0
    %v2624 = vsel %vm2496, %v153, 0.0
    %v2625 = vsel %vm2497, %v158, 0.0
    %v2626 = vsel %vm2498, %v163, 0.0
    %v2627 = vsel %vm2499, %v168, 0.0
    %v2628 = vsel %vm2500, %v173, 0.0
    %v2629 = vsel %vm2501, %v178, 0.0
    %v2630 = vsel %vm2502, %v183, 0.0
    %v2631 = vsel %vm2503, %v188, 0.0
    %v2632 = vsel %vm2504, %v193, 0.0
    %v2633 = vsel %vm2505, %v198, 0.0
    %v2634 = vsel %vm2506, %v203, 0.0
    %v2635 = vsel %vm2507, %v208, 0.0
    %v2636 = vsel %vm2508, %v213, 0.0
    %v2637 = vsel %vm2509, %v218, 0.0
    %v2638 = vsel %vm2510, %v223, 0.0
    %v2639 = vsel %vm2511, %v228, 0.0
    %v2640 = vsel %vm2512, %v233, 0.0
    %v2641 = vsel %vm2513, %v238, 0.0
    %v2642 = vsel %vm2514, %v243, 0.0
    %v2643 = vsel %vm2515, %v248, 0.0
    %v2644 = vsel %vm2516, %v253, 0.0
    %v2645 = vsel %vm2517, %v258, 0.0
    %v2646 = vsel %vm2518, %v263, 0.0
    %v2647 = vsel %vm2519, %v268, 0.0
    %v2648 = vsel %vm2520, %v273, 0.0
    %v2649 = vsel %vm2521, %v278, 0.0
    %v2650 = vsel %vm2522, %v283, 0.0
    %v2651 = vsel %vm2523, %v288, 0.0
    %v2652 = vsel %vm2524, %v293, 0.0
    %v2653 = vsel %vm2525, %v298, 0.0
    %v2654 = vsel %vm2526, %v303, 0.0
    %v2655 = vsel %vm2527, %v308, 0.0
    %v2656 = vsel %vm2528, %v313, 0.0
    %v2657 = vsel %vm2529, %v318, 0.0
    %v2658 = vsel %vm2530, %v323, 0.0
    %v2659 = vsel %vm2531, %v328, 0.0
    %v2660 = vsel %vm2532, %v333, 0.0
    %v2661 = vsel %vm2533, %v338, 0.0
    %v2662 = vsel %vm2534, %v343, 0.0
    %v2663 = vsel %vm2535, %v348, 0.0
    %v2664 = vsel %vm2536, %v353, 0.0
    %v2665 = vsel %vm2537, %v358, 0.0
    %v2666 = vsel %vm2538, %v363, 0.0
    %v2667 = vsel %vm2539, %v368, 0.0
    %v2668 = vsel %vm2540, %v373, 0.0
    %v2669 = vsel %vm2541, %v378, 0.0
    %v2670 = vsel %vm2542, %v383, 0.0
    %v2671 = vsel %vm2543, %v388, 0.0
    %v2672 = vsel %vm2544, %v393, 0.0
    %v2673 = vsel %vm2545, %v398, 0.0
    %v2674 = vsel %vm2546, %v403, 0.0
    %v2675 = vsel %vm2547, %v408, 0.0
    %v2676 = vsel %vm2548, %v413, 0.0
    %v2677 = vsel %vm2549, %v418, 0.0
    %v2678 = vsel %vm2550, %v423, 0.0
    %v2679 = vsel %vm2551, %v428, 0.0
    %v2680 = vsel %vm2552, %v433, 0.0
    %v2681 = vsel %vm2553, %v438, 0.0
    %v2682 = vsel %vm2554, %v443, 0.0
    %v2683 = vsel %vm2555, %v448, 0.0
    %v2684 = vsel %vm2556, %v453, 0.0
    %v2685 = vsel %vm2557, %v458, 0.0
    %v2686 = vsel %vm2558, %v463, 0.0
    %v2687 = vsel %vm2559, %v468, 0.0
    %v2688 = vsel %vm2560, %v473, 0.0
    %v2689 = vsel %vm2561, %v478, 0.0
    %v2690 = vsel %vm2562, %v483, 0.0
    %v2691 = vsel %vm2563, %v488, 0.0
    %v2692 = vsel %vm2564, %v493, 0.0
    %v2693 = vsel %vm2565, %v498, 0.0
    %v2694 = vsel %vm2566, %v503, 0.0
    %v2695 = vsel %vm2567, %v508, 0.0
    %v2696 = vsel %vm2568, %v513, 0.0
    %v2697 = vsel %vm2569, %v518, 0.0
    %v2698 = vsel %vm2570, %v523, 0.0
    %v2699 = vsel %vm2571, %v528, 0.0
    %v2700 = vsel %vm2572, %v533, 0.0
    %v2701 = vsel %vm2573, %v538, 0.0
    %v2702 = vsel %vm2574, %v543, 0.0
    %v2703 = vsel %vm2575, %v548, 0.0
    %v2704 = vsel %vm2576, %v553, 0.0
    %v2705 = vsel %vm2577, %v558, 0.0
    %v2706 = vsel %vm2578, %v563, 0.0
    %v2707 = vsel %vm2579, %v568, 0.0
    %v2708 = vsel %vm2580, %v573, 0.0
    %v2709 = vsel %vm2581, %v578, 0.0
    %v2710 = vsel %vm2582, %v583, 0.0
    %v2711 = vsel %vm2583, %v588, 0.0
    %v2712 = vsel %vm2584, %v593, 0.0
    %v2713 = vsel %vm2585, %v598, 0.0
    %v2714 = vsel %vm2586, %v603, 0.0
    %v2715 = vsel %vm2587, %v608, 0.0
    %v2716 = vsel %vm2588, %v613, 0.0
    %v2717 = vsel %vm2589, %v618, 0.0
    %v2718 = vsel %vm2590, %v623, 0.0
    %v2719 = vsel %vm2591, %v628, 0.0
    %v2720 = vsel %vm2592, %v633, 0.0
    %v2721 = vsel %vm2593, %v638, 0.0
    %v2722 = vsel %vm2594, %v643, 0.0
    %v2723 = vsel %vm2595, %v648, 0.0
    %v2724 = vsel %vm2596, %v653, 0.0
    %v2725 = vsel %vm2597, %v658, 0.0
    %v2726 = vsel %vm2598, %v663, 0.0
    %v2727 = vsel %vm2599, %v668, 0.0
    %v2728 = vsel %vm2600, %v673, 0.0
    %v2729 = vsel %vm2601, %v678, 0.0
    %v2730 = vsel %vm2602, %v683, 0.0
    %v2731 = vsel %vm2603, %v688, 0.0
    %v2732 = vsel %vm2604, %v693, 0.0
    %v2733 = vsel %vm2605, %v698, 0.0
    %v2734 = vsel %vm2606, %v703, 0.0
    %v2735 = vsel %vm2607, %v708, 0.0
    %v2736 = vsel %vm2608, %v713, 0.0
    %v2737 = vsel %vm2609, %v718, 0.0
    %v2738 = vsel %vm2610, %v723, 0.0
    %v2739 = vsel %vm2611, %v728, 0.0
    %v2740 = vsel %vm2612, %v733, 0.0
    %v2741 = vsel %vm2613, %v738, 0.0
    %v2742 = vsel %vm2614, %v743, 0.0
    %v2743 = vsel %vm2615, %v748, 0.0
    %v2744 = vsel %vm2616, %v753, 0.0
    %v2745 = vsel %vm2617, %v758, 0.0
    %v2746 = vsel %vm2618, %v763, 0.0
    %v2747 = vsel %vm2619, %v768, 0.0
    %v2748 = vsel %vm2620, %v773, 0.0
    %v2749 = vsel %vm2621, %v778, 0.0
    %v2750 = vadd.f32 %v2622, %v2623
    %v2751 = vadd.f32 %v2750, %v2624
    %v2752 = vadd.f32 %v2751, %v2625
    %v2753 = vadd.f32 %v2752, %v2626
    %v2754 = vadd.f32 %v2753, %v2627
    %v2755 = vadd.f32 %v2754, %v2628
    %v2756 = vadd.f32 %v2755, %v2629
    %v2757 = vadd.f32 %v2756, %v2630
    %v2758 = vadd.f32 %v2757, %v2631
    %v2759 = vadd.f32 %v2758, %v2632
    %v2760 = vadd.f32 %v2759, %v2633
    %v2761 = vadd.f32 %v2760, %v2634
    %v2762 = vadd.f32 %v2761, %v2635
    %v2763 = vadd.f32 %v2762, %v2636
    %v2764 = vadd.f32 %v2763, %v2637
    %v2765 = vadd.f32 %v2764, %v2638
    %v2766 = vadd.f32 %v2765, %v2639
    %v2767 = vadd.f32 %v2766, %v2640
    %v2768 = vadd.f32 %v2767, %v2641
    %v2769 = vadd.f32 %v2768, %v2642
    %v2770 = vadd.f32 %v2769, %v2643
    %v2771 = vadd.f32 %v2770, %v2644
    %v2772 = vadd.f32 %v2771, %v2645
    %v2773 = vadd.f32 %v2772, %v2646
    %v2774 = vadd.f32 %v2773, %v2647
    %v2775 = vadd.f32 %v2774, %v2648
    %v2776 = vadd.f32 %v2775, %v2649
    %v2777 = vadd.f32 %v2776, %v2650
    %v2778 = vadd.f32 %v2777, %v2651
    %v2779 = vadd.f32 %v2778, %v2652
    %v2780 = vadd.f32 %v2779, %v2653
    %v2781 = vadd.f32 %v2780, %v2654
    %v2782 = vadd.f32 %v2781, %v2655
    %v2783 = vadd.f32 %v2782, %v2656
    %v2784 = vadd.f32 %v2783, %v2657
    %v2785 = vadd.f32 %v2784, %v2658
    %v2786 = vadd.f32 %v2785, %v2659
    %v2787 = vadd.f32 %v2786, %v2660
    %v2788 = vadd.f32 %v2787, %v2661
    %v2789 = vadd.f32 %v2788, %v2662
    %v2790 = vadd.f32 %v2789, %v2663
    %v2791 = vadd.f32 %v2790, %v2664
    %v2792 = vadd.f32 %v2791, %v2665
    %v2793 = vadd.f32 %v2792, %v2666
    %v2794 = vadd.f32 %v2793, %v2667
    %v2795 = vadd.f32 %v2794, %v2668
    %v2796 = vadd.f32 %v2795, %v2669
    %v2797 = vadd.f32 %v2796, %v2670
    %v2798 = vadd.f32 %v2797, %v2671
    %v2799 = vadd.f32 %v2798, %v2672
    %v2800 = vadd.f32 %v2799, %v2673
    %v2801 = vadd.f32 %v2800, %v2674
    %v2802 = vadd.f32 %v2801, %v2675
    %v2803 = vadd.f32 %v2802, %v2676
    %v2804 = vadd.f32 %v2803, %v2677
    %v2805 = vadd.f32 %v2804, %v2678
    %v2806 = vadd.f32 %v2805, %v2679
    %v2807 = vadd.f32 %v2806, %v2680
    %v2808 = vadd.f32 %v2807, %v2681
    %v2809 = vadd.f32 %v2808, %v2682
    %v2810 = vadd.f32 %v2809, %v2683
    %v2811 = vadd.f32 %v2810, %v2684
    %v2812 = vadd.f32 %v2811, %v2685
    %v2813 = vadd.f32 %v2812, %v2686
    %v2814 = vadd.f32 %v2813, %v2687
    %v2815 = vadd.f32 %v2814, %v2688
    %v2816 = vadd.f32 %v2815, %v2689
    %v2817 = vadd.f32 %v2816, %v2690
    %v2818 = vadd.f32 %v2817, %v2691
    %v2819 = vadd.f32 %v2818, %v2692
    %v2820 = vadd.f32 %v2819, %v2693
    %v2821 = vadd.f32 %v2820, %v2694
    %v2822 = vadd.f32 %v2821, %v2695
    %v2823 = vadd.f32 %v2822, %v2696
    %v2824 = vadd.f32 %v2823, %v2697
    %v2825 = vadd.f32 %v2824, %v2698
    %v2826 = vadd.f32 %v2825, %v2699
    %v2827 = vadd.f32 %v2826, %v2700
    %v2828 = vadd.f32 %v2827, %v2701
    %v2829 = vadd.f32 %v2828, %v2702
    %v2830 = vadd.f32 %v2829, %v2703
    %v2831 = vadd.f32 %v2830, %v2704
    %v2832 = vadd.f32 %v2831, %v2705
    %v2833 = vadd.f32 %v2832, %v2706
    %v2834 = vadd.f32 %v2833, %v2707
    %v2835 = vadd.f32 %v2834, %v2708
    %v2836 = vadd.f32 %v2835, %v2709
    %v2837 = vadd.f32 %v2836, %v2710
    %v2838 = vadd.f32 %v2837, %v2711
    %v2839 = vadd.f32 %v2838, %v2712
    %v2840 = vadd.f32 %v2839, %v2713
    %v2841 = vadd.f32 %v2840, %v2714
    %v2842 = vadd.f32 %v2841, %v2715
    %v2843 = vadd.f32 %v2842, %v2716
    %v2844 = vadd.f32 %v2843, %v2717
    %v2845 = vadd.f32 %v2844, %v2718
    %v2846 = vadd.f32 %v2845, %v2719
    %v2847 = vadd.f32 %v2846, %v2720
    %v2848 = vadd.f32 %v2847, %v2721
    %v2849 = vadd.f32 %v2848, %v2722
    %v2850 = vadd.f32 %v2849, %v2723
    %v2851 = vadd.f32 %v2850, %v2724
    %v2852 = vadd.f32 %v2851, %v2725
    %v2853 = vadd.f32 %v2852, %v2726
    %v2854 = vadd.f32 %v2853, %v2727
    %v2855 = vadd.f32 %v2854, %v2728
    %v2856 = vadd.f32 %v2855, %v2729
    %v2857 = vadd.f32 %v2856, %v2730
    %v2858 = vadd.f32 %v2857, %v2731
    %v2859 = vadd.f32 %v2858, %v2732
    %v2860 = vadd.f32 %v2859, %v2733
    %v2861 = vadd.f32 %v2860, %v2734
    %v2862 = vadd.f32 %v2861, %v2735
    %v2863 = vadd.f32 %v2862, %v2736
    %v2864 = vadd.f32 %v2863, %v2737
    %v2865 = vadd.f32 %v2864, %v2738
    %v2866 = vadd.f32 %v2865, %v2739
    %v2867 = vadd.f32 %v2866, %v2740
    %v2868 = vadd.f32 %v2867, %v2741
    %v2869 = vadd.f32 %v2868, %v2742
    %v2870 = vadd.f32 %v2869, %v2743
    %v2871 = vadd.f32 %v2870, %v2744
    %v2872 = vadd.f32 %v2871, %v2745
    %v2873 = vadd.f32 %v2872, %v2746
    %v2874 = vadd.f32 %v2873, %v2747
    %v2875 = vadd.f32 %v2874, %v2748
    %v2876 = vadd.f32 %v2875, %v2749
    %v2877 = vrot.slane %v2876, 4
    %v2878 = vadd.f32 %v2876, %v2877
    %v2879 = vrot.slane %v2878, 2
    %v2880 = vadd.f32 %v2878, %v2879
    %v2881 = vrot.slane %v2880, 1
    %v2882 = vadd.f32 %v2880, %v2881
    %2883 = vst [vmem:[#allocation2 + $0x4] sm:$0x1] %v2882
    %v2884 = vld [vmem:[%s0 + $0x5] sm:$0x1]
    %v2885 = vlaneseq
    %v2886 = vshrl.u32 %v2885, 7
    %v2887 = vsub.s32 0, %v2886
    %v2888 = vrot.slane %v2884, %v2887
    %vm2889 = vcmp.eq.s32.totalorder %v781, %v2888
    %vm2890 = vcmp.eq.s32.totalorder %v782, %v2888
    %vm2891 = vcmp.eq.s32.totalorder %v783, %v2888
    %vm2892 = vcmp.eq.s32.totalorder %v784, %v2888
    %vm2893 = vcmp.eq.s32.totalorder %v785, %v2888
    %vm2894 = vcmp.eq.s32.totalorder %v786, %v2888
    %vm2895 = vcmp.eq.s32.totalorder %v787, %v2888
    %vm2896 = vcmp.eq.s32.totalorder %v788, %v2888
    %vm2897 = vcmp.eq.s32.totalorder %v789, %v2888
    %vm2898 = vcmp.eq.s32.totalorder %v790, %v2888
    %vm2899 = vcmp.eq.s32.totalorder %v791, %v2888
    %vm2900 = vcmp.eq.s32.totalorder %v792, %v2888
    %vm2901 = vcmp.eq.s32.totalorder %v793, %v2888
    %vm2902 = vcmp.eq.s32.totalorder %v794, %v2888
    %vm2903 = vcmp.eq.s32.totalorder %v795, %v2888
    %vm2904 = vcmp.eq.s32.totalorder %v796, %v2888
    %vm2905 = vcmp.eq.s32.totalorder %v797, %v2888
    %vm2906 = vcmp.eq.s32.totalorder %v798, %v2888
    %vm2907 = vcmp.eq.s32.totalorder %v799, %v2888
    %vm2908 = vcmp.eq.s32.totalorder %v800, %v2888
    %vm2909 = vcmp.eq.s32.totalorder %v801, %v2888
    %vm2910 = vcmp.eq.s32.totalorder %v802, %v2888
    %vm2911 = vcmp.eq.s32.totalorder %v803, %v2888
    %vm2912 = vcmp.eq.s32.totalorder %v804, %v2888
    %vm2913 = vcmp.eq.s32.totalorder %v805, %v2888
    %vm2914 = vcmp.eq.s32.totalorder %v806, %v2888
    %vm2915 = vcmp.eq.s32.totalorder %v807, %v2888
    %vm2916 = vcmp.eq.s32.totalorder %v808, %v2888
    %vm2917 = vcmp.eq.s32.totalorder %v809, %v2888
    %vm2918 = vcmp.eq.s32.totalorder %v810, %v2888
    %vm2919 = vcmp.eq.s32.totalorder %v811, %v2888
    %vm2920 = vcmp.eq.s32.totalorder %v812, %v2888
    %vm2921 = vcmp.eq.s32.totalorder %v813, %v2888
    %vm2922 = vcmp.eq.s32.totalorder %v814, %v2888
    %vm2923 = vcmp.eq.s32.totalorder %v815, %v2888
    %vm2924 = vcmp.eq.s32.totalorder %v816, %v2888
    %vm2925 = vcmp.eq.s32.totalorder %v817, %v2888
    %vm2926 = vcmp.eq.s32.totalorder %v818, %v2888
    %vm2927 = vcmp.eq.s32.totalorder %v819, %v2888
    %vm2928 = vcmp.eq.s32.totalorder %v820, %v2888
    %vm2929 = vcmp.eq.s32.totalorder %v821, %v2888
    %vm2930 = vcmp.eq.s32.totalorder %v822, %v2888
    %vm2931 = vcmp.eq.s32.totalorder %v823, %v2888
    %vm2932 = vcmp.eq.s32.totalorder %v824, %v2888
    %vm2933 = vcmp.eq.s32.totalorder %v825, %v2888
    %vm2934 = vcmp.eq.s32.totalorder %v826, %v2888
    %vm2935 = vcmp.eq.s32.totalorder %v827, %v2888
    %vm2936 = vcmp.eq.s32.totalorder %v828, %v2888
    %vm2937 = vcmp.eq.s32.totalorder %v829, %v2888
    %vm2938 = vcmp.eq.s32.totalorder %v830, %v2888
    %vm2939 = vcmp.eq.s32.totalorder %v831, %v2888
    %vm2940 = vcmp.eq.s32.totalorder %v832, %v2888
    %vm2941 = vcmp.eq.s32.totalorder %v833, %v2888
    %vm2942 = vcmp.eq.s32.totalorder %v834, %v2888
    %vm2943 = vcmp.eq.s32.totalorder %v835, %v2888
    %vm2944 = vcmp.eq.s32.totalorder %v836, %v2888
    %vm2945 = vcmp.eq.s32.totalorder %v837, %v2888
    %vm2946 = vcmp.eq.s32.totalorder %v838, %v2888
    %vm2947 = vcmp.eq.s32.totalorder %v839, %v2888
    %vm2948 = vcmp.eq.s32.totalorder %v840, %v2888
    %vm2949 = vcmp.eq.s32.totalorder %v841, %v2888
    %vm2950 = vcmp.eq.s32.totalorder %v842, %v2888
    %vm2951 = vcmp.eq.s32.totalorder %v843, %v2888
    %vm2952 = vcmp.eq.s32.totalorder %v844, %v2888
    %vm2953 = vcmp.eq.s32.totalorder %v845, %v2888
    %vm2954 = vcmp.eq.s32.totalorder %v846, %v2888
    %vm2955 = vcmp.eq.s32.totalorder %v847, %v2888
    %vm2956 = vcmp.eq.s32.totalorder %v848, %v2888
    %vm2957 = vcmp.eq.s32.totalorder %v849, %v2888
    %vm2958 = vcmp.eq.s32.totalorder %v850, %v2888
    %vm2959 = vcmp.eq.s32.totalorder %v851, %v2888
    %vm2960 = vcmp.eq.s32.totalorder %v852, %v2888
    %vm2961 = vcmp.eq.s32.totalorder %v853, %v2888
    %vm2962 = vcmp.eq.s32.totalorder %v854, %v2888
    %vm2963 = vcmp.eq.s32.totalorder %v855, %v2888
    %vm2964 = vcmp.eq.s32.totalorder %v856, %v2888
    %vm2965 = vcmp.eq.s32.totalorder %v857, %v2888
    %vm2966 = vcmp.eq.s32.totalorder %v858, %v2888
    %vm2967 = vcmp.eq.s32.totalorder %v859, %v2888
    %vm2968 = vcmp.eq.s32.totalorder %v860, %v2888
    %vm2969 = vcmp.eq.s32.totalorder %v861, %v2888
    %vm2970 = vcmp.eq.s32.totalorder %v862, %v2888
    %vm2971 = vcmp.eq.s32.totalorder %v863, %v2888
    %vm2972 = vcmp.eq.s32.totalorder %v864, %v2888
    %vm2973 = vcmp.eq.s32.totalorder %v865, %v2888
    %vm2974 = vcmp.eq.s32.totalorder %v866, %v2888
    %vm2975 = vcmp.eq.s32.totalorder %v867, %v2888
    %vm2976 = vcmp.eq.s32.totalorder %v868, %v2888
    %vm2977 = vcmp.eq.s32.totalorder %v869, %v2888
    %vm2978 = vcmp.eq.s32.totalorder %v870, %v2888
    %vm2979 = vcmp.eq.s32.totalorder %v871, %v2888
    %vm2980 = vcmp.eq.s32.totalorder %v872, %v2888
    %vm2981 = vcmp.eq.s32.totalorder %v873, %v2888
    %vm2982 = vcmp.eq.s32.totalorder %v874, %v2888
    %vm2983 = vcmp.eq.s32.totalorder %v875, %v2888
    %vm2984 = vcmp.eq.s32.totalorder %v876, %v2888
    %vm2985 = vcmp.eq.s32.totalorder %v877, %v2888
    %vm2986 = vcmp.eq.s32.totalorder %v878, %v2888
    %vm2987 = vcmp.eq.s32.totalorder %v879, %v2888
    %vm2988 = vcmp.eq.s32.totalorder %v880, %v2888
    %vm2989 = vcmp.eq.s32.totalorder %v881, %v2888
    %vm2990 = vcmp.eq.s32.totalorder %v882, %v2888
    %vm2991 = vcmp.eq.s32.totalorder %v883, %v2888
    %vm2992 = vcmp.eq.s32.totalorder %v884, %v2888
    %vm2993 = vcmp.eq.s32.totalorder %v885, %v2888
    %vm2994 = vcmp.eq.s32.totalorder %v886, %v2888
    %vm2995 = vcmp.eq.s32.totalorder %v887, %v2888
    %vm2996 = vcmp.eq.s32.totalorder %v888, %v2888
    %vm2997 = vcmp.eq.s32.totalorder %v889, %v2888
    %vm2998 = vcmp.eq.s32.totalorder %v890, %v2888
    %vm2999 = vcmp.eq.s32.totalorder %v891, %v2888
    %vm3000 = vcmp.eq.s32.totalorder %v892, %v2888
    %vm3001 = vcmp.eq.s32.totalorder %v893, %v2888
    %vm3002 = vcmp.eq.s32.totalorder %v894, %v2888
    %vm3003 = vcmp.eq.s32.totalorder %v895, %v2888
    %vm3004 = vcmp.eq.s32.totalorder %v896, %v2888
    %vm3005 = vcmp.eq.s32.totalorder %v897, %v2888
    %vm3006 = vcmp.eq.s32.totalorder %v898, %v2888
    %vm3007 = vcmp.eq.s32.totalorder %v899, %v2888
    %vm3008 = vcmp.eq.s32.totalorder %v900, %v2888
    %vm3009 = vcmp.eq.s32.totalorder %v901, %v2888
    %vm3010 = vcmp.eq.s32.totalorder %v902, %v2888
    %vm3011 = vcmp.eq.s32.totalorder %v903, %v2888
    %vm3012 = vcmp.eq.s32.totalorder %v904, %v2888
    %vm3013 = vcmp.eq.s32.totalorder %v905, %v2888
    %vm3014 = vcmp.eq.s32.totalorder %v906, %v2888
    %vm3015 = vcmp.eq.s32.totalorder %v907, %v2888
    %vm3016 = vcmp.eq.s32.totalorder %v908, %v2888
    %v3017 = vsel %vm2889, %v143, 0.0
    %v3018 = vsel %vm2890, %v148, 0.0
    %v3019 = vsel %vm2891, %v153, 0.0
    %v3020 = vsel %vm2892, %v158, 0.0
    %v3021 = vsel %vm2893, %v163, 0.0
    %v3022 = vsel %vm2894, %v168, 0.0
    %v3023 = vsel %vm2895, %v173, 0.0
    %v3024 = vsel %vm2896, %v178, 0.0
    %v3025 = vsel %vm2897, %v183, 0.0
    %v3026 = vsel %vm2898, %v188, 0.0
    %v3027 = vsel %vm2899, %v193, 0.0
    %v3028 = vsel %vm2900, %v198, 0.0
    %v3029 = vsel %vm2901, %v203, 0.0
    %v3030 = vsel %vm2902, %v208, 0.0
    %v3031 = vsel %vm2903, %v213, 0.0
    %v3032 = vsel %vm2904, %v218, 0.0
    %v3033 = vsel %vm2905, %v223, 0.0
    %v3034 = vsel %vm2906, %v228, 0.0
    %v3035 = vsel %vm2907, %v233, 0.0
    %v3036 = vsel %vm2908, %v238, 0.0
    %v3037 = vsel %vm2909, %v243, 0.0
    %v3038 = vsel %vm2910, %v248, 0.0
    %v3039 = vsel %vm2911, %v253, 0.0
    %v3040 = vsel %vm2912, %v258, 0.0
    %v3041 = vsel %vm2913, %v263, 0.0
    %v3042 = vsel %vm2914, %v268, 0.0
    %v3043 = vsel %vm2915, %v273, 0.0
    %v3044 = vsel %vm2916, %v278, 0.0
    %v3045 = vsel %vm2917, %v283, 0.0
    %v3046 = vsel %vm2918, %v288, 0.0
    %v3047 = vsel %vm2919, %v293, 0.0
    %v3048 = vsel %vm2920, %v298, 0.0
    %v3049 = vsel %vm2921, %v303, 0.0
    %v3050 = vsel %vm2922, %v308, 0.0
    %v3051 = vsel %vm2923, %v313, 0.0
    %v3052 = vsel %vm2924, %v318, 0.0
    %v3053 = vsel %vm2925, %v323, 0.0
    %v3054 = vsel %vm2926, %v328, 0.0
    %v3055 = vsel %vm2927, %v333, 0.0
    %v3056 = vsel %vm2928, %v338, 0.0
    %v3057 = vsel %vm2929, %v343, 0.0
    %v3058 = vsel %vm2930, %v348, 0.0
    %v3059 = vsel %vm2931, %v353, 0.0
    %v3060 = vsel %vm2932, %v358, 0.0
    %v3061 = vsel %vm2933, %v363, 0.0
    %v3062 = vsel %vm2934, %v368, 0.0
    %v3063 = vsel %vm2935, %v373, 0.0
    %v3064 = vsel %vm2936, %v378, 0.0
    %v3065 = vsel %vm2937, %v383, 0.0
    %v3066 = vsel %vm2938, %v388, 0.0
    %v3067 = vsel %vm2939, %v393, 0.0
    %v3068 = vsel %vm2940, %v398, 0.0
    %v3069 = vsel %vm2941, %v403, 0.0
    %v3070 = vsel %vm2942, %v408, 0.0
    %v3071 = vsel %vm2943, %v413, 0.0
    %v3072 = vsel %vm2944, %v418, 0.0
    %v3073 = vsel %vm2945, %v423, 0.0
    %v3074 = vsel %vm2946, %v428, 0.0
    %v3075 = vsel %vm2947, %v433, 0.0
    %v3076 = vsel %vm2948, %v438, 0.0
    %v3077 = vsel %vm2949, %v443, 0.0
    %v3078 = vsel %vm2950, %v448, 0.0
    %v3079 = vsel %vm2951, %v453, 0.0
    %v3080 = vsel %vm2952, %v458, 0.0
    %v3081 = vsel %vm2953, %v463, 0.0
    %v3082 = vsel %vm2954, %v468, 0.0
    %v3083 = vsel %vm2955, %v473, 0.0
    %v3084 = vsel %vm2956, %v478, 0.0
    %v3085 = vsel %vm2957, %v483, 0.0
    %v3086 = vsel %vm2958, %v488, 0.0
    %v3087 = vsel %vm2959, %v493, 0.0
    %v3088 = vsel %vm2960, %v498, 0.0
    %v3089 = vsel %vm2961, %v503, 0.0
    %v3090 = vsel %vm2962, %v508, 0.0
    %v3091 = vsel %vm2963, %v513, 0.0
    %v3092 = vsel %vm2964, %v518, 0.0
    %v3093 = vsel %vm2965, %v523, 0.0
    %v3094 = vsel %vm2966, %v528, 0.0
    %v3095 = vsel %vm2967, %v533, 0.0
    %v3096 = vsel %vm2968, %v538, 0.0
    %v3097 = vsel %vm2969, %v543, 0.0
    %v3098 = vsel %vm2970, %v548, 0.0
    %v3099 = vsel %vm2971, %v553, 0.0
    %v3100 = vsel %vm2972, %v558, 0.0
    %v3101 = vsel %vm2973, %v563, 0.0
    %v3102 = vsel %vm2974, %v568, 0.0
    %v3103 = vsel %vm2975, %v573, 0.0
    %v3104 = vsel %vm2976, %v578, 0.0
    %v3105 = vsel %vm2977, %v583, 0.0
    %v3106 = vsel %vm2978, %v588, 0.0
    %v3107 = vsel %vm2979, %v593, 0.0
    %v3108 = vsel %vm2980, %v598, 0.0
    %v3109 = vsel %vm2981, %v603, 0.0
    %v3110 = vsel %vm2982, %v608, 0.0
    %v3111 = vsel %vm2983, %v613, 0.0
    %v3112 = vsel %vm2984, %v618, 0.0
    %v3113 = vsel %vm2985, %v623, 0.0
    %v3114 = vsel %vm2986, %v628, 0.0
    %v3115 = vsel %vm2987, %v633, 0.0
    %v3116 = vsel %vm2988, %v638, 0.0
    %v3117 = vsel %vm2989, %v643, 0.0
    %v3118 = vsel %vm2990, %v648, 0.0
    %v3119 = vsel %vm2991, %v653, 0.0
    %v3120 = vsel %vm2992, %v658, 0.0
    %v3121 = vsel %vm2993, %v663, 0.0
    %v3122 = vsel %vm2994, %v668, 0.0
    %v3123 = vsel %vm2995, %v673, 0.0
    %v3124 = vsel %vm2996, %v678, 0.0
    %v3125 = vsel %vm2997, %v683, 0.0
    %v3126 = vsel %vm2998, %v688, 0.0
    %v3127 = vsel %vm2999, %v693, 0.0
    %v3128 = vsel %vm3000, %v698, 0.0
    %v3129 = vsel %vm3001, %v703, 0.0
    %v3130 = vsel %vm3002, %v708, 0.0
    %v3131 = vsel %vm3003, %v713, 0.0
    %v3132 = vsel %vm3004, %v718, 0.0
    %v3133 = vsel %vm3005, %v723, 0.0
    %v3134 = vsel %vm3006, %v728, 0.0
    %v3135 = vsel %vm3007, %v733, 0.0
    %v3136 = vsel %vm3008, %v738, 0.0
    %v3137 = vsel %vm3009, %v743, 0.0
    %v3138 = vsel %vm3010, %v748, 0.0
    %v3139 = vsel %vm3011, %v753, 0.0
    %v3140 = vsel %vm3012, %v758, 0.0
    %v3141 = vsel %vm3013, %v763, 0.0
    %v3142 = vsel %vm3014, %v768, 0.0
    %v3143 = vsel %vm3015, %v773, 0.0
    %v3144 = vsel %vm3016, %v778, 0.0
    %v3145 = vadd.f32 %v3017, %v3018
    %v3146 = vadd.f32 %v3145, %v3019
    %v3147 = vadd.f32 %v3146, %v3020
    %v3148 = vadd.f32 %v3147, %v3021
    %v3149 = vadd.f32 %v3148, %v3022
    %v3150 = vadd.f32 %v3149, %v3023
    %v3151 = vadd.f32 %v3150, %v3024
    %v3152 = vadd.f32 %v3151, %v3025
    %v3153 = vadd.f32 %v3152, %v3026
    %v3154 = vadd.f32 %v3153, %v3027
    %v3155 = vadd.f32 %v3154, %v3028
    %v3156 = vadd.f32 %v3155, %v3029
    %v3157 = vadd.f32 %v3156, %v3030
    %v3158 = vadd.f32 %v3157, %v3031
    %v3159 = vadd.f32 %v3158, %v3032
    %v3160 = vadd.f32 %v3159, %v3033
    %v3161 = vadd.f32 %v3160, %v3034
    %v3162 = vadd.f32 %v3161, %v3035
    %v3163 = vadd.f32 %v3162, %v3036
    %v3164 = vadd.f32 %v3163, %v3037
    %v3165 = vadd.f32 %v3164, %v3038
    %v3166 = vadd.f32 %v3165, %v3039
    %v3167 = vadd.f32 %v3166, %v3040
    %v3168 = vadd.f32 %v3167, %v3041
    %v3169 = vadd.f32 %v3168, %v3042
    %v3170 = vadd.f32 %v3169, %v3043
    %v3171 = vadd.f32 %v3170, %v3044
    %v3172 = vadd.f32 %v3171, %v3045
    %v3173 = vadd.f32 %v3172, %v3046
    %v3174 = vadd.f32 %v3173, %v3047
    %v3175 = vadd.f32 %v3174, %v3048
    %v3176 = vadd.f32 %v3175, %v3049
    %v3177 = vadd.f32 %v3176, %v3050
    %v3178 = vadd.f32 %v3177, %v3051
    %v3179 = vadd.f32 %v3178, %v3052
    %v3180 = vadd.f32 %v3179, %v3053
    %v3181 = vadd.f32 %v3180, %v3054
    %v3182 = vadd.f32 %v3181, %v3055
    %v3183 = vadd.f32 %v3182, %v3056
    %v3184 = vadd.f32 %v3183, %v3057
    %v3185 = vadd.f32 %v3184, %v3058
    %v3186 = vadd.f32 %v3185, %v3059
    %v3187 = vadd.f32 %v3186, %v3060
    %v3188 = vadd.f32 %v3187, %v3061
    %v3189 = vadd.f32 %v3188, %v3062
    %v3190 = vadd.f32 %v3189, %v3063
    %v3191 = vadd.f32 %v3190, %v3064
    %v3192 = vadd.f32 %v3191, %v3065
    %v3193 = vadd.f32 %v3192, %v3066
    %v3194 = vadd.f32 %v3193, %v3067
    %v3195 = vadd.f32 %v3194, %v3068
    %v3196 = vadd.f32 %v3195, %v3069
    %v3197 = vadd.f32 %v3196, %v3070
    %v3198 = vadd.f32 %v3197, %v3071
    %v3199 = vadd.f32 %v3198, %v3072
    %v3200 = vadd.f32 %v3199, %v3073
    %v3201 = vadd.f32 %v3200, %v3074
    %v3202 = vadd.f32 %v3201, %v3075
    %v3203 = vadd.f32 %v3202, %v3076
    %v3204 = vadd.f32 %v3203, %v3077
    %v3205 = vadd.f32 %v3204, %v3078
    %v3206 = vadd.f32 %v3205, %v3079
    %v3207 = vadd.f32 %v3206, %v3080
    %v3208 = vadd.f32 %v3207, %v3081
    %v3209 = vadd.f32 %v3208, %v3082
    %v3210 = vadd.f32 %v3209, %v3083
    %v3211 = vadd.f32 %v3210, %v3084
    %v3212 = vadd.f32 %v3211, %v3085
    %v3213 = vadd.f32 %v3212, %v3086
    %v3214 = vadd.f32 %v3213, %v3087
    %v3215 = vadd.f32 %v3214, %v3088
    %v3216 = vadd.f32 %v3215, %v3089
    %v3217 = vadd.f32 %v3216, %v3090
    %v3218 = vadd.f32 %v3217, %v3091
    %v3219 = vadd.f32 %v3218, %v3092
    %v3220 = vadd.f32 %v3219, %v3093
    %v3221 = vadd.f32 %v3220, %v3094
    %v3222 = vadd.f32 %v3221, %v3095
    %v3223 = vadd.f32 %v3222, %v3096
    %v3224 = vadd.f32 %v3223, %v3097
    %v3225 = vadd.f32 %v3224, %v3098
    %v3226 = vadd.f32 %v3225, %v3099
    %v3227 = vadd.f32 %v3226, %v3100
    %v3228 = vadd.f32 %v3227, %v3101
    %v3229 = vadd.f32 %v3228, %v3102
    %v3230 = vadd.f32 %v3229, %v3103
    %v3231 = vadd.f32 %v3230, %v3104
    %v3232 = vadd.f32 %v3231, %v3105
    %v3233 = vadd.f32 %v3232, %v3106
    %v3234 = vadd.f32 %v3233, %v3107
    %v3235 = vadd.f32 %v3234, %v3108
    %v3236 = vadd.f32 %v3235, %v3109
    %v3237 = vadd.f32 %v3236, %v3110
    %v3238 = vadd.f32 %v3237, %v3111
    %v3239 = vadd.f32 %v3238, %v3112
    %v3240 = vadd.f32 %v3239, %v3113
    %v3241 = vadd.f32 %v3240, %v3114
    %v3242 = vadd.f32 %v3241, %v3115
    %v3243 = vadd.f32 %v3242, %v3116
    %v3244 = vadd.f32 %v3243, %v3117
    %v3245 = vadd.f32 %v3244, %v3118
    %v3246 = vadd.f32 %v3245, %v3119
    %v3247 = vadd.f32 %v3246, %v3120
    %v3248 = vadd.f32 %v3247, %v3121
    %v3249 = vadd.f32 %v3248, %v3122
    %v3250 = vadd.f32 %v3249, %v3123
    %v3251 = vadd.f32 %v3250, %v3124
    %v3252 = vadd.f32 %v3251, %v3125
    %v3253 = vadd.f32 %v3252, %v3126
    %v3254 = vadd.f32 %v3253, %v3127
    %v3255 = vadd.f32 %v3254, %v3128
    %v3256 = vadd.f32 %v3255, %v3129
    %v3257 = vadd.f32 %v3256, %v3130
    %v3258 = vadd.f32 %v3257, %v3131
    %v3259 = vadd.f32 %v3258, %v3132
    %v3260 = vadd.f32 %v3259, %v3133
    %v3261 = vadd.f32 %v3260, %v3134
    %v3262 = vadd.f32 %v3261, %v3135
    %v3263 = vadd.f32 %v3262, %v3136
    %v3264 = vadd.f32 %v3263, %v3137
    %v3265 = vadd.f32 %v3264, %v3138
    %v3266 = vadd.f32 %v3265, %v3139
    %v3267 = vadd.f32 %v3266, %v3140
    %v3268 = vadd.f32 %v3267, %v3141
    %v3269 = vadd.f32 %v3268, %v3142
    %v3270 = vadd.f32 %v3269, %v3143
    %v3271 = vadd.f32 %v3270, %v3144
    %v3272 = vrot.slane %v3271, 4
    %v3273 = vadd.f32 %v3271, %v3272
    %v3274 = vrot.slane %v3273, 2
    %v3275 = vadd.f32 %v3273, %v3274
    %v3276 = vrot.slane %v3275, 1
    %v3277 = vadd.f32 %v3275, %v3276
    %3278 = vst [vmem:[#allocation2 + $0x5] sm:$0x1] %v3277
    %v3279 = vld [vmem:[%s0 + $0x6] sm:$0x1]
    %v3280 = vlaneseq
    %v3281 = vshrl.u32 %v3280, 7
    %v3282 = vsub.s32 0, %v3281
    %v3283 = vrot.slane %v3279, %v3282
    %vm3284 = vcmp.eq.s32.totalorder %v781, %v3283
    %vm3285 = vcmp.eq.s32.totalorder %v782, %v3283
    %vm3286 = vcmp.eq.s32.totalorder %v783, %v3283
    %vm3287 = vcmp.eq.s32.totalorder %v784, %v3283
    %vm3288 = vcmp.eq.s32.totalorder %v785, %v3283
    %vm3289 = vcmp.eq.s32.totalorder %v786, %v3283
    %vm3290 = vcmp.eq.s32.totalorder %v787, %v3283
    %vm3291 = vcmp.eq.s32.totalorder %v788, %v3283
    %vm3292 = vcmp.eq.s32.totalorder %v789, %v3283
    %vm3293 = vcmp.eq.s32.totalorder %v790, %v3283
    %vm3294 = vcmp.eq.s32.totalorder %v791, %v3283
    %vm3295 = vcmp.eq.s32.totalorder %v792, %v3283
    %vm3296 = vcmp.eq.s32.totalorder %v793, %v3283
    %vm3297 = vcmp.eq.s32.totalorder %v794, %v3283
    %vm3298 = vcmp.eq.s32.totalorder %v795, %v3283
    %vm3299 = vcmp.eq.s32.totalorder %v796, %v3283
    %vm3300 = vcmp.eq.s32.totalorder %v797, %v3283
    %vm3301 = vcmp.eq.s32.totalorder %v798, %v3283
    %vm3302 = vcmp.eq.s32.totalorder %v799, %v3283
    %vm3303 = vcmp.eq.s32.totalorder %v800, %v3283
    %vm3304 = vcmp.eq.s32.totalorder %v801, %v3283
    %vm3305 = vcmp.eq.s32.totalorder %v802, %v3283
    %vm3306 = vcmp.eq.s32.totalorder %v803, %v3283
    %vm3307 = vcmp.eq.s32.totalorder %v804, %v3283
    %vm3308 = vcmp.eq.s32.totalorder %v805, %v3283
    %vm3309 = vcmp.eq.s32.totalorder %v806, %v3283
    %vm3310 = vcmp.eq.s32.totalorder %v807, %v3283
    %vm3311 = vcmp.eq.s32.totalorder %v808, %v3283
    %vm3312 = vcmp.eq.s32.totalorder %v809, %v3283
    %vm3313 = vcmp.eq.s32.totalorder %v810, %v3283
    %vm3314 = vcmp.eq.s32.totalorder %v811, %v3283
    %vm3315 = vcmp.eq.s32.totalorder %v812, %v3283
    %vm3316 = vcmp.eq.s32.totalorder %v813, %v3283
    %vm3317 = vcmp.eq.s32.totalorder %v814, %v3283
    %vm3318 = vcmp.eq.s32.totalorder %v815, %v3283
    %vm3319 = vcmp.eq.s32.totalorder %v816, %v3283
    %vm3320 = vcmp.eq.s32.totalorder %v817, %v3283
    %vm3321 = vcmp.eq.s32.totalorder %v818, %v3283
    %vm3322 = vcmp.eq.s32.totalorder %v819, %v3283
    %vm3323 = vcmp.eq.s32.totalorder %v820, %v3283
    %vm3324 = vcmp.eq.s32.totalorder %v821, %v3283
    %vm3325 = vcmp.eq.s32.totalorder %v822, %v3283
    %vm3326 = vcmp.eq.s32.totalorder %v823, %v3283
    %vm3327 = vcmp.eq.s32.totalorder %v824, %v3283
    %vm3328 = vcmp.eq.s32.totalorder %v825, %v3283
    %vm3329 = vcmp.eq.s32.totalorder %v826, %v3283
    %vm3330 = vcmp.eq.s32.totalorder %v827, %v3283
    %vm3331 = vcmp.eq.s32.totalorder %v828, %v3283
    %vm3332 = vcmp.eq.s32.totalorder %v829, %v3283
    %vm3333 = vcmp.eq.s32.totalorder %v830, %v3283
    %vm3334 = vcmp.eq.s32.totalorder %v831, %v3283
    %vm3335 = vcmp.eq.s32.totalorder %v832, %v3283
    %vm3336 = vcmp.eq.s32.totalorder %v833, %v3283
    %vm3337 = vcmp.eq.s32.totalorder %v834, %v3283
    %vm3338 = vcmp.eq.s32.totalorder %v835, %v3283
    %vm3339 = vcmp.eq.s32.totalorder %v836, %v3283
    %vm3340 = vcmp.eq.s32.totalorder %v837, %v3283
    %vm3341 = vcmp.eq.s32.totalorder %v838, %v3283
    %vm3342 = vcmp.eq.s32.totalorder %v839, %v3283
    %vm3343 = vcmp.eq.s32.totalorder %v840, %v3283
    %vm3344 = vcmp.eq.s32.totalorder %v841, %v3283
    %vm3345 = vcmp.eq.s32.totalorder %v842, %v3283
    %vm3346 = vcmp.eq.s32.totalorder %v843, %v3283
    %vm3347 = vcmp.eq.s32.totalorder %v844, %v3283
    %vm3348 = vcmp.eq.s32.totalorder %v845, %v3283
    %vm3349 = vcmp.eq.s32.totalorder %v846, %v3283
    %vm3350 = vcmp.eq.s32.totalorder %v847, %v3283
    %vm3351 = vcmp.eq.s32.totalorder %v848, %v3283
    %vm3352 = vcmp.eq.s32.totalorder %v849, %v3283
    %vm3353 = vcmp.eq.s32.totalorder %v850, %v3283
    %vm3354 = vcmp.eq.s32.totalorder %v851, %v3283
    %vm3355 = vcmp.eq.s32.totalorder %v852, %v3283
    %vm3356 = vcmp.eq.s32.totalorder %v853, %v3283
    %vm3357 = vcmp.eq.s32.totalorder %v854, %v3283
    %vm3358 = vcmp.eq.s32.totalorder %v855, %v3283
    %vm3359 = vcmp.eq.s32.totalorder %v856, %v3283
    %vm3360 = vcmp.eq.s32.totalorder %v857, %v3283
    %vm3361 = vcmp.eq.s32.totalorder %v858, %v3283
    %vm3362 = vcmp.eq.s32.totalorder %v859, %v3283
    %vm3363 = vcmp.eq.s32.totalorder %v860, %v3283
    %vm3364 = vcmp.eq.s32.totalorder %v861, %v3283
    %vm3365 = vcmp.eq.s32.totalorder %v862, %v3283
    %vm3366 = vcmp.eq.s32.totalorder %v863, %v3283
    %vm3367 = vcmp.eq.s32.totalorder %v864, %v3283
    %vm3368 = vcmp.eq.s32.totalorder %v865, %v3283
    %vm3369 = vcmp.eq.s32.totalorder %v866, %v3283
    %vm3370 = vcmp.eq.s32.totalorder %v867, %v3283
    %vm3371 = vcmp.eq.s32.totalorder %v868, %v3283
    %vm3372 = vcmp.eq.s32.totalorder %v869, %v3283
    %vm3373 = vcmp.eq.s32.totalorder %v870, %v3283
    %vm3374 = vcmp.eq.s32.totalorder %v871, %v3283
    %vm3375 = vcmp.eq.s32.totalorder %v872, %v3283
    %vm3376 = vcmp.eq.s32.totalorder %v873, %v3283
    %vm3377 = vcmp.eq.s32.totalorder %v874, %v3283
    %vm3378 = vcmp.eq.s32.totalorder %v875, %v3283
    %vm3379 = vcmp.eq.s32.totalorder %v876, %v3283
    %vm3380 = vcmp.eq.s32.totalorder %v877, %v3283
    %vm3381 = vcmp.eq.s32.totalorder %v878, %v3283
    %vm3382 = vcmp.eq.s32.totalorder %v879, %v3283
    %vm3383 = vcmp.eq.s32.totalorder %v880, %v3283
    %vm3384 = vcmp.eq.s32.totalorder %v881, %v3283
    %vm3385 = vcmp.eq.s32.totalorder %v882, %v3283
    %vm3386 = vcmp.eq.s32.totalorder %v883, %v3283
    %vm3387 = vcmp.eq.s32.totalorder %v884, %v3283
    %vm3388 = vcmp.eq.s32.totalorder %v885, %v3283
    %vm3389 = vcmp.eq.s32.totalorder %v886, %v3283
    %vm3390 = vcmp.eq.s32.totalorder %v887, %v3283
    %vm3391 = vcmp.eq.s32.totalorder %v888, %v3283
    %vm3392 = vcmp.eq.s32.totalorder %v889, %v3283
    %vm3393 = vcmp.eq.s32.totalorder %v890, %v3283
    %vm3394 = vcmp.eq.s32.totalorder %v891, %v3283
    %vm3395 = vcmp.eq.s32.totalorder %v892, %v3283
    %vm3396 = vcmp.eq.s32.totalorder %v893, %v3283
    %vm3397 = vcmp.eq.s32.totalorder %v894, %v3283
    %vm3398 = vcmp.eq.s32.totalorder %v895, %v3283
    %vm3399 = vcmp.eq.s32.totalorder %v896, %v3283
    %vm3400 = vcmp.eq.s32.totalorder %v897, %v3283
    %vm3401 = vcmp.eq.s32.totalorder %v898, %v3283
    %vm3402 = vcmp.eq.s32.totalorder %v899, %v3283
    %vm3403 = vcmp.eq.s32.totalorder %v900, %v3283
    %vm3404 = vcmp.eq.s32.totalorder %v901, %v3283
    %vm3405 = vcmp.eq.s32.totalorder %v902, %v3283
    %vm3406 = vcmp.eq.s32.totalorder %v903, %v3283
    %vm3407 = vcmp.eq.s32.totalorder %v904, %v3283
    %vm3408 = vcmp.eq.s32.totalorder %v905, %v3283
    %vm3409 = vcmp.eq.s32.totalorder %v906, %v3283
    %vm3410 = vcmp.eq.s32.totalorder %v907, %v3283
    %vm3411 = vcmp.eq.s32.totalorder %v908, %v3283
    %v3412 = vsel %vm3284, %v143, 0.0
    %v3413 = vsel %vm3285, %v148, 0.0
    %v3414 = vsel %vm3286, %v153, 0.0
    %v3415 = vsel %vm3287, %v158, 0.0
    %v3416 = vsel %vm3288, %v163, 0.0
    %v3417 = vsel %vm3289, %v168, 0.0
    %v3418 = vsel %vm3290, %v173, 0.0
    %v3419 = vsel %vm3291, %v178, 0.0
    %v3420 = vsel %vm3292, %v183, 0.0
    %v3421 = vsel %vm3293, %v188, 0.0
    %v3422 = vsel %vm3294, %v193, 0.0
    %v3423 = vsel %vm3295, %v198, 0.0
    %v3424 = vsel %vm3296, %v203, 0.0
    %v3425 = vsel %vm3297, %v208, 0.0
    %v3426 = vsel %vm3298, %v213, 0.0
    %v3427 = vsel %vm3299, %v218, 0.0
    %v3428 = vsel %vm3300, %v223, 0.0
    %v3429 = vsel %vm3301, %v228, 0.0
    %v3430 = vsel %vm3302, %v233, 0.0
    %v3431 = vsel %vm3303, %v238, 0.0
    %v3432 = vsel %vm3304, %v243, 0.0
    %v3433 = vsel %vm3305, %v248, 0.0
    %v3434 = vsel %vm3306, %v253, 0.0
    %v3435 = vsel %vm3307, %v258, 0.0
    %v3436 = vsel %vm3308, %v263, 0.0
    %v3437 = vsel %vm3309, %v268, 0.0
    %v3438 = vsel %vm3310, %v273, 0.0
    %v3439 = vsel %vm3311, %v278, 0.0
    %v3440 = vsel %vm3312, %v283, 0.0
    %v3441 = vsel %vm3313, %v288, 0.0
    %v3442 = vsel %vm3314, %v293, 0.0
    %v3443 = vsel %vm3315, %v298, 0.0
    %v3444 = vsel %vm3316, %v303, 0.0
    %v3445 = vsel %vm3317, %v308, 0.0
    %v3446 = vsel %vm3318, %v313, 0.0
    %v3447 = vsel %vm3319, %v318, 0.0
    %v3448 = vsel %vm3320, %v323, 0.0
    %v3449 = vsel %vm3321, %v328, 0.0
    %v3450 = vsel %vm3322, %v333, 0.0
    %v3451 = vsel %vm3323, %v338, 0.0
    %v3452 = vsel %vm3324, %v343, 0.0
    %v3453 = vsel %vm3325, %v348, 0.0
    %v3454 = vsel %vm3326, %v353, 0.0
    %v3455 = vsel %vm3327, %v358, 0.0
    %v3456 = vsel %vm3328, %v363, 0.0
    %v3457 = vsel %vm3329, %v368, 0.0
    %v3458 = vsel %vm3330, %v373, 0.0
    %v3459 = vsel %vm3331, %v378, 0.0
    %v3460 = vsel %vm3332, %v383, 0.0
    %v3461 = vsel %vm3333, %v388, 0.0
    %v3462 = vsel %vm3334, %v393, 0.0
    %v3463 = vsel %vm3335, %v398, 0.0
    %v3464 = vsel %vm3336, %v403, 0.0
    %v3465 = vsel %vm3337, %v408, 0.0
    %v3466 = vsel %vm3338, %v413, 0.0
    %v3467 = vsel %vm3339, %v418, 0.0
    %v3468 = vsel %vm3340, %v423, 0.0
    %v3469 = vsel %vm3341, %v428, 0.0
    %v3470 = vsel %vm3342, %v433, 0.0
    %v3471 = vsel %vm3343, %v438, 0.0
    %v3472 = vsel %vm3344, %v443, 0.0
    %v3473 = vsel %vm3345, %v448, 0.0
    %v3474 = vsel %vm3346, %v453, 0.0
    %v3475 = vsel %vm3347, %v458, 0.0
    %v3476 = vsel %vm3348, %v463, 0.0
    %v3477 = vsel %vm3349, %v468, 0.0
    %v3478 = vsel %vm3350, %v473, 0.0
    %v3479 = vsel %vm3351, %v478, 0.0
    %v3480 = vsel %vm3352, %v483, 0.0
    %v3481 = vsel %vm3353, %v488, 0.0
    %v3482 = vsel %vm3354, %v493, 0.0
    %v3483 = vsel %vm3355, %v498, 0.0
    %v3484 = vsel %vm3356, %v503, 0.0
    %v3485 = vsel %vm3357, %v508, 0.0
    %v3486 = vsel %vm3358, %v513, 0.0
    %v3487 = vsel %vm3359, %v518, 0.0
    %v3488 = vsel %vm3360, %v523, 0.0
    %v3489 = vsel %vm3361, %v528, 0.0
    %v3490 = vsel %vm3362, %v533, 0.0
    %v3491 = vsel %vm3363, %v538, 0.0
    %v3492 = vsel %vm3364, %v543, 0.0
    %v3493 = vsel %vm3365, %v548, 0.0
    %v3494 = vsel %vm3366, %v553, 0.0
    %v3495 = vsel %vm3367, %v558, 0.0
    %v3496 = vsel %vm3368, %v563, 0.0
    %v3497 = vsel %vm3369, %v568, 0.0
    %v3498 = vsel %vm3370, %v573, 0.0
    %v3499 = vsel %vm3371, %v578, 0.0
    %v3500 = vsel %vm3372, %v583, 0.0
    %v3501 = vsel %vm3373, %v588, 0.0
    %v3502 = vsel %vm3374, %v593, 0.0
    %v3503 = vsel %vm3375, %v598, 0.0
    %v3504 = vsel %vm3376, %v603, 0.0
    %v3505 = vsel %vm3377, %v608, 0.0
    %v3506 = vsel %vm3378, %v613, 0.0
    %v3507 = vsel %vm3379, %v618, 0.0
    %v3508 = vsel %vm3380, %v623, 0.0
    %v3509 = vsel %vm3381, %v628, 0.0
    %v3510 = vsel %vm3382, %v633, 0.0
    %v3511 = vsel %vm3383, %v638, 0.0
    %v3512 = vsel %vm3384, %v643, 0.0
    %v3513 = vsel %vm3385, %v648, 0.0
    %v3514 = vsel %vm3386, %v653, 0.0
    %v3515 = vsel %vm3387, %v658, 0.0
    %v3516 = vsel %vm3388, %v663, 0.0
    %v3517 = vsel %vm3389, %v668, 0.0
    %v3518 = vsel %vm3390, %v673, 0.0
    %v3519 = vsel %vm3391, %v678, 0.0
    %v3520 = vsel %vm3392, %v683, 0.0
    %v3521 = vsel %vm3393, %v688, 0.0
    %v3522 = vsel %vm3394, %v693, 0.0
    %v3523 = vsel %vm3395, %v698, 0.0
    %v3524 = vsel %vm3396, %v703, 0.0
    %v3525 = vsel %vm3397, %v708, 0.0
    %v3526 = vsel %vm3398, %v713, 0.0
    %v3527 = vsel %vm3399, %v718, 0.0
    %v3528 = vsel %vm3400, %v723, 0.0
    %v3529 = vsel %vm3401, %v728, 0.0
    %v3530 = vsel %vm3402, %v733, 0.0
    %v3531 = vsel %vm3403, %v738, 0.0
    %v3532 = vsel %vm3404, %v743, 0.0
    %v3533 = vsel %vm3405, %v748, 0.0
    %v3534 = vsel %vm3406, %v753, 0.0
    %v3535 = vsel %vm3407, %v758, 0.0
    %v3536 = vsel %vm3408, %v763, 0.0
    %v3537 = vsel %vm3409, %v768, 0.0
    %v3538 = vsel %vm3410, %v773, 0.0
    %v3539 = vsel %vm3411, %v778, 0.0
    %v3540 = vadd.f32 %v3412, %v3413
    %v3541 = vadd.f32 %v3540, %v3414
    %v3542 = vadd.f32 %v3541, %v3415
    %v3543 = vadd.f32 %v3542, %v3416
    %v3544 = vadd.f32 %v3543, %v3417
    %v3545 = vadd.f32 %v3544, %v3418
    %v3546 = vadd.f32 %v3545, %v3419
    %v3547 = vadd.f32 %v3546, %v3420
    %v3548 = vadd.f32 %v3547, %v3421
    %v3549 = vadd.f32 %v3548, %v3422
    %v3550 = vadd.f32 %v3549, %v3423
    %v3551 = vadd.f32 %v3550, %v3424
    %v3552 = vadd.f32 %v3551, %v3425
    %v3553 = vadd.f32 %v3552, %v3426
    %v3554 = vadd.f32 %v3553, %v3427
    %v3555 = vadd.f32 %v3554, %v3428
    %v3556 = vadd.f32 %v3555, %v3429
    %v3557 = vadd.f32 %v3556, %v3430
    %v3558 = vadd.f32 %v3557, %v3431
    %v3559 = vadd.f32 %v3558, %v3432
    %v3560 = vadd.f32 %v3559, %v3433
    %v3561 = vadd.f32 %v3560, %v3434
    %v3562 = vadd.f32 %v3561, %v3435
    %v3563 = vadd.f32 %v3562, %v3436
    %v3564 = vadd.f32 %v3563, %v3437
    %v3565 = vadd.f32 %v3564, %v3438
    %v3566 = vadd.f32 %v3565, %v3439
    %v3567 = vadd.f32 %v3566, %v3440
    %v3568 = vadd.f32 %v3567, %v3441
    %v3569 = vadd.f32 %v3568, %v3442
    %v3570 = vadd.f32 %v3569, %v3443
    %v3571 = vadd.f32 %v3570, %v3444
    %v3572 = vadd.f32 %v3571, %v3445
    %v3573 = vadd.f32 %v3572, %v3446
    %v3574 = vadd.f32 %v3573, %v3447
    %v3575 = vadd.f32 %v3574, %v3448
    %v3576 = vadd.f32 %v3575, %v3449
    %v3577 = vadd.f32 %v3576, %v3450
    %v3578 = vadd.f32 %v3577, %v3451
    %v3579 = vadd.f32 %v3578, %v3452
    %v3580 = vadd.f32 %v3579, %v3453
    %v3581 = vadd.f32 %v3580, %v3454
    %v3582 = vadd.f32 %v3581, %v3455
    %v3583 = vadd.f32 %v3582, %v3456
    %v3584 = vadd.f32 %v3583, %v3457
    %v3585 = vadd.f32 %v3584, %v3458
    %v3586 = vadd.f32 %v3585, %v3459
    %v3587 = vadd.f32 %v3586, %v3460
    %v3588 = vadd.f32 %v3587, %v3461
    %v3589 = vadd.f32 %v3588, %v3462
    %v3590 = vadd.f32 %v3589, %v3463
    %v3591 = vadd.f32 %v3590, %v3464
    %v3592 = vadd.f32 %v3591, %v3465
    %v3593 = vadd.f32 %v3592, %v3466
    %v3594 = vadd.f32 %v3593, %v3467
    %v3595 = vadd.f32 %v3594, %v3468
    %v3596 = vadd.f32 %v3595, %v3469
    %v3597 = vadd.f32 %v3596, %v3470
    %v3598 = vadd.f32 %v3597, %v3471
    %v3599 = vadd.f32 %v3598, %v3472
    %v3600 = vadd.f32 %v3599, %v3473
    %v3601 = vadd.f32 %v3600, %v3474
    %v3602 = vadd.f32 %v3601, %v3475
    %v3603 = vadd.f32 %v3602, %v3476
    %v3604 = vadd.f32 %v3603, %v3477
    %v3605 = vadd.f32 %v3604, %v3478
    %v3606 = vadd.f32 %v3605, %v3479
    %v3607 = vadd.f32 %v3606, %v3480
    %v3608 = vadd.f32 %v3607, %v3481
    %v3609 = vadd.f32 %v3608, %v3482
    %v3610 = vadd.f32 %v3609, %v3483
    %v3611 = vadd.f32 %v3610, %v3484
    %v3612 = vadd.f32 %v3611, %v3485
    %v3613 = vadd.f32 %v3612, %v3486
    %v3614 = vadd.f32 %v3613, %v3487
    %v3615 = vadd.f32 %v3614, %v3488
    %v3616 = vadd.f32 %v3615, %v3489
    %v3617 = vadd.f32 %v3616, %v3490
    %v3618 = vadd.f32 %v3617, %v3491
    %v3619 = vadd.f32 %v3618, %v3492
    %v3620 = vadd.f32 %v3619, %v3493
    %v3621 = vadd.f32 %v3620, %v3494
    %v3622 = vadd.f32 %v3621, %v3495
    %v3623 = vadd.f32 %v3622, %v3496
    %v3624 = vadd.f32 %v3623, %v3497
    %v3625 = vadd.f32 %v3624, %v3498
    %v3626 = vadd.f32 %v3625, %v3499
    %v3627 = vadd.f32 %v3626, %v3500
    %v3628 = vadd.f32 %v3627, %v3501
    %v3629 = vadd.f32 %v3628, %v3502
    %v3630 = vadd.f32 %v3629, %v3503
    %v3631 = vadd.f32 %v3630, %v3504
    %v3632 = vadd.f32 %v3631, %v3505
    %v3633 = vadd.f32 %v3632, %v3506
    %v3634 = vadd.f32 %v3633, %v3507
    %v3635 = vadd.f32 %v3634, %v3508
    %v3636 = vadd.f32 %v3635, %v3509
    %v3637 = vadd.f32 %v3636, %v3510
    %v3638 = vadd.f32 %v3637, %v3511
    %v3639 = vadd.f32 %v3638, %v3512
    %v3640 = vadd.f32 %v3639, %v3513
    %v3641 = vadd.f32 %v3640, %v3514
    %v3642 = vadd.f32 %v3641, %v3515
    %v3643 = vadd.f32 %v3642, %v3516
    %v3644 = vadd.f32 %v3643, %v3517
    %v3645 = vadd.f32 %v3644, %v3518
    %v3646 = vadd.f32 %v3645, %v3519
    %v3647 = vadd.f32 %v3646, %v3520
    %v3648 = vadd.f32 %v3647, %v3521
    %v3649 = vadd.f32 %v3648, %v3522
    %v3650 = vadd.f32 %v3649, %v3523
    %v3651 = vadd.f32 %v3650, %v3524
    %v3652 = vadd.f32 %v3651, %v3525
    %v3653 = vadd.f32 %v3652, %v3526
    %v3654 = vadd.f32 %v3653, %v3527
    %v3655 = vadd.f32 %v3654, %v3528
    %v3656 = vadd.f32 %v3655, %v3529
    %v3657 = vadd.f32 %v3656, %v3530
    %v3658 = vadd.f32 %v3657, %v3531
    %v3659 = vadd.f32 %v3658, %v3532
    %v3660 = vadd.f32 %v3659, %v3533
    %v3661 = vadd.f32 %v3660, %v3534
    %v3662 = vadd.f32 %v3661, %v3535
    %v3663 = vadd.f32 %v3662, %v3536
    %v3664 = vadd.f32 %v3663, %v3537
    %v3665 = vadd.f32 %v3664, %v3538
    %v3666 = vadd.f32 %v3665, %v3539
    %v3667 = vrot.slane %v3666, 4
    %v3668 = vadd.f32 %v3666, %v3667
    %v3669 = vrot.slane %v3668, 2
    %v3670 = vadd.f32 %v3668, %v3669
    %v3671 = vrot.slane %v3670, 1
    %v3672 = vadd.f32 %v3670, %v3671
    %3673 = vst [vmem:[#allocation2 + $0x6] sm:$0x1] %v3672
    %v3674 = vld [vmem:[%s0 + $0x7] sm:$0x1]
    %v3675 = vlaneseq
    %v3676 = vshrl.u32 %v3675, 7
    %v3677 = vsub.s32 0, %v3676
    %v3678 = vrot.slane %v3674, %v3677
    %vm3679 = vcmp.eq.s32.totalorder %v781, %v3678
    %vm3680 = vcmp.eq.s32.totalorder %v782, %v3678
    %vm3681 = vcmp.eq.s32.totalorder %v783, %v3678
    %vm3682 = vcmp.eq.s32.totalorder %v784, %v3678
    %vm3683 = vcmp.eq.s32.totalorder %v785, %v3678
    %vm3684 = vcmp.eq.s32.totalorder %v786, %v3678
    %vm3685 = vcmp.eq.s32.totalorder %v787, %v3678
    %vm3686 = vcmp.eq.s32.totalorder %v788, %v3678
    %vm3687 = vcmp.eq.s32.totalorder %v789, %v3678
    %vm3688 = vcmp.eq.s32.totalorder %v790, %v3678
    %vm3689 = vcmp.eq.s32.totalorder %v791, %v3678
    %vm3690 = vcmp.eq.s32.totalorder %v792, %v3678
    %vm3691 = vcmp.eq.s32.totalorder %v793, %v3678
    %vm3692 = vcmp.eq.s32.totalorder %v794, %v3678
    %vm3693 = vcmp.eq.s32.totalorder %v795, %v3678
    %vm3694 = vcmp.eq.s32.totalorder %v796, %v3678
    %vm3695 = vcmp.eq.s32.totalorder %v797, %v3678
    %vm3696 = vcmp.eq.s32.totalorder %v798, %v3678
    %vm3697 = vcmp.eq.s32.totalorder %v799, %v3678
    %vm3698 = vcmp.eq.s32.totalorder %v800, %v3678
    %vm3699 = vcmp.eq.s32.totalorder %v801, %v3678
    %vm3700 = vcmp.eq.s32.totalorder %v802, %v3678
    %vm3701 = vcmp.eq.s32.totalorder %v803, %v3678
    %vm3702 = vcmp.eq.s32.totalorder %v804, %v3678
    %vm3703 = vcmp.eq.s32.totalorder %v805, %v3678
    %vm3704 = vcmp.eq.s32.totalorder %v806, %v3678
    %vm3705 = vcmp.eq.s32.totalorder %v807, %v3678
    %vm3706 = vcmp.eq.s32.totalorder %v808, %v3678
    %vm3707 = vcmp.eq.s32.totalorder %v809, %v3678
    %vm3708 = vcmp.eq.s32.totalorder %v810, %v3678
    %vm3709 = vcmp.eq.s32.totalorder %v811, %v3678
    %vm3710 = vcmp.eq.s32.totalorder %v812, %v3678
    %vm3711 = vcmp.eq.s32.totalorder %v813, %v3678
    %vm3712 = vcmp.eq.s32.totalorder %v814, %v3678
    %vm3713 = vcmp.eq.s32.totalorder %v815, %v3678
    %vm3714 = vcmp.eq.s32.totalorder %v816, %v3678
    %vm3715 = vcmp.eq.s32.totalorder %v817, %v3678
    %vm3716 = vcmp.eq.s32.totalorder %v818, %v3678
    %vm3717 = vcmp.eq.s32.totalorder %v819, %v3678
    %vm3718 = vcmp.eq.s32.totalorder %v820, %v3678
    %vm3719 = vcmp.eq.s32.totalorder %v821, %v3678
    %vm3720 = vcmp.eq.s32.totalorder %v822, %v3678
    %vm3721 = vcmp.eq.s32.totalorder %v823, %v3678
    %vm3722 = vcmp.eq.s32.totalorder %v824, %v3678
    %vm3723 = vcmp.eq.s32.totalorder %v825, %v3678
    %vm3724 = vcmp.eq.s32.totalorder %v826, %v3678
    %vm3725 = vcmp.eq.s32.totalorder %v827, %v3678
    %vm3726 = vcmp.eq.s32.totalorder %v828, %v3678
    %vm3727 = vcmp.eq.s32.totalorder %v829, %v3678
    %vm3728 = vcmp.eq.s32.totalorder %v830, %v3678
    %vm3729 = vcmp.eq.s32.totalorder %v831, %v3678
    %vm3730 = vcmp.eq.s32.totalorder %v832, %v3678
    %vm3731 = vcmp.eq.s32.totalorder %v833, %v3678
    %vm3732 = vcmp.eq.s32.totalorder %v834, %v3678
    %vm3733 = vcmp.eq.s32.totalorder %v835, %v3678
    %vm3734 = vcmp.eq.s32.totalorder %v836, %v3678
    %vm3735 = vcmp.eq.s32.totalorder %v837, %v3678
    %vm3736 = vcmp.eq.s32.totalorder %v838, %v3678
    %vm3737 = vcmp.eq.s32.totalorder %v839, %v3678
    %vm3738 = vcmp.eq.s32.totalorder %v840, %v3678
    %vm3739 = vcmp.eq.s32.totalorder %v841, %v3678
    %vm3740 = vcmp.eq.s32.totalorder %v842, %v3678
    %vm3741 = vcmp.eq.s32.totalorder %v843, %v3678
    %vm3742 = vcmp.eq.s32.totalorder %v844, %v3678
    %vm3743 = vcmp.eq.s32.totalorder %v845, %v3678
    %vm3744 = vcmp.eq.s32.totalorder %v846, %v3678
    %vm3745 = vcmp.eq.s32.totalorder %v847, %v3678
    %vm3746 = vcmp.eq.s32.totalorder %v848, %v3678
    %vm3747 = vcmp.eq.s32.totalorder %v849, %v3678
    %vm3748 = vcmp.eq.s32.totalorder %v850, %v3678
    %vm3749 = vcmp.eq.s32.totalorder %v851, %v3678
    %vm3750 = vcmp.eq.s32.totalorder %v852, %v3678
    %vm3751 = vcmp.eq.s32.totalorder %v853, %v3678
    %vm3752 = vcmp.eq.s32.totalorder %v854, %v3678
    %vm3753 = vcmp.eq.s32.totalorder %v855, %v3678
    %vm3754 = vcmp.eq.s32.totalorder %v856, %v3678
    %vm3755 = vcmp.eq.s32.totalorder %v857, %v3678
    %vm3756 = vcmp.eq.s32.totalorder %v858, %v3678
    %vm3757 = vcmp.eq.s32.totalorder %v859, %v3678
    %vm3758 = vcmp.eq.s32.totalorder %v860, %v3678
    %vm3759 = vcmp.eq.s32.totalorder %v861, %v3678
    %vm3760 = vcmp.eq.s32.totalorder %v862, %v3678
    %vm3761 = vcmp.eq.s32.totalorder %v863, %v3678
    %vm3762 = vcmp.eq.s32.totalorder %v864, %v3678
    %vm3763 = vcmp.eq.s32.totalorder %v865, %v3678
    %vm3764 = vcmp.eq.s32.totalorder %v866, %v3678
    %vm3765 = vcmp.eq.s32.totalorder %v867, %v3678
    %vm3766 = vcmp.eq.s32.totalorder %v868, %v3678
    %vm3767 = vcmp.eq.s32.totalorder %v869, %v3678
    %vm3768 = vcmp.eq.s32.totalorder %v870, %v3678
    %vm3769 = vcmp.eq.s32.totalorder %v871, %v3678
    %vm3770 = vcmp.eq.s32.totalorder %v872, %v3678
    %vm3771 = vcmp.eq.s32.totalorder %v873, %v3678
    %vm3772 = vcmp.eq.s32.totalorder %v874, %v3678
    %vm3773 = vcmp.eq.s32.totalorder %v875, %v3678
    %vm3774 = vcmp.eq.s32.totalorder %v876, %v3678
    %vm3775 = vcmp.eq.s32.totalorder %v877, %v3678
    %vm3776 = vcmp.eq.s32.totalorder %v878, %v3678
    %vm3777 = vcmp.eq.s32.totalorder %v879, %v3678
    %vm3778 = vcmp.eq.s32.totalorder %v880, %v3678
    %vm3779 = vcmp.eq.s32.totalorder %v881, %v3678
    %vm3780 = vcmp.eq.s32.totalorder %v882, %v3678
    %vm3781 = vcmp.eq.s32.totalorder %v883, %v3678
    %vm3782 = vcmp.eq.s32.totalorder %v884, %v3678
    %vm3783 = vcmp.eq.s32.totalorder %v885, %v3678
    %vm3784 = vcmp.eq.s32.totalorder %v886, %v3678
    %vm3785 = vcmp.eq.s32.totalorder %v887, %v3678
    %vm3786 = vcmp.eq.s32.totalorder %v888, %v3678
    %vm3787 = vcmp.eq.s32.totalorder %v889, %v3678
    %vm3788 = vcmp.eq.s32.totalorder %v890, %v3678
    %vm3789 = vcmp.eq.s32.totalorder %v891, %v3678
    %vm3790 = vcmp.eq.s32.totalorder %v892, %v3678
    %vm3791 = vcmp.eq.s32.totalorder %v893, %v3678
    %vm3792 = vcmp.eq.s32.totalorder %v894, %v3678
    %vm3793 = vcmp.eq.s32.totalorder %v895, %v3678
    %vm3794 = vcmp.eq.s32.totalorder %v896, %v3678
    %vm3795 = vcmp.eq.s32.totalorder %v897, %v3678
    %vm3796 = vcmp.eq.s32.totalorder %v898, %v3678
    %vm3797 = vcmp.eq.s32.totalorder %v899, %v3678
    %vm3798 = vcmp.eq.s32.totalorder %v900, %v3678
    %vm3799 = vcmp.eq.s32.totalorder %v901, %v3678
    %vm3800 = vcmp.eq.s32.totalorder %v902, %v3678
    %vm3801 = vcmp.eq.s32.totalorder %v903, %v3678
    %vm3802 = vcmp.eq.s32.totalorder %v904, %v3678
    %vm3803 = vcmp.eq.s32.totalorder %v905, %v3678
    %vm3804 = vcmp.eq.s32.totalorder %v906, %v3678
    %vm3805 = vcmp.eq.s32.totalorder %v907, %v3678
    %vm3806 = vcmp.eq.s32.totalorder %v908, %v3678
    %v3807 = vsel %vm3679, %v143, 0.0
    %v3808 = vsel %vm3680, %v148, 0.0
    %v3809 = vsel %vm3681, %v153, 0.0
    %v3810 = vsel %vm3682, %v158, 0.0
    %v3811 = vsel %vm3683, %v163, 0.0
    %v3812 = vsel %vm3684, %v168, 0.0
    %v3813 = vsel %vm3685, %v173, 0.0
    %v3814 = vsel %vm3686, %v178, 0.0
    %v3815 = vsel %vm3687, %v183, 0.0
    %v3816 = vsel %vm3688, %v188, 0.0
    %v3817 = vsel %vm3689, %v193, 0.0
    %v3818 = vsel %vm3690, %v198, 0.0
    %v3819 = vsel %vm3691, %v203, 0.0
    %v3820 = vsel %vm3692, %v208, 0.0
    %v3821 = vsel %vm3693, %v213, 0.0
    %v3822 = vsel %vm3694, %v218, 0.0
    %v3823 = vsel %vm3695, %v223, 0.0
    %v3824 = vsel %vm3696, %v228, 0.0
    %v3825 = vsel %vm3697, %v233, 0.0
    %v3826 = vsel %vm3698, %v238, 0.0
    %v3827 = vsel %vm3699, %v243, 0.0
    %v3828 = vsel %vm3700, %v248, 0.0
    %v3829 = vsel %vm3701, %v253, 0.0
    %v3830 = vsel %vm3702, %v258, 0.0
    %v3831 = vsel %vm3703, %v263, 0.0
    %v3832 = vsel %vm3704, %v268, 0.0
    %v3833 = vsel %vm3705, %v273, 0.0
    %v3834 = vsel %vm3706, %v278, 0.0
    %v3835 = vsel %vm3707, %v283, 0.0
    %v3836 = vsel %vm3708, %v288, 0.0
    %v3837 = vsel %vm3709, %v293, 0.0
    %v3838 = vsel %vm3710, %v298, 0.0
    %v3839 = vsel %vm3711, %v303, 0.0
    %v3840 = vsel %vm3712, %v308, 0.0
    %v3841 = vsel %vm3713, %v313, 0.0
    %v3842 = vsel %vm3714, %v318, 0.0
    %v3843 = vsel %vm3715, %v323, 0.0
    %v3844 = vsel %vm3716, %v328, 0.0
    %v3845 = vsel %vm3717, %v333, 0.0
    %v3846 = vsel %vm3718, %v338, 0.0
    %v3847 = vsel %vm3719, %v343, 0.0
    %v3848 = vsel %vm3720, %v348, 0.0
    %v3849 = vsel %vm3721, %v353, 0.0
    %v3850 = vsel %vm3722, %v358, 0.0
    %v3851 = vsel %vm3723, %v363, 0.0
    %v3852 = vsel %vm3724, %v368, 0.0
    %v3853 = vsel %vm3725, %v373, 0.0
    %v3854 = vsel %vm3726, %v378, 0.0
    %v3855 = vsel %vm3727, %v383, 0.0
    %v3856 = vsel %vm3728, %v388, 0.0
    %v3857 = vsel %vm3729, %v393, 0.0
    %v3858 = vsel %vm3730, %v398, 0.0
    %v3859 = vsel %vm3731, %v403, 0.0
    %v3860 = vsel %vm3732, %v408, 0.0
    %v3861 = vsel %vm3733, %v413, 0.0
    %v3862 = vsel %vm3734, %v418, 0.0
    %v3863 = vsel %vm3735, %v423, 0.0
    %v3864 = vsel %vm3736, %v428, 0.0
    %v3865 = vsel %vm3737, %v433, 0.0
    %v3866 = vsel %vm3738, %v438, 0.0
    %v3867 = vsel %vm3739, %v443, 0.0
    %v3868 = vsel %vm3740, %v448, 0.0
    %v3869 = vsel %vm3741, %v453, 0.0
    %v3870 = vsel %vm3742, %v458, 0.0
    %v3871 = vsel %vm3743, %v463, 0.0
    %v3872 = vsel %vm3744, %v468, 0.0
    %v3873 = vsel %vm3745, %v473, 0.0
    %v3874 = vsel %vm3746, %v478, 0.0
    %v3875 = vsel %vm3747, %v483, 0.0
    %v3876 = vsel %vm3748, %v488, 0.0
    %v3877 = vsel %vm3749, %v493, 0.0
    %v3878 = vsel %vm3750, %v498, 0.0
    %v3879 = vsel %vm3751, %v503, 0.0
    %v3880 = vsel %vm3752, %v508, 0.0
    %v3881 = vsel %vm3753, %v513, 0.0
    %v3882 = vsel %vm3754, %v518, 0.0
    %v3883 = vsel %vm3755, %v523, 0.0
    %v3884 = vsel %vm3756, %v528, 0.0
    %v3885 = vsel %vm3757, %v533, 0.0
    %v3886 = vsel %vm3758, %v538, 0.0
    %v3887 = vsel %vm3759, %v543, 0.0
    %v3888 = vsel %vm3760, %v548, 0.0
    %v3889 = vsel %vm3761, %v553, 0.0
    %v3890 = vsel %vm3762, %v558, 0.0
    %v3891 = vsel %vm3763, %v563, 0.0
    %v3892 = vsel %vm3764, %v568, 0.0
    %v3893 = vsel %vm3765, %v573, 0.0
    %v3894 = vsel %vm3766, %v578, 0.0
    %v3895 = vsel %vm3767, %v583, 0.0
    %v3896 = vsel %vm3768, %v588, 0.0
    %v3897 = vsel %vm3769, %v593, 0.0
    %v3898 = vsel %vm3770, %v598, 0.0
    %v3899 = vsel %vm3771, %v603, 0.0
    %v3900 = vsel %vm3772, %v608, 0.0
    %v3901 = vsel %vm3773, %v613, 0.0
    %v3902 = vsel %vm3774, %v618, 0.0
    %v3903 = vsel %vm3775, %v623, 0.0
    %v3904 = vsel %vm3776, %v628, 0.0
    %v3905 = vsel %vm3777, %v633, 0.0
    %v3906 = vsel %vm3778, %v638, 0.0
    %v3907 = vsel %vm3779, %v643, 0.0
    %v3908 = vsel %vm3780, %v648, 0.0
    %v3909 = vsel %vm3781, %v653, 0.0
    %v3910 = vsel %vm3782, %v658, 0.0
    %v3911 = vsel %vm3783, %v663, 0.0
    %v3912 = vsel %vm3784, %v668, 0.0
    %v3913 = vsel %vm3785, %v673, 0.0
    %v3914 = vsel %vm3786, %v678, 0.0
    %v3915 = vsel %vm3787, %v683, 0.0
    %v3916 = vsel %vm3788, %v688, 0.0
    %v3917 = vsel %vm3789, %v693, 0.0
    %v3918 = vsel %vm3790, %v698, 0.0
    %v3919 = vsel %vm3791, %v703, 0.0
    %v3920 = vsel %vm3792, %v708, 0.0
    %v3921 = vsel %vm3793, %v713, 0.0
    %v3922 = vsel %vm3794, %v718, 0.0
    %v3923 = vsel %vm3795, %v723, 0.0
    %v3924 = vsel %vm3796, %v728, 0.0
    %v3925 = vsel %vm3797, %v733, 0.0
    %v3926 = vsel %vm3798, %v738, 0.0
    %v3927 = vsel %vm3799, %v743, 0.0
    %v3928 = vsel %vm3800, %v748, 0.0
    %v3929 = vsel %vm3801, %v753, 0.0
    %v3930 = vsel %vm3802, %v758, 0.0
    %v3931 = vsel %vm3803, %v763, 0.0
    %v3932 = vsel %vm3804, %v768, 0.0
    %v3933 = vsel %vm3805, %v773, 0.0
    %v3934 = vsel %vm3806, %v778, 0.0
    %v3935 = vadd.f32 %v3807, %v3808
    %v3936 = vadd.f32 %v3935, %v3809
    %v3937 = vadd.f32 %v3936, %v3810
    %v3938 = vadd.f32 %v3937, %v3811
    %v3939 = vadd.f32 %v3938, %v3812
    %v3940 = vadd.f32 %v3939, %v3813
    %v3941 = vadd.f32 %v3940, %v3814
    %v3942 = vadd.f32 %v3941, %v3815
    %v3943 = vadd.f32 %v3942, %v3816
    %v3944 = vadd.f32 %v3943, %v3817
    %v3945 = vadd.f32 %v3944, %v3818
    %v3946 = vadd.f32 %v3945, %v3819
    %v3947 = vadd.f32 %v3946, %v3820
    %v3948 = vadd.f32 %v3947, %v3821
    %v3949 = vadd.f32 %v3948, %v3822
    %v3950 = vadd.f32 %v3949, %v3823
    %v3951 = vadd.f32 %v3950, %v3824
    %v3952 = vadd.f32 %v3951, %v3825
    %v3953 = vadd.f32 %v3952, %v3826
    %v3954 = vadd.f32 %v3953, %v3827
    %v3955 = vadd.f32 %v3954, %v3828
    %v3956 = vadd.f32 %v3955, %v3829
    %v3957 = vadd.f32 %v3956, %v3830
    %v3958 = vadd.f32 %v3957, %v3831
    %v3959 = vadd.f32 %v3958, %v3832
    %v3960 = vadd.f32 %v3959, %v3833
    %v3961 = vadd.f32 %v3960, %v3834
    %v3962 = vadd.f32 %v3961, %v3835
    %v3963 = vadd.f32 %v3962, %v3836
    %v3964 = vadd.f32 %v3963, %v3837
    %v3965 = vadd.f32 %v3964, %v3838
    %v3966 = vadd.f32 %v3965, %v3839
    %v3967 = vadd.f32 %v3966, %v3840
    %v3968 = vadd.f32 %v3967, %v3841
    %v3969 = vadd.f32 %v3968, %v3842
    %v3970 = vadd.f32 %v3969, %v3843
    %v3971 = vadd.f32 %v3970, %v3844
    %v3972 = vadd.f32 %v3971, %v3845
    %v3973 = vadd.f32 %v3972, %v3846
    %v3974 = vadd.f32 %v3973, %v3847
    %v3975 = vadd.f32 %v3974, %v3848
    %v3976 = vadd.f32 %v3975, %v3849
    %v3977 = vadd.f32 %v3976, %v3850
    %v3978 = vadd.f32 %v3977, %v3851
    %v3979 = vadd.f32 %v3978, %v3852
    %v3980 = vadd.f32 %v3979, %v3853
    %v3981 = vadd.f32 %v3980, %v3854
    %v3982 = vadd.f32 %v3981, %v3855
    %v3983 = vadd.f32 %v3982, %v3856
    %v3984 = vadd.f32 %v3983, %v3857
    %v3985 = vadd.f32 %v3984, %v3858
    %v3986 = vadd.f32 %v3985, %v3859
    %v3987 = vadd.f32 %v3986, %v3860
    %v3988 = vadd.f32 %v3987, %v3861
    %v3989 = vadd.f32 %v3988, %v3862
    %v3990 = vadd.f32 %v3989, %v3863
    %v3991 = vadd.f32 %v3990, %v3864
    %v3992 = vadd.f32 %v3991, %v3865
    %v3993 = vadd.f32 %v3992, %v3866
    %v3994 = vadd.f32 %v3993, %v3867
    %v3995 = vadd.f32 %v3994, %v3868
    %v3996 = vadd.f32 %v3995, %v3869
    %v3997 = vadd.f32 %v3996, %v3870
    %v3998 = vadd.f32 %v3997, %v3871
    %v3999 = vadd.f32 %v3998, %v3872
    %v4000 = vadd.f32 %v3999, %v3873
    %v4001 = vadd.f32 %v4000, %v3874
    %v4002 = vadd.f32 %v4001, %v3875
    %v4003 = vadd.f32 %v4002, %v3876
    %v4004 = vadd.f32 %v4003, %v3877
    %v4005 = vadd.f32 %v4004, %v3878
    %v4006 = vadd.f32 %v4005, %v3879
    %v4007 = vadd.f32 %v4006, %v3880
    %v4008 = vadd.f32 %v4007, %v3881
    %v4009 = vadd.f32 %v4008, %v3882
    %v4010 = vadd.f32 %v4009, %v3883
    %v4011 = vadd.f32 %v4010, %v3884
    %v4012 = vadd.f32 %v4011, %v3885
    %v4013 = vadd.f32 %v4012, %v3886
    %v4014 = vadd.f32 %v4013, %v3887
    %v4015 = vadd.f32 %v4014, %v3888
    %v4016 = vadd.f32 %v4015, %v3889
    %v4017 = vadd.f32 %v4016, %v3890
    %v4018 = vadd.f32 %v4017, %v3891
    %v4019 = vadd.f32 %v4018, %v3892
    %v4020 = vadd.f32 %v4019, %v3893
    %v4021 = vadd.f32 %v4020, %v3894
    %v4022 = vadd.f32 %v4021, %v3895
    %v4023 = vadd.f32 %v4022, %v3896
    %v4024 = vadd.f32 %v4023, %v3897
    %v4025 = vadd.f32 %v4024, %v3898
    %v4026 = vadd.f32 %v4025, %v3899
    %v4027 = vadd.f32 %v4026, %v3900
    %v4028 = vadd.f32 %v4027, %v3901
    %v4029 = vadd.f32 %v4028, %v3902
    %v4030 = vadd.f32 %v4029, %v3903
    %v4031 = vadd.f32 %v4030, %v3904
    %v4032 = vadd.f32 %v4031, %v3905
    %v4033 = vadd.f32 %v4032, %v3906
    %v4034 = vadd.f32 %v4033, %v3907
    %v4035 = vadd.f32 %v4034, %v3908
    %v4036 = vadd.f32 %v4035, %v3909
    %v4037 = vadd.f32 %v4036, %v3910
    %v4038 = vadd.f32 %v4037, %v3911
    %v4039 = vadd.f32 %v4038, %v3912
    %v4040 = vadd.f32 %v4039, %v3913
    %v4041 = vadd.f32 %v4040, %v3914
    %v4042 = vadd.f32 %v4041, %v3915
    %v4043 = vadd.f32 %v4042, %v3916
    %v4044 = vadd.f32 %v4043, %v3917
    %v4045 = vadd.f32 %v4044, %v3918
    %v4046 = vadd.f32 %v4045, %v3919
    %v4047 = vadd.f32 %v4046, %v3920
    %v4048 = vadd.f32 %v4047, %v3921
    %v4049 = vadd.f32 %v4048, %v3922
    %v4050 = vadd.f32 %v4049, %v3923
    %v4051 = vadd.f32 %v4050, %v3924
    %v4052 = vadd.f32 %v4051, %v3925
    %v4053 = vadd.f32 %v4052, %v3926
    %v4054 = vadd.f32 %v4053, %v3927
    %v4055 = vadd.f32 %v4054, %v3928
    %v4056 = vadd.f32 %v4055, %v3929
    %v4057 = vadd.f32 %v4056, %v3930
    %v4058 = vadd.f32 %v4057, %v3931
    %v4059 = vadd.f32 %v4058, %v3932
    %v4060 = vadd.f32 %v4059, %v3933
    %v4061 = vadd.f32 %v4060, %v3934
    %v4062 = vrot.slane %v4061, 4
    %v4063 = vadd.f32 %v4061, %v4062
    %v4064 = vrot.slane %v4063, 2
    %v4065 = vadd.f32 %v4063, %v4064
    %v4066 = vrot.slane %v4065, 1
    %v4067 = vadd.f32 %v4065, %v4066
    %4068 = vst [vmem:[#allocation2 + $0x7] sm:$0x1] %v4067
    // Predicated region
    $region10: #{tpu_custom_call.1} parent=1 // pred_check
      _
    $region11: #{tpu_custom_call.1} parent=1 // pred_check_branch
      %4070 = sbr.rel (0) target = $region13
    $region12: #{tpu_custom_call.1} parent=1 // pred_region
      %s4072 = ssub.s32 128, 128
      %4073 = vsyncadd [#allocation3], %s4072
      %s4075 = sshll.u32 [#allocation2], 4
      %s4076 = int_to_ptr.vmem [resolvable:$true] %s4075
      %4078 = dma.vmem_to_hbm [thread:$0]  %s4076, 128, %s2, [#allocation3]
    $region13: #{tpu_custom_call.1} parent=1 // pred_fallthru
      _
    // Predicated region
    $region14: #{tpu_custom_call.1} parent=1 // pred_check
      _
    $region15: #{tpu_custom_call.1} parent=1 // pred_check_branch
      %4080 = sbr.rel (0) target = $region17
    $region16: #{tpu_custom_call.1} parent=1 // pred_region
      %4081 = dma.done [#allocation3], 128
    $region17: #{tpu_custom_call.1} parent=1 // pred_fallthru
      _
    %4082 = vsyncpa [#allocation3], 1

</llo_original>
